<compile_context>
chip_gen: v7x
topology: tpu7x:2x2x1
jax: 0.10.0
libtpu: 0.0.40
codegen_flags: <defaults>
</compile_context>

<pallas_src>
import jax
import jax.numpy as jnp
from jax.experimental import pallas as pl
from jax.experimental.pallas import tpu as pltpu

D_IN = 2048          # fc1 input features
D_HID = 1000         # true hidden width (module spec)
D_HID_P = 1024       # hidden width padded to a lane multiple (128)
N_CLASS = 12
N_CLASS_P = 128      # classifier width padded to a full lane tile
BN_EPS = 1e-5

N_CHUNKS = 4                  # K-chunking of fc1's weight for DMA/compute overlap
CHUNK_K = D_IN // N_CHUNKS    # 512


def _vmem_limit_bytes():
    """Per-generation VMEM cap: ~48 MiB on v7x (64 MiB physical), 64 MiB on
    v5e/v6e (128 MiB physical); conservative 32 MiB if the query fails."""
    try:
        cap = pltpu.get_tpu_info().vmem_capacity_bytes
        return int(min(cap - (16 << 20), 64 << 20))
    except Exception:
        return 32 << 20


_VMEM_LIMIT = _vmem_limit_bytes()


def _bn_relu(h, gamma, beta):
    """Training-mode BatchNorm1d (biased batch variance, eps=1e-5) folded into a
    single per-feature scale/shift, followed by ReLU. Centered (shifted-mean)
    variance for numerical robustness. All math in f32 (v5e has no bf16
    VPU/EUP). The pre-BN Linear bias is intentionally absent: a per-feature
    constant shifts h and its batch mean identically, so it cancels exactly."""
    mean = jnp.mean(h, axis=0, keepdims=True)
    d = h - mean
    var = jnp.mean(d * d, axis=0, keepdims=True)
    scale = gamma * jax.lax.rsqrt(var + BN_EPS)
    shift = beta - mean * scale
    return jnp.maximum(h * scale + shift, 0.0)


def r101h_kernel(x_ref, bn_ref, w1_hbm, w2_hbm, w3_hbm, o_ref,
                 w1_vmem, w2_vmem, w3_vmem, sem):
    # Issue ALL weight DMAs at kernel entry (w1 chunks first since they are
    # needed first, then w2, w3). Only x and the tiny packed BN slab go through
    # the automatic prologue copy, so HBM streaming is continuous.
    w1_cps = []
    for c in range(N_CHUNKS):
        cp = pltpu.make_async_copy(w1_hbm.at[c], w1_vmem.at[c], sem.at[c])
        cp.start()
        w1_cps.append(cp)
    cp_w2 = pltpu.make_async_copy(w2_hbm, w2_vmem, sem.at[N_CHUNKS])
    cp_w3 = pltpu.make_async_copy(w3_hbm, w3_vmem, sem.at[N_CHUNKS + 1])
    cp_w2.start()
    cp_w3.start()

    # Packed per-feature parameters: one VMEM slab, rows = g1, be1, g2, be2, b3.
    g1 = bn_ref[0:1, :]
    be1 = bn_ref[1:2, :]
    g2 = bn_ref[2:3, :]
    be2 = bn_ref[3:4, :]
    b3 = bn_ref[4:5, :N_CLASS_P]

    # fc1 as K-chunked partial accumulation: compute on chunk c starts as soon
    # as its DMA lands, overlapping the remaining weight transfers. bf16
    # operands on the MXU, f32 accumulation; BN/ReLU in f32.
    x = x_ref[...].astype(jnp.bfloat16)                                 # [B, 2048]
    h1 = jnp.zeros((x.shape[0], D_HID_P), jnp.float32)
    for c in range(N_CHUNKS):
        w1_cps[c].wait()
        h1 = h1 + jnp.dot(x[:, c * CHUNK_K:(c + 1) * CHUNK_K], w1_vmem[c],
                          preferred_element_type=jnp.float32)           # [B, 1024]
    # bn1 -> relu   (dropout is identity: training=False)
    h1 = _bn_relu(h1, g1, be1)

    # fc2 -> bn2 -> relu
    cp_w2.wait()
    h2 = jnp.dot(h1.astype(jnp.bfloat16), w2_vmem[...],
                 preferred_element_type=jnp.float32)                    # [B, 1024]
    h2 = _bn_relu(h2, g2, be2)

    # fc3 (bias kept: no BN follows)
    cp_w3.wait()
    out = jnp.dot(h2.astype(jnp.bfloat16), w3_vmem[...],
                  preferred_element_type=jnp.float32) + b3              # [B, 128]
    o_ref[...] = out.astype(o_ref.dtype)


@jax.jit
def r101h_forward(x, params):
    """x: [B, 2048] f32. Returns [B, N_CLASS] f32."""
    B = x.shape[0]
    vmem = pl.BlockSpec(memory_space=pltpu.MemorySpace.VMEM)
    hbm = pl.BlockSpec(memory_space=pl.ANY)   # raw HBM refs; DMA'd manually
    out_padded = pl.pallas_call(
        r101h_kernel,
        out_shape=jax.ShapeDtypeStruct((B, N_CLASS_P), jnp.float32),
        in_specs=[vmem, vmem, hbm, hbm, hbm],
        out_specs=vmem,
        scratch_shapes=[
            pltpu.VMEM((N_CHUNKS, CHUNK_K, D_HID_P), jnp.bfloat16),  # w1 chunks (4 MiB)
            pltpu.VMEM((D_HID_P, D_HID_P), jnp.bfloat16),            # w2 (2 MiB)
            pltpu.VMEM((D_HID_P, N_CLASS_P), jnp.bfloat16),          # w3 (0.25 MiB)
            pltpu.SemaphoreType.DMA((N_CHUNKS + 2,)),
        ],
        compiler_params=pltpu.CompilerParams(vmem_limit_bytes=_VMEM_LIMIT),
    )(x, params["bn"], params["w1"], params["w2"], params["w3"])
    return out_padded[:, :N_CLASS]


def _pad_to(a, shape):
    return jnp.pad(a, [(0, t - s) for s, t in zip(a.shape, shape)])


def pack_bn(g1, be1, g2, be2, b3):
    """Pack the five per-feature vectors into one [8, 1024] f32 slab
    (rows: g1, be1, g2, be2, b3(padded), 0, 0, 0) -> a single prologue DMA."""
    b3_p = _pad_to(b3, (1, D_HID_P))
    zeros = jnp.zeros((3, D_HID_P), jnp.float32)
    return jnp.concatenate([g1, be1, g2, be2, b3_p, zeros], axis=0)


def init_params(key):
    """Matches R101H._initialize_weights(): Linear.weight ~ N(0, 0.01),
    Linear.bias = 0, BatchNorm1d.weight = 1, BatchNorm1d.bias = 0.
    Weights are stored pre-transposed ([in, out]), zero-padded to lane-aligned
    widths, cast to bf16 (halves HBM weight traffic; the kernel accumulates in
    f32), and w1 is reshaped into 4 K-chunks for the in-kernel DMA pipeline.
    b1/b2 are kept only for the reference — the kernel drops them because the
    following train-mode BN cancels them exactly."""
    k1, k2, k3 = jax.random.split(key, 3)
    std = 0.01
    w1 = std * jax.random.normal(k1, (D_IN, D_HID), jnp.float32)
    w2 = std * jax.random.normal(k2, (D_HID, D_HID), jnp.float32)
    w3 = std * jax.random.normal(k3, (D_HID, N_CLASS), jnp.float32)
    ones_h = _pad_to(jnp.ones((1, D_HID), jnp.float32), (1, D_HID_P))
    zeros_h = jnp.zeros((1, D_HID_P), jnp.float32)
    w1_p = _pad_to(w1, (D_IN, D_HID_P)).astype(jnp.bfloat16)
    return {
        "w1": w1_p.reshape(N_CHUNKS, CHUNK_K, D_HID_P),
        "w2": _pad_to(w2, (D_HID_P, D_HID_P)).astype(jnp.bfloat16),
        "w3": _pad_to(w3, (D_HID_P, N_CLASS_P)).astype(jnp.bfloat16),
        "bn": pack_bn(ones_h, zeros_h, ones_h, zeros_h,
                      jnp.zeros((1, N_CLASS_P), jnp.float32)),
        "b1": zeros_h,     # reference only
        "b2": zeros_h,     # reference only
    }


def r101h_reference(x, p):
    """Pure-JAX mirror of the PyTorch forward (train-mode BN, dropout off), using
    the same mixed precision as the kernel (bf16 MXU operands, f32 accumulation).
    Includes the fc1/fc2 biases the kernel drops (exact BN cancellation)."""
    g1, be1, g2, be2 = (p["bn"][i:i + 1, :] for i in range(4))
    b3 = p["bn"][4:5, :N_CLASS_P]
    w1 = p["w1"].reshape(D_IN, D_HID_P)

    def mm(a, w):
        return jnp.dot(a.astype(jnp.bfloat16), w, preferred_element_type=jnp.float32)

    def bn(h, g, b):
        m = jnp.mean(h, axis=0, keepdims=True)
        v = jnp.mean((h - m) ** 2, axis=0, keepdims=True)
        return (h - m) * jax.lax.rsqrt(v + BN_EPS) * g + b

    h1 = jnp.maximum(bn(mm(x, w1) + p["b1"], g1, be1), 0.0)
    h2 = jnp.maximum(bn(mm(h1, p["w2"]) + p["b2"], g2, be2), 0.0)
    return (mm(h2, p["w3"]) + b3)[:, :N_CLASS]


if __name__ == "__main__":
    key = jax.random.PRNGKey(0)
    kx, kp, ka = jax.random.split(key, 3)

    B = 8  # > 1 so train-mode batch statistics are well-defined
    x = jax.random.normal(kx, (B, D_IN), jnp.float32)
    params = init_params(kp)

    # Make the BN-affine / bias paths non-trivial for the correctness check
    # (the module's init leaves them at 1/0/0, which would mask bugs).
    # Only the real (unpadded) feature range is perturbed.
    def _rand_real(k, scale=0.1):
        return _pad_to(scale * jax.random.normal(k, (1, D_HID), jnp.float32),
                       (1, D_HID_P))

    kg1, ke1, kg2, ke2, kb3, kb1, kb2 = jax.random.split(ka, 7)
    ones_h = _pad_to(jnp.ones((1, D_HID), jnp.float32), (1, D_HID_P))
    g1 = ones_h + _rand_real(kg1)
    g2 = ones_h + _rand_real(kg2)
    be1 = _rand_real(ke1)
    be2 = _rand_real(ke2)
    b3 = _pad_to(0.1 * jax.random.normal(kb3, (1, N_CLASS), jnp.float32),
                 (1, N_CLASS_P))
    params["bn"] = pack_bn(g1, be1, g2, be2, b3)
    params["b1"] = _rand_real(kb1)
    params["b2"] = _rand_real(kb2)

    out = jax.block_until_ready(r101h_forward(x, params))
    ref = r101h_reference(x, params)

    assert out.shape == (B, N_CLASS)
    max_err = float(jnp.max(jnp.abs(out - ref)))
    assert jnp.allclose(out, ref, atol=2e-3, rtol=2e-3), (
        f"mismatch vs JAX reference: max abs err {max_err}")

    print("KERNEL_OK")
</pallas_src>

<mosaic_0001>
module attributes {stable_mosaic.version = 11 : i64} {
  func.func @r101h_kernel(%arg0: memref<8x2048xf32, #tpu.memory_space<vmem>>, %arg1: memref<8x1024xf32, #tpu.memory_space<vmem>>, %arg2: memref<4x512x1024xbf16, #tpu.memory_space<any>>, %arg3: memref<1024x1024xbf16, #tpu.memory_space<any>>, %arg4: memref<1024x128xbf16, #tpu.memory_space<any>>, %arg5: memref<8x128xf32, #tpu.memory_space<vmem>>, %arg6: memref<4x512x1024xbf16, #tpu.memory_space<vmem>>, %arg7: memref<1024x1024xbf16, #tpu.memory_space<vmem>>, %arg8: memref<1024x128xbf16, #tpu.memory_space<vmem>>, %arg9: memref<6x!tpu.dma_semaphore, #tpu.memory_space<semaphore_mem>>) attributes {dimension_semantics = [], scalar_prefetch = 0 : i64, scratch_operands = 4 : i64, tpu.core_type = #tpu.core_type<tc>} {
    %c0_i32 = arith.constant 0 : i32
    %c0_i32_0 = arith.constant 0 : i32
    %c0_i32_1 = arith.constant 0 : i32
    %c0_i32_2 = arith.constant 0 : i32
    %c0_i32_3 = arith.constant 0 : i32
    %0 = tpu.memref_slice %arg2[%c0_i32, %c0_i32_2, %c0_i32_3] : memref<4x512x1024xbf16, #tpu.memory_space<any>> -> memref<1x512x1024xbf16, #tpu.memory_space<any>>
    %1 = tpu.memref_squeeze %0 : memref<1x512x1024xbf16, #tpu.memory_space<any>> -> memref<512x1024xbf16, #tpu.memory_space<any>>
    %c0_i32_4 = arith.constant 0 : i32
    %c0_i32_5 = arith.constant 0 : i32
    %2 = tpu.memref_slice %arg6[%c0_i32_0, %c0_i32_4, %c0_i32_5] : memref<4x512x1024xbf16, #tpu.memory_space<vmem>> -> memref<1x512x1024xbf16, #tpu.memory_space<vmem>>
    %3 = tpu.memref_squeeze %2 : memref<1x512x1024xbf16, #tpu.memory_space<vmem>> -> memref<512x1024xbf16, #tpu.memory_space<vmem>>
    %4 = tpu.memref_slice %arg9[%c0_i32_1] : memref<6x!tpu.dma_semaphore, #tpu.memory_space<semaphore_mem>> -> memref<1x!tpu.dma_semaphore, #tpu.memory_space<semaphore_mem>>
    %5 = tpu.memref_squeeze %4 : memref<1x!tpu.dma_semaphore, #tpu.memory_space<semaphore_mem>> -> memref<!tpu.dma_semaphore, #tpu.memory_space<semaphore_mem>>
    tpu.enqueue_dma source(%1 : memref<512x1024xbf16, #tpu.memory_space<any>>) target(%3 : memref<512x1024xbf16, #tpu.memory_space<vmem>>) target_semaphore(%5 : memref<!tpu.dma_semaphore, #tpu.memory_space<semaphore_mem>>)
    %c1_i32 = arith.constant 1 : i32
    %c1_i32_6 = arith.constant 1 : i32
    %c1_i32_7 = arith.constant 1 : i32
    %c0_i32_8 = arith.constant 0 : i32
    %c0_i32_9 = arith.constant 0 : i32
    %6 = tpu.memref_slice %arg2[%c1_i32, %c0_i32_8, %c0_i32_9] : memref<4x512x1024xbf16, #tpu.memory_space<any>> -> memref<1x512x1024xbf16, #tpu.memory_space<any>>
    %7 = tpu.memref_squeeze %6 : memref<1x512x1024xbf16, #tpu.memory_space<any>> -> memref<512x1024xbf16, #tpu.memory_space<any>>
    %c0_i32_10 = arith.constant 0 : i32
    %c0_i32_11 = arith.constant 0 : i32
    %8 = tpu.memref_slice %arg6[%c1_i32_6, %c0_i32_10, %c0_i32_11] : memref<4x512x1024xbf16, #tpu.memory_space<vmem>> -> memref<1x512x1024xbf16, #tpu.memory_space<vmem>>
    %9 = tpu.memref_squeeze %8 : memref<1x512x1024xbf16, #tpu.memory_space<vmem>> -> memref<512x1024xbf16, #tpu.memory_space<vmem>>
    %10 = tpu.memref_slice %arg9[%c1_i32_7] : memref<6x!tpu.dma_semaphore, #tpu.memory_space<semaphore_mem>> -> memref<1x!tpu.dma_semaphore, #tpu.memory_space<semaphore_mem>>
    %11 = tpu.memref_squeeze %10 : memref<1x!tpu.dma_semaphore, #tpu.memory_space<semaphore_mem>> -> memref<!tpu.dma_semaphore, #tpu.memory_space<semaphore_mem>>
    tpu.enqueue_dma source(%7 : memref<512x1024xbf16, #tpu.memory_space<any>>) target(%9 : memref<512x1024xbf16, #tpu.memory_space<vmem>>) target_semaphore(%11 : memref<!tpu.dma_semaphore, #tpu.memory_space<semaphore_mem>>)
    %c2_i32 = arith.constant 2 : i32
    %c2_i32_12 = arith.constant 2 : i32
    %c2_i32_13 = arith.constant 2 : i32
    %c0_i32_14 = arith.constant 0 : i32
    %c0_i32_15 = arith.constant 0 : i32
    %12 = tpu.memref_slice %arg2[%c2_i32, %c0_i32_14, %c0_i32_15] : memref<4x512x1024xbf16, #tpu.memory_space<any>> -> memref<1x512x1024xbf16, #tpu.memory_space<any>>
    %13 = tpu.memref_squeeze %12 : memref<1x512x1024xbf16, #tpu.memory_space<any>> -> memref<512x1024xbf16, #tpu.memory_space<any>>
    %c0_i32_16 = arith.constant 0 : i32
    %c0_i32_17 = arith.constant 0 : i32
    %14 = tpu.memref_slice %arg6[%c2_i32_12, %c0_i32_16, %c0_i32_17] : memref<4x512x1024xbf16, #tpu.memory_space<vmem>> -> memref<1x512x1024xbf16, #tpu.memory_space<vmem>>
    %15 = tpu.memref_squeeze %14 : memref<1x512x1024xbf16, #tpu.memory_space<vmem>> -> memref<512x1024xbf16, #tpu.memory_space<vmem>>
    %16 = tpu.memref_slice %arg9[%c2_i32_13] : memref<6x!tpu.dma_semaphore, #tpu.memory_space<semaphore_mem>> -> memref<1x!tpu.dma_semaphore, #tpu.memory_space<semaphore_mem>>
    %17 = tpu.memref_squeeze %16 : memref<1x!tpu.dma_semaphore, #tpu.memory_space<semaphore_mem>> -> memref<!tpu.dma_semaphore, #tpu.memory_space<semaphore_mem>>
    tpu.enqueue_dma source(%13 : memref<512x1024xbf16, #tpu.memory_space<any>>) target(%15 : memref<512x1024xbf16, #tpu.memory_space<vmem>>) target_semaphore(%17 : memref<!tpu.dma_semaphore, #tpu.memory_space<semaphore_mem>>)
    %c3_i32 = arith.constant 3 : i32
    %c3_i32_18 = arith.constant 3 : i32
    %c3_i32_19 = arith.constant 3 : i32
    %c0_i32_20 = arith.constant 0 : i32
    %c0_i32_21 = arith.constant 0 : i32
    %18 = tpu.memref_slice %arg2[%c3_i32, %c0_i32_20, %c0_i32_21] : memref<4x512x1024xbf16, #tpu.memory_space<any>> -> memref<1x512x1024xbf16, #tpu.memory_space<any>>
    %19 = tpu.memref_squeeze %18 : memref<1x512x1024xbf16, #tpu.memory_space<any>> -> memref<512x1024xbf16, #tpu.memory_space<any>>
    %c0_i32_22 = arith.constant 0 : i32
    %c0_i32_23 = arith.constant 0 : i32
    %20 = tpu.memref_slice %arg6[%c3_i32_18, %c0_i32_22, %c0_i32_23] : memref<4x512x1024xbf16, #tpu.memory_space<vmem>> -> memref<1x512x1024xbf16, #tpu.memory_space<vmem>>
    %21 = tpu.memref_squeeze %20 : memref<1x512x1024xbf16, #tpu.memory_space<vmem>> -> memref<512x1024xbf16, #tpu.memory_space<vmem>>
    %22 = tpu.memref_slice %arg9[%c3_i32_19] : memref<6x!tpu.dma_semaphore, #tpu.memory_space<semaphore_mem>> -> memref<1x!tpu.dma_semaphore, #tpu.memory_space<semaphore_mem>>
    %23 = tpu.memref_squeeze %22 : memref<1x!tpu.dma_semaphore, #tpu.memory_space<semaphore_mem>> -> memref<!tpu.dma_semaphore, #tpu.memory_space<semaphore_mem>>
    tpu.enqueue_dma source(%19 : memref<512x1024xbf16, #tpu.memory_space<any>>) target(%21 : memref<512x1024xbf16, #tpu.memory_space<vmem>>) target_semaphore(%23 : memref<!tpu.dma_semaphore, #tpu.memory_space<semaphore_mem>>)
    %c4_i32 = arith.constant 4 : i32
    %24 = tpu.memref_slice %arg9[%c4_i32] : memref<6x!tpu.dma_semaphore, #tpu.memory_space<semaphore_mem>> -> memref<1x!tpu.dma_semaphore, #tpu.memory_space<semaphore_mem>>
    %25 = tpu.memref_squeeze %24 : memref<1x!tpu.dma_semaphore, #tpu.memory_space<semaphore_mem>> -> memref<!tpu.dma_semaphore, #tpu.memory_space<semaphore_mem>>
    tpu.enqueue_dma source(%arg3 : memref<1024x1024xbf16, #tpu.memory_space<any>>) target(%arg7 : memref<1024x1024xbf16, #tpu.memory_space<vmem>>) target_semaphore(%25 : memref<!tpu.dma_semaphore, #tpu.memory_space<semaphore_mem>>)
    %c5_i32 = arith.constant 5 : i32
    %26 = tpu.memref_slice %arg9[%c5_i32] : memref<6x!tpu.dma_semaphore, #tpu.memory_space<semaphore_mem>> -> memref<1x!tpu.dma_semaphore, #tpu.memory_space<semaphore_mem>>
    %27 = tpu.memref_squeeze %26 : memref<1x!tpu.dma_semaphore, #tpu.memory_space<semaphore_mem>> -> memref<!tpu.dma_semaphore, #tpu.memory_space<semaphore_mem>>
    tpu.enqueue_dma source(%arg4 : memref<1024x128xbf16, #tpu.memory_space<any>>) target(%arg8 : memref<1024x128xbf16, #tpu.memory_space<vmem>>) target_semaphore(%27 : memref<!tpu.dma_semaphore, #tpu.memory_space<semaphore_mem>>)
    %c0 = arith.constant 0 : index
    %c0_24 = arith.constant 0 : index
    %28 = vector.load %arg1[%c0, %c0_24] : memref<8x1024xf32, #tpu.memory_space<vmem>>, vector<1x1024xf32>
    %c1 = arith.constant 1 : index
    %c0_25 = arith.constant 0 : index
    %29 = vector.load %arg1[%c1, %c0_25] : memref<8x1024xf32, #tpu.memory_space<vmem>>, vector<1x1024xf32>
    %c2 = arith.constant 2 : index
    %c0_26 = arith.constant 0 : index
    %30 = vector.load %arg1[%c2, %c0_26] : memref<8x1024xf32, #tpu.memory_space<vmem>>, vector<1x1024xf32>
    %c3 = arith.constant 3 : index
    %c0_27 = arith.constant 0 : index
    %31 = vector.load %arg1[%c3, %c0_27] : memref<8x1024xf32, #tpu.memory_space<vmem>>, vector<1x1024xf32>
    %c4 = arith.constant 4 : index
    %c0_28 = arith.constant 0 : index
    %32 = vector.load %arg1[%c4, %c0_28] : memref<8x1024xf32, #tpu.memory_space<vmem>>, vector<1x128xf32>
    %c0_29 = arith.constant 0 : index
    %c0_30 = arith.constant 0 : index
    %33 = vector.load %arg0[%c0_29, %c0_30] : memref<8x2048xf32, #tpu.memory_space<vmem>>, vector<8x2048xf32>
    %34 = arith.truncf %33 : vector<8x2048xf32> to vector<8x2048xbf16>
    %cst = arith.constant 0.000000e+00 : f32
    %35 = vector.broadcast %cst : f32 to vector<8x1024xf32>
    %c0_i32_31 = arith.constant 0 : i32
    %c0_i32_32 = arith.constant 0 : i32
    %c0_i32_33 = arith.constant 0 : i32
    %c0_i32_34 = arith.constant 0 : i32
    %c0_i32_35 = arith.constant 0 : i32
    %36 = tpu.memref_slice %arg2[%c0_i32_31, %c0_i32_34, %c0_i32_35] : memref<4x512x1024xbf16, #tpu.memory_space<any>> -> memref<1x512x1024xbf16, #tpu.memory_space<any>>
    %37 = tpu.memref_squeeze %36 : memref<1x512x1024xbf16, #tpu.memory_space<any>> -> memref<512x1024xbf16, #tpu.memory_space<any>>
    %c0_i32_36 = arith.constant 0 : i32
    %c0_i32_37 = arith.constant 0 : i32
    %38 = tpu.memref_slice %arg6[%c0_i32_32, %c0_i32_36, %c0_i32_37] : memref<4x512x1024xbf16, #tpu.memory_space<vmem>> -> memref<1x512x1024xbf16, #tpu.memory_space<vmem>>
    %39 = tpu.memref_squeeze %38 : memref<1x512x1024xbf16, #tpu.memory_space<vmem>> -> memref<512x1024xbf16, #tpu.memory_space<vmem>>
    %40 = tpu.memref_slice %arg9[%c0_i32_33] : memref<6x!tpu.dma_semaphore, #tpu.memory_space<semaphore_mem>> -> memref<1x!tpu.dma_semaphore, #tpu.memory_space<semaphore_mem>>
    %41 = tpu.memref_squeeze %40 : memref<1x!tpu.dma_semaphore, #tpu.memory_space<semaphore_mem>> -> memref<!tpu.dma_semaphore, #tpu.memory_space<semaphore_mem>>
    tpu.wait_dma2 semaphore(%41 : memref<!tpu.dma_semaphore, #tpu.memory_space<semaphore_mem>>) src(%37 : memref<512x1024xbf16, #tpu.memory_space<any>>) dst(%39 : memref<512x1024xbf16, #tpu.memory_space<vmem>>)
    %42 = vector.extract_strided_slice %34 {offsets = [0, 0], sizes = [8, 512], strides = [1, 1]} : vector<8x2048xbf16> to vector<8x512xbf16>
    %c0_38 = arith.constant 0 : index
    %c0_39 = arith.constant 0 : index
    %c0_40 = arith.constant 0 : index
    %43 = vector.load %arg6[%c0_38, %c0_39, %c0_40] : memref<4x512x1024xbf16, #tpu.memory_space<vmem>>, vector<1x512x1024xbf16>
    %44 = vector.shape_cast %43 : vector<1x512x1024xbf16> to vector<512x1024xbf16>
    %cst_41 = arith.constant dense<0.000000e+00> : vector<8x1024xf32>
    %45 = tpu.matmul %42, %44, %cst_41 {dimension_numbers = #tpu.dot_dimension_numbers<[1], [0], [0], [1], [0, 0, 1, 1], [], []>} : vector<8x512xbf16>, vector<512x1024xbf16>, vector<8x1024xf32> -> vector<8x1024xf32>
    %46 = arith.addf %35, %45 : vector<8x1024xf32>
    %c1_i32_42 = arith.constant 1 : i32
    %c1_i32_43 = arith.constant 1 : i32
    %c1_i32_44 = arith.constant 1 : i32
    %c0_i32_45 = arith.constant 0 : i32
    %c0_i32_46 = arith.constant 0 : i32
    %47 = tpu.memref_slice %arg2[%c1_i32_42, %c0_i32_45, %c0_i32_46] : memref<4x512x1024xbf16, #tpu.memory_space<any>> -> memref<1x512x1024xbf16, #tpu.memory_space<any>>
    %48 = tpu.memref_squeeze %47 : memref<1x512x1024xbf16, #tpu.memory_space<any>> -> memref<512x1024xbf16, #tpu.memory_space<any>>
    %c0_i32_47 = arith.constant 0 : i32
    %c0_i32_48 = arith.constant 0 : i32
    %49 = tpu.memref_slice %arg6[%c1_i32_43, %c0_i32_47, %c0_i32_48] : memref<4x512x1024xbf16, #tpu.memory_space<vmem>> -> memref<1x512x1024xbf16, #tpu.memory_space<vmem>>
    %50 = tpu.memref_squeeze %49 : memref<1x512x1024xbf16, #tpu.memory_space<vmem>> -> memref<512x1024xbf16, #tpu.memory_space<vmem>>
    %51 = tpu.memref_slice %arg9[%c1_i32_44] : memref<6x!tpu.dma_semaphore, #tpu.memory_space<semaphore_mem>> -> memref<1x!tpu.dma_semaphore, #tpu.memory_space<semaphore_mem>>
    %52 = tpu.memref_squeeze %51 : memref<1x!tpu.dma_semaphore, #tpu.memory_space<semaphore_mem>> -> memref<!tpu.dma_semaphore, #tpu.memory_space<semaphore_mem>>
    tpu.wait_dma2 semaphore(%52 : memref<!tpu.dma_semaphore, #tpu.memory_space<semaphore_mem>>) src(%48 : memref<512x1024xbf16, #tpu.memory_space<any>>) dst(%50 : memref<512x1024xbf16, #tpu.memory_space<vmem>>)
    %53 = vector.extract_strided_slice %34 {offsets = [0, 512], sizes = [8, 512], strides = [1, 1]} : vector<8x2048xbf16> to vector<8x512xbf16>
    %c1_49 = arith.constant 1 : index
    %c0_50 = arith.constant 0 : index
    %c0_51 = arith.constant 0 : index
    %54 = vector.load %arg6[%c1_49, %c0_50, %c0_51] : memref<4x512x1024xbf16, #tpu.memory_space<vmem>>, vector<1x512x1024xbf16>
    %55 = vector.shape_cast %54 : vector<1x512x1024xbf16> to vector<512x1024xbf16>
    %cst_52 = arith.constant dense<0.000000e+00> : vector<8x1024xf32>
    %56 = tpu.matmul %53, %55, %cst_52 {dimension_numbers = #tpu.dot_dimension_numbers<[1], [0], [0], [1], [0, 0, 1, 1], [], []>} : vector<8x512xbf16>, vector<512x1024xbf16>, vector<8x1024xf32> -> vector<8x1024xf32>
    %57 = arith.addf %46, %56 : vector<8x1024xf32>
    %c2_i32_53 = arith.constant 2 : i32
    %c2_i32_54 = arith.constant 2 : i32
    %c2_i32_55 = arith.constant 2 : i32
    %c0_i32_56 = arith.constant 0 : i32
    %c0_i32_57 = arith.constant 0 : i32
    %58 = tpu.memref_slice %arg2[%c2_i32_53, %c0_i32_56, %c0_i32_57] : memref<4x512x1024xbf16, #tpu.memory_space<any>> -> memref<1x512x1024xbf16, #tpu.memory_space<any>>
    %59 = tpu.memref_squeeze %58 : memref<1x512x1024xbf16, #tpu.memory_space<any>> -> memref<512x1024xbf16, #tpu.memory_space<any>>
    %c0_i32_58 = arith.constant 0 : i32
    %c0_i32_59 = arith.constant 0 : i32
    %60 = tpu.memref_slice %arg6[%c2_i32_54, %c0_i32_58, %c0_i32_59] : memref<4x512x1024xbf16, #tpu.memory_space<vmem>> -> memref<1x512x1024xbf16, #tpu.memory_space<vmem>>
    %61 = tpu.memref_squeeze %60 : memref<1x512x1024xbf16, #tpu.memory_space<vmem>> -> memref<512x1024xbf16, #tpu.memory_space<vmem>>
    %62 = tpu.memref_slice %arg9[%c2_i32_55] : memref<6x!tpu.dma_semaphore, #tpu.memory_space<semaphore_mem>> -> memref<1x!tpu.dma_semaphore, #tpu.memory_space<semaphore_mem>>
    %63 = tpu.memref_squeeze %62 : memref<1x!tpu.dma_semaphore, #tpu.memory_space<semaphore_mem>> -> memref<!tpu.dma_semaphore, #tpu.memory_space<semaphore_mem>>
    tpu.wait_dma2 semaphore(%63 : memref<!tpu.dma_semaphore, #tpu.memory_space<semaphore_mem>>) src(%59 : memref<512x1024xbf16, #tpu.memory_space<any>>) dst(%61 : memref<512x1024xbf16, #tpu.memory_space<vmem>>)
    %64 = vector.extract_strided_slice %34 {offsets = [0, 1024], sizes = [8, 512], strides = [1, 1]} : vector<8x2048xbf16> to vector<8x512xbf16>
    %c2_60 = arith.constant 2 : index
    %c0_61 = arith.constant 0 : index
    %c0_62 = arith.constant 0 : index
    %65 = vector.load %arg6[%c2_60, %c0_61, %c0_62] : memref<4x512x1024xbf16, #tpu.memory_space<vmem>>, vector<1x512x1024xbf16>
    %66 = vector.shape_cast %65 : vector<1x512x1024xbf16> to vector<512x1024xbf16>
    %cst_63 = arith.constant dense<0.000000e+00> : vector<8x1024xf32>
    %67 = tpu.matmul %64, %66, %cst_63 {dimension_numbers = #tpu.dot_dimension_numbers<[1], [0], [0], [1], [0, 0, 1, 1], [], []>} : vector<8x512xbf16>, vector<512x1024xbf16>, vector<8x1024xf32> -> vector<8x1024xf32>
    %68 = arith.addf %57, %67 : vector<8x1024xf32>
    %c3_i32_64 = arith.constant 3 : i32
    %c3_i32_65 = arith.constant 3 : i32
    %c3_i32_66 = arith.constant 3 : i32
    %c0_i32_67 = arith.constant 0 : i32
    %c0_i32_68 = arith.constant 0 : i32
    %69 = tpu.memref_slice %arg2[%c3_i32_64, %c0_i32_67, %c0_i32_68] : memref<4x512x1024xbf16, #tpu.memory_space<any>> -> memref<1x512x1024xbf16, #tpu.memory_space<any>>
    %70 = tpu.memref_squeeze %69 : memref<1x512x1024xbf16, #tpu.memory_space<any>> -> memref<512x1024xbf16, #tpu.memory_space<any>>
    %c0_i32_69 = arith.constant 0 : i32
    %c0_i32_70 = arith.constant 0 : i32
    %71 = tpu.memref_slice %arg6[%c3_i32_65, %c0_i32_69, %c0_i32_70] : memref<4x512x1024xbf16, #tpu.memory_space<vmem>> -> memref<1x512x1024xbf16, #tpu.memory_space<vmem>>
    %72 = tpu.memref_squeeze %71 : memref<1x512x1024xbf16, #tpu.memory_space<vmem>> -> memref<512x1024xbf16, #tpu.memory_space<vmem>>
    %73 = tpu.memref_slice %arg9[%c3_i32_66] : memref<6x!tpu.dma_semaphore, #tpu.memory_space<semaphore_mem>> -> memref<1x!tpu.dma_semaphore, #tpu.memory_space<semaphore_mem>>
    %74 = tpu.memref_squeeze %73 : memref<1x!tpu.dma_semaphore, #tpu.memory_space<semaphore_mem>> -> memref<!tpu.dma_semaphore, #tpu.memory_space<semaphore_mem>>
    tpu.wait_dma2 semaphore(%74 : memref<!tpu.dma_semaphore, #tpu.memory_space<semaphore_mem>>) src(%70 : memref<512x1024xbf16, #tpu.memory_space<any>>) dst(%72 : memref<512x1024xbf16, #tpu.memory_space<vmem>>)
    %75 = vector.extract_strided_slice %34 {offsets = [0, 1536], sizes = [8, 512], strides = [1, 1]} : vector<8x2048xbf16> to vector<8x512xbf16>
    %c3_71 = arith.constant 3 : index
    %c0_72 = arith.constant 0 : index
    %c0_73 = arith.constant 0 : index
    %76 = vector.load %arg6[%c3_71, %c0_72, %c0_73] : memref<4x512x1024xbf16, #tpu.memory_space<vmem>>, vector<1x512x1024xbf16>
    %77 = vector.shape_cast %76 : vector<1x512x1024xbf16> to vector<512x1024xbf16>
    %cst_74 = arith.constant dense<0.000000e+00> : vector<8x1024xf32>
    %78 = tpu.matmul %75, %77, %cst_74 {dimension_numbers = #tpu.dot_dimension_numbers<[1], [0], [0], [1], [0, 0, 1, 1], [], []>} : vector<8x512xbf16>, vector<512x1024xbf16>, vector<8x1024xf32> -> vector<8x1024xf32>
    %79 = arith.addf %68, %78 : vector<8x1024xf32>
    %cst_75 = arith.constant dense<0.000000e+00> : vector<1024xf32>
    %80 = vector.multi_reduction <add>, %79, %cst_75 [0] : vector<8x1024xf32> to vector<1024xf32>
    %81 = vector.shape_cast %80 : vector<1024xf32> to vector<1x1024xf32>
    %cst_76 = arith.constant 8.000000e+00 : f32
    %82 = vector.broadcast %cst_76 : f32 to vector<1x1024xf32>
    %83 = arith.divf %81, %82 : vector<1x1024xf32>
    %84 = vector.broadcast %83 : vector<1x1024xf32> to vector<8x1024xf32>
    %85 = arith.subf %79, %84 : vector<8x1024xf32>
    %86 = arith.mulf %85, %85 : vector<8x1024xf32>
    %cst_77 = arith.constant dense<0.000000e+00> : vector<1024xf32>
    %87 = vector.multi_reduction <add>, %86, %cst_77 [0] : vector<8x1024xf32> to vector<1024xf32>
    %88 = vector.shape_cast %87 : vector<1024xf32> to vector<1x1024xf32>
    %cst_78 = arith.constant 8.000000e+00 : f32
    %89 = vector.broadcast %cst_78 : f32 to vector<1x1024xf32>
    %90 = arith.divf %88, %89 : vector<1x1024xf32>
    %cst_79 = arith.constant 9.99999974E-6 : f32
    %91 = vector.broadcast %cst_79 : f32 to vector<1x1024xf32>
    %92 = arith.addf %90, %91 : vector<1x1024xf32>
    %93 = math.rsqrt %92 : vector<1x1024xf32>
    %94 = arith.mulf %28, %93 : vector<1x1024xf32>
    %95 = arith.mulf %83, %94 : vector<1x1024xf32>
    %96 = arith.subf %29, %95 : vector<1x1024xf32>
    %97 = vector.broadcast %94 : vector<1x1024xf32> to vector<8x1024xf32>
    %98 = arith.mulf %79, %97 : vector<8x1024xf32>
    %99 = vector.broadcast %96 : vector<1x1024xf32> to vector<8x1024xf32>
    %100 = arith.addf %98, %99 : vector<8x1024xf32>
    %cst_80 = arith.constant 0.000000e+00 : f32
    %101 = vector.broadcast %cst_80 : f32 to vector<8x1024xf32>
    %102 = arith.maximumf %100, %101 : vector<8x1024xf32>
    %c4_i32_81 = arith.constant 4 : i32
    %103 = tpu.memref_slice %arg9[%c4_i32_81] : memref<6x!tpu.dma_semaphore, #tpu.memory_space<semaphore_mem>> -> memref<1x!tpu.dma_semaphore, #tpu.memory_space<semaphore_mem>>
    %104 = tpu.memref_squeeze %103 : memref<1x!tpu.dma_semaphore, #tpu.memory_space<semaphore_mem>> -> memref<!tpu.dma_semaphore, #tpu.memory_space<semaphore_mem>>
    tpu.wait_dma2 semaphore(%104 : memref<!tpu.dma_semaphore, #tpu.memory_space<semaphore_mem>>) src(%arg3 : memref<1024x1024xbf16, #tpu.memory_space<any>>) dst(%arg7 : memref<1024x1024xbf16, #tpu.memory_space<vmem>>)
    %105 = arith.truncf %102 : vector<8x1024xf32> to vector<8x1024xbf16>
    %c0_82 = arith.constant 0 : index
    %c0_83 = arith.constant 0 : index
    %106 = vector.load %arg7[%c0_82, %c0_83] : memref<1024x1024xbf16, #tpu.memory_space<vmem>>, vector<1024x1024xbf16>
    %cst_84 = arith.constant dense<0.000000e+00> : vector<8x1024xf32>
    %107 = tpu.matmul %105, %106, %cst_84 {dimension_numbers = #tpu.dot_dimension_numbers<[1], [0], [0], [1], [0, 0, 1, 1], [], []>} : vector<8x1024xbf16>, vector<1024x1024xbf16>, vector<8x1024xf32> -> vector<8x1024xf32>
    %cst_85 = arith.constant dense<0.000000e+00> : vector<1024xf32>
    %108 = vector.multi_reduction <add>, %107, %cst_85 [0] : vector<8x1024xf32> to vector<1024xf32>
    %109 = vector.shape_cast %108 : vector<1024xf32> to vector<1x1024xf32>
    %cst_86 = arith.constant 8.000000e+00 : f32
    %110 = vector.broadcast %cst_86 : f32 to vector<1x1024xf32>
    %111 = arith.divf %109, %110 : vector<1x1024xf32>
    %112 = vector.broadcast %111 : vector<1x1024xf32> to vector<8x1024xf32>
    %113 = arith.subf %107, %112 : vector<8x1024xf32>
    %114 = arith.mulf %113, %113 : vector<8x1024xf32>
    %cst_87 = arith.constant dense<0.000000e+00> : vector<1024xf32>
    %115 = vector.multi_reduction <add>, %114, %cst_87 [0] : vector<8x1024xf32> to vector<1024xf32>
    %116 = vector.shape_cast %115 : vector<1024xf32> to vector<1x1024xf32>
    %cst_88 = arith.constant 8.000000e+00 : f32
    %117 = vector.broadcast %cst_88 : f32 to vector<1x1024xf32>
    %118 = arith.divf %116, %117 : vector<1x1024xf32>
    %cst_89 = arith.constant 9.99999974E-6 : f32
    %119 = vector.broadcast %cst_89 : f32 to vector<1x1024xf32>
    %120 = arith.addf %118, %119 : vector<1x1024xf32>
    %121 = math.rsqrt %120 : vector<1x1024xf32>
    %122 = arith.mulf %30, %121 : vector<1x1024xf32>
    %123 = arith.mulf %111, %122 : vector<1x1024xf32>
    %124 = arith.subf %31, %123 : vector<1x1024xf32>
    %125 = vector.broadcast %122 : vector<1x1024xf32> to vector<8x1024xf32>
    %126 = arith.mulf %107, %125 : vector<8x1024xf32>
    %127 = vector.broadcast %124 : vector<1x1024xf32> to vector<8x1024xf32>
    %128 = arith.addf %126, %127 : vector<8x1024xf32>
    %cst_90 = arith.constant 0.000000e+00 : f32
    %129 = vector.broadcast %cst_90 : f32 to vector<8x1024xf32>
    %130 = arith.maximumf %128, %129 : vector<8x1024xf32>
    %c5_i32_91 = arith.constant 5 : i32
    %131 = tpu.memref_slice %arg9[%c5_i32_91] : memref<6x!tpu.dma_semaphore, #tpu.memory_space<semaphore_mem>> -> memref<1x!tpu.dma_semaphore, #tpu.memory_space<semaphore_mem>>
    %132 = tpu.memref_squeeze %131 : memref<1x!tpu.dma_semaphore, #tpu.memory_space<semaphore_mem>> -> memref<!tpu.dma_semaphore, #tpu.memory_space<semaphore_mem>>
    tpu.wait_dma2 semaphore(%132 : memref<!tpu.dma_semaphore, #tpu.memory_space<semaphore_mem>>) src(%arg4 : memref<1024x128xbf16, #tpu.memory_space<any>>) dst(%arg8 : memref<1024x128xbf16, #tpu.memory_space<vmem>>)
    %133 = arith.truncf %130 : vector<8x1024xf32> to vector<8x1024xbf16>
    %c0_92 = arith.constant 0 : index
    %c0_93 = arith.constant 0 : index
    %134 = vector.load %arg8[%c0_92, %c0_93] : memref<1024x128xbf16, #tpu.memory_space<vmem>>, vector<1024x128xbf16>
    %cst_94 = arith.constant dense<0.000000e+00> : vector<8x128xf32>
    %135 = tpu.matmul %133, %134, %cst_94 {dimension_numbers = #tpu.dot_dimension_numbers<[1], [0], [0], [1], [0, 0, 1, 1], [], []>} : vector<8x1024xbf16>, vector<1024x128xbf16>, vector<8x128xf32> -> vector<8x128xf32>
    %136 = vector.broadcast %32 : vector<1x128xf32> to vector<8x128xf32>
    %137 = arith.addf %135, %136 : vector<8x128xf32>
    %c0_95 = arith.constant 0 : index
    %c0_96 = arith.constant 0 : index
    %138 = vector.load %arg5[%c0_95, %c0_96] : memref<8x128xf32, #tpu.memory_space<vmem>>, vector<8x128xf32>
    tpu.vector_store %arg5[%c0_95, %c0_96], %137 {strides = array<i32>} : memref<8x128xf32, #tpu.memory_space<vmem>>, vector<8x128xf32>,
    return
  }
}

</mosaic_0001>

<llo_original>
// kernel: r101h_forward.1
$region0: #{r101h_forward.1}
  #allocation0 [shape = 'u32[]', space=smem, size = 0x4, offset = 0x4, fixed_abs, tag = 'smem constant byte address 0x4 - core index']
  #allocation1 [shape = 'u32[144,128]{1,0:T(1,128)}', space=vmem, size = 0x12000, scoped, tag = 'internal scratch']
  #allocation2 [shape = 'bf16[4,512,1024]{2,1,0:T(16,128)(2,1)}', space=vmem, size = 0x400000, scoped, tag = 'scratch operand']
  #allocation3 [shape = 'bf16[1024,1024]{1,0:T(16,128)(2,1)}', space=vmem, size = 0x200000, scoped, tag = 'scratch operand']
  #allocation4 [shape = 'bf16[1024,128]{1,0:T(16,128)(2,1)}', space=vmem, size = 0x40000, scoped, tag = 'scratch operand']
  #allocation5 [shape = 's32[6]{0}', space=sflag, size = 0x18, scoped, tag = 'scratch operand']
  #allocation12 [shape = 's32[]', space=sflag, size = 0x4, offset = 0, fixed_abs, tag = 'sflag constant byte address 0x0 - dummy sync flag']
  #allocation14 [shape = 's32[]', space=sflag, size = 0x4, offset = 0, fixed_abs, tag = 'sflag constant byte address 0x0 - dummy sync flag']
  #allocation16 [shape = 's32[]', space=sflag, size = 0x4, offset = 0, fixed_abs, tag = 'sflag constant byte address 0x0 - dummy sync flag']
  #allocation18 [shape = 's32[]', space=sflag, size = 0x4, offset = 0, fixed_abs, tag = 'sflag constant byte address 0x0 - dummy sync flag']
  #allocation20 [shape = 's32[]', space=sflag, size = 0x4, offset = 0, fixed_abs, tag = 'sflag constant byte address 0x0 - dummy sync flag']
  #allocation22 [shape = 's32[]', space=sflag, size = 0x4, offset = 0, fixed_abs, tag = 'sflag constant byte address 0x0 - dummy sync flag']
  #allocation23 [shape = 's32[]', space=sflag, size = 0x4, offset = 0, fixed_abs, tag = 'sflag constant byte address 0x0 - dummy sync flag']
  #allocation24 [shape = 'u32[]', space=smem, size = 0x4, offset = 0x44, fixed_abs, tag = 'smem constant byte address 0x44 - assertion arg 0']
  #allocation25 [shape = 'u32[]', space=smem, size = 0x4, offset = 0x48, fixed_abs, tag = 'smem constant byte address 0x48 - assertion arg 1']
  %s0 = inlined_call_operand.hbm [shape: f32[8,2048], index: 0, kind: input, shape index: {}]
  %s1 = inlined_call_operand.hbm [shape: f32[8,1024], index: 1, kind: input, shape index: {}]
  %s2 = inlined_call_operand.hbm [shape: bf16[4,512,1024], index: 2, kind: input, shape index: {}]
  %s3 = inlined_call_operand.hbm [shape: bf16[1024,1024], index: 3, kind: input, shape index: {}]
  %s4 = inlined_call_operand.hbm [shape: bf16[1024,128], index: 4, kind: input, shape index: {}]
  %s5 = inlined_call_operand.hbm [shape: f32[8,128], index: 5, kind: output, shape index: {}]
  %s6 = sld [smem:[#allocation0]]
  $region30: #{r101h_forward.1} parent=0
    _
  %s8 = ssub.s32 1, %s6
  %s9 = scalar_select 0, %s8, %s6
  $region1: #{r101h_forward.1} parent=0
    #allocation6 [shape = 'u8[65536]{0}', space=vmem, size = 0x10000, scoped, tag = 'input window, operand 0, single buffered']
    #allocation7 [shape = 's32[1]{0}', space=sflag, size = 0x4, scoped, tag = 'scoped memory for r101h_forward.1']
    #allocation8 [shape = 's32[1]{0}', space=sflag, size = 0x4, scoped, tag = 'scoped memory for r101h_forward.1']
    #allocation9 [shape = 'u8[32768]{0}', space=vmem, size = 0x8000, scoped, tag = 'input window, operand 1, single buffered']
    #allocation10 [shape = 's32[1]{0}', space=sflag, size = 0x4, scoped, tag = 'scoped memory for r101h_forward.1']
    #allocation11 [shape = 'u8[4096]{0}', space=vmem, size = 0x1000, scoped, tag = 'output window, operand 0, single buffered']
    #allocation13 [shape = 'u32[9]{0}', space=smem, size = 0x24, scoped, tag = 'DMA stride descriptor']
    #allocation15 [shape = 'u32[9]{0}', space=smem, size = 0x24, scoped, tag = 'DMA stride descriptor']
    #allocation17 [shape = 'u32[9]{0}', space=smem, size = 0x24, scoped, tag = 'DMA stride descriptor']
    #allocation19 [shape = 'u32[9]{0}', space=smem, size = 0x24, scoped, tag = 'DMA stride descriptor']
    #allocation21 [shape = 'u32[9]{0}', space=smem, size = 0x24, scoped, tag = 'DMA stride descriptor']
    %10 = vsyncpa [#allocation7], 0
    %11 = vsyncpa [#allocation10], 0
    %12 = vsyncpa [#allocation8], 0
    // Predicated region
    $region2: #{r101h_forward.1} parent=1 // pred_check
      _
    $region3: #{r101h_forward.1} parent=1 // pred_check_branch
      %14 = sbr.rel (0) target = $region5
    $region4: #{r101h_forward.1} parent=1 // pred_region
      %s16 = ssub.s32 2048, 2048
      %17 = vsyncadd [#allocation7], %s16
      %s19 = sshll.u32 [#allocation6], 4
      %s20 = int_to_ptr.vmem [resolvable:$true] %s19
      %22 = dma.hbm_to_vmem [thread:$0]  %s0, 2048, %s20, [#allocation7]
    $region5: #{r101h_forward.1} parent=1 // pred_fallthru
      _
    // Predicated region
    $region6: #{r101h_forward.1} parent=1 // pred_check
      _
    $region7: #{r101h_forward.1} parent=1 // pred_check_branch
      %24 = sbr.rel (0) target = $region9
    $region8: #{r101h_forward.1} parent=1 // pred_region
      %s26 = ssub.s32 1024, 1024
      %27 = vsyncadd [#allocation10], %s26
      %s29 = sshll.u32 [#allocation9], 4
      %s30 = int_to_ptr.vmem [resolvable:$true] %s29
      %32 = dma.hbm_to_vmem [thread:$0]  %s1, 1024, %s30, [#allocation10]
    $region9: #{r101h_forward.1} parent=1 // pred_fallthru
      _
    // Predicated region
    $region10: #{r101h_forward.1} parent=1 // pred_check
      _
    $region11: #{r101h_forward.1} parent=1 // pred_check_branch
      %34 = sbr.rel (0) target = $region13
    $region12: #{r101h_forward.1} parent=1 // pred_region
      %35 = dma.done [#allocation7], 2048
    $region13: #{r101h_forward.1} parent=1 // pred_fallthru
      _
    // Predicated region
    $region14: #{r101h_forward.1} parent=1 // pred_check
      _
    $region15: #{r101h_forward.1} parent=1 // pred_check_branch
      %37 = sbr.rel (0) target = $region17
    $region16: #{r101h_forward.1} parent=1 // pred_region
      %38 = dma.done [#allocation10], 1024
    $region17: #{r101h_forward.1} parent=1 // pred_fallthru
      _
    %s41 = sshll.u32 1, 14
    %s42 = sxor.u32 4294967295, %s41
    %s44 = sld [smem:[#allocation0]]
    %s45 = sadd.s32 2, %s44
    %s47 = sshll.u32 7, 26
    %s48 = sxor.u32 4294967295, %s47
    %s49 = sand.u32 0, %s48
    %s50 = sshll.u32 %s45, 26
    %s51 = sor.u32 %s49, %s50
    %s52 = sshll.u32 [#allocation2], 4
    %s53 = int_to_ptr.vmem [resolvable:$true] %s52
    %56 = sst [smem:[#allocation13]] 1024
    %s57 = scalar_lea.smem [#allocation13], 1
    %58 = sst [smem:[%s57]] 1024
    %s59 = scalar_lea.smem [#allocation13], 2
    %60 = sst [smem:[%s59]] 8
    %s61 = scalar_lea.smem [#allocation13], 3
    %62 = sst [smem:[%s61]] 64
    %s63 = scalar_lea.smem [#allocation13], 4
    %64 = sst [smem:[%s63]] 128
    %s65 = scalar_lea.smem [#allocation13], 5
    %66 = sst [smem:[%s65]] 2
    %s67 = scalar_lea.smem [#allocation13], 6
    %68 = sst [smem:[%s67]] 512
    %s69 = scalar_lea.smem [#allocation13], 7
    %70 = sst [smem:[%s69]] 64
    %s71 = scalar_lea.smem [#allocation13], 8
    %72 = sst [smem:[%s71]] 4
    %74 = dma.general %s2, 32768, %s53, [#allocation5], [#allocation12], [#allocation13], %s51, 0
    %s75 = scalar_lea.hbm %s2, 32768
    %s76 = scalar_lea.vmem [#allocation2], 2048
    %s77 = scalar_lea.sflag [#allocation5], 1
    %s79 = sshll.u32 1, 14
    %s80 = sxor.u32 4294967295, %s79
    %s82 = sadd.s32 2, %s44
    %s84 = sshll.u32 7, 26
    %s85 = sxor.u32 4294967295, %s84
    %s86 = sand.u32 0, %s85
    %s87 = sshll.u32 %s82, 26
    %s88 = sor.u32 %s86, %s87
    %s89 = sshll.u32 %s76, 4
    %s90 = int_to_ptr.vmem [resolvable:$true] %s89
    %93 = sst [smem:[#allocation15]] 1024
    %s94 = scalar_lea.smem [#allocation15], 1
    %95 = sst [smem:[%s94]] 1024
    %s96 = scalar_lea.smem [#allocation15], 2
    %97 = sst [smem:[%s96]] 8
    %s98 = scalar_lea.smem [#allocation15], 3
    %99 = sst [smem:[%s98]] 64
    %s100 = scalar_lea.smem [#allocation15], 4
    %101 = sst [smem:[%s100]] 128
    %s102 = scalar_lea.smem [#allocation15], 5
    %103 = sst [smem:[%s102]] 2
    %s104 = scalar_lea.smem [#allocation15], 6
    %105 = sst [smem:[%s104]] 512
    %s106 = scalar_lea.smem [#allocation15], 7
    %107 = sst [smem:[%s106]] 64
    %s108 = scalar_lea.smem [#allocation15], 8
    %109 = sst [smem:[%s108]] 4
    %111 = dma.general %s75, 32768, %s90, %s77, [#allocation14], [#allocation15], %s88, 0
    %s112 = scalar_lea.hbm %s2, 65536
    %s113 = scalar_lea.vmem [#allocation2], 4096
    %s114 = scalar_lea.sflag [#allocation5], 2
    %s116 = sshll.u32 1, 14
    %s117 = sxor.u32 4294967295, %s116
    %s119 = sadd.s32 2, %s44
    %s121 = sshll.u32 7, 26
    %s122 = sxor.u32 4294967295, %s121
    %s123 = sand.u32 0, %s122
    %s124 = sshll.u32 %s119, 26
    %s125 = sor.u32 %s123, %s124
    %s126 = sshll.u32 %s113, 4
    %s127 = int_to_ptr.vmem [resolvable:$true] %s126
    %130 = sst [smem:[#allocation17]] 1024
    %s131 = scalar_lea.smem [#allocation17], 1
    %132 = sst [smem:[%s131]] 1024
    %s133 = scalar_lea.smem [#allocation17], 2
    %134 = sst [smem:[%s133]] 8
    %s135 = scalar_lea.smem [#allocation17], 3
    %136 = sst [smem:[%s135]] 64
    %s137 = scalar_lea.smem [#allocation17], 4
    %138 = sst [smem:[%s137]] 128
    %s139 = scalar_lea.smem [#allocation17], 5
    %140 = sst [smem:[%s139]] 2
    %s141 = scalar_lea.smem [#allocation17], 6
    %142 = sst [smem:[%s141]] 512
    %s143 = scalar_lea.smem [#allocation17], 7
    %144 = sst [smem:[%s143]] 64
    %s145 = scalar_lea.smem [#allocation17], 8
    %146 = sst [smem:[%s145]] 4
    %148 = dma.general %s112, 32768, %s127, %s114, [#allocation16], [#allocation17], %s125, 0
    %s149 = scalar_lea.hbm %s2, 98304
    %s150 = scalar_lea.vmem [#allocation2], 6144
    %s151 = scalar_lea.sflag [#allocation5], 3
    %s153 = sshll.u32 1, 14
    %s154 = sxor.u32 4294967295, %s153
    %s156 = sadd.s32 2, %s44
    %s158 = sshll.u32 7, 26
    %s159 = sxor.u32 4294967295, %s158
    %s160 = sand.u32 0, %s159
    %s161 = sshll.u32 %s156, 26
    %s162 = sor.u32 %s160, %s161
    %s163 = sshll.u32 %s150, 4
    %s164 = int_to_ptr.vmem [resolvable:$true] %s163
    %167 = sst [smem:[#allocation19]] 1024
    %s168 = scalar_lea.smem [#allocation19], 1
    %169 = sst [smem:[%s168]] 1024
    %s170 = scalar_lea.smem [#allocation19], 2
    %171 = sst [smem:[%s170]] 8
    %s172 = scalar_lea.smem [#allocation19], 3
    %173 = sst [smem:[%s172]] 64
    %s174 = scalar_lea.smem [#allocation19], 4
    %175 = sst [smem:[%s174]] 128
    %s176 = scalar_lea.smem [#allocation19], 5
    %177 = sst [smem:[%s176]] 2
    %s178 = scalar_lea.smem [#allocation19], 6
    %179 = sst [smem:[%s178]] 512
    %s180 = scalar_lea.smem [#allocation19], 7
    %181 = sst [smem:[%s180]] 64
    %s182 = scalar_lea.smem [#allocation19], 8
    %183 = sst [smem:[%s182]] 4
    %185 = dma.general %s149, 32768, %s164, %s151, [#allocation18], [#allocation19], %s162, 0
    %s186 = scalar_lea.sflag [#allocation5], 4
    %s188 = sshll.u32 1, 14
    %s189 = sxor.u32 4294967295, %s188
    %s191 = sadd.s32 2, %s44
    %s193 = sshll.u32 7, 26
    %s194 = sxor.u32 4294967295, %s193
    %s195 = sand.u32 0, %s194
    %s196 = sshll.u32 %s191, 26
    %s197 = sor.u32 %s195, %s196
    %s198 = sshll.u32 [#allocation3], 4
    %s199 = int_to_ptr.vmem [resolvable:$true] %s198
    %202 = sst [smem:[#allocation21]] 1024
    %s203 = scalar_lea.smem [#allocation21], 1
    %204 = sst [smem:[%s203]] 1024
    %s205 = scalar_lea.smem [#allocation21], 2
    %206 = sst [smem:[%s205]] 8
    %s207 = scalar_lea.smem [#allocation21], 3
    %208 = sst [smem:[%s207]] 64
    %s209 = scalar_lea.smem [#allocation21], 4
    %210 = sst [smem:[%s209]] 128
    %s211 = scalar_lea.smem [#allocation21], 5
    %212 = sst [smem:[%s211]] 2
    %s213 = scalar_lea.smem [#allocation21], 6
    %214 = sst [smem:[%s213]] 512
    %s215 = scalar_lea.smem [#allocation21], 7
    %216 = sst [smem:[%s215]] 64
    %s217 = scalar_lea.smem [#allocation21], 8
    %218 = sst [smem:[%s217]] 4
    %220 = dma.general %s3, 65536, %s199, %s186, [#allocation20], [#allocation21], %s197, 0
    %s221 = scalar_lea.sflag [#allocation5], 5
    // Predicated region
    $region18: #{r101h_forward.1} parent=1 // pred_check
      _
    $region19: #{r101h_forward.1} parent=1 // pred_check_branch
      %223 = sbr.rel target = $region21
    $region20: #{r101h_forward.1} parent=1 // pred_region
      %224 = sst [smem:[#allocation24]] [#allocation23]
      %225 = sst [smem:[#allocation25]] [#allocation22]
    $region21: #{r101h_forward.1} parent=1 // pred_fallthru
      _
    %227 = shalt.err (0)
    %s229 = sshll.u32 [#allocation4], 4
    %s230 = int_to_ptr.vmem [resolvable:$true] %s229
    %232 = dma.hbm_to_vmem [thread:$0]  %s4, 8192, %s230, %s221
    %v233 = vld [vmem:[#allocation9] ss:$8 sm:$0xf]
    %v234 = vld [vmem:[#allocation9] ss:$8 sm:$0xf0]
    %v235 = vor.u32 %v233, %v234
    %s236 = scalar_lea.vmem [#allocation9], 1
    %v237 = vld [vmem:[%s236] ss:$8 sm:$0xf]
    %v238 = vld [vmem:[%s236] ss:$8 sm:$0xf0]
    %v239 = vor.u32 %v237, %v238
    %s240 = scalar_lea.vmem [#allocation9], 2
    %v241 = vld [vmem:[%s240] ss:$8 sm:$0xf]
    %v242 = vld [vmem:[%s240] ss:$8 sm:$0xf0]
    %v243 = vor.u32 %v241, %v242
    %s244 = scalar_lea.vmem [#allocation9], 3
    %v245 = vld [vmem:[%s244] ss:$8 sm:$0xf]
    %v246 = vld [vmem:[%s244] ss:$8 sm:$0xf0]
    %v247 = vor.u32 %v245, %v246
    %v248 = vld [vmem:[#allocation9 + $0x4] ss:$0 sm:$0xff]
    %v249 = vld [vmem:[#allocation6] sm:$0xff]
    %v250 = vld [vmem:[#allocation6 + $0x8] sm:$0xff]
    %v251 = vld [vmem:[#allocation6 + $0x10] sm:$0xff]
    %v252 = vld [vmem:[#allocation6 + $0x18] sm:$0xff]
    %v253 = vld [vmem:[#allocation6 + $0x20] sm:$0xff]
    %v254 = vld [vmem:[#allocation6 + $0x28] sm:$0xff]
    %v255 = vld [vmem:[#allocation6 + $0x30] sm:$0xff]
    %v256 = vld [vmem:[#allocation6 + $0x38] sm:$0xff]
    %v257 = vld [vmem:[#allocation6 + $0x40] sm:$0xff]
    %v258 = vld [vmem:[#allocation6 + $0x48] sm:$0xff]
    %v259 = vld [vmem:[#allocation6 + $0x50] sm:$0xff]
    %v260 = vld [vmem:[#allocation6 + $0x58] sm:$0xff]
    %v261 = vld [vmem:[#allocation6 + $0x60] sm:$0xff]
    %v262 = vld [vmem:[#allocation6 + $0x68] sm:$0xff]
    %v263 = vld [vmem:[#allocation6 + $0x70] sm:$0xff]
    %v264 = vld [vmem:[#allocation6 + $0x78] sm:$0xff]
    %v265 = vpack.c.bf16 %v249, %v249
    %v266 = vpack.c.bf16 %v250, %v250
    %v267 = vpack.c.bf16 %v251, %v251
    %v268 = vpack.c.bf16 %v252, %v252
    %v269 = vpack.c.bf16 %v253, %v253
    %v270 = vpack.c.bf16 %v254, %v254
    %v271 = vpack.c.bf16 %v255, %v255
    %v272 = vpack.c.bf16 %v256, %v256
    %v273 = vpack.c.bf16 %v257, %v257
    %v274 = vpack.c.bf16 %v258, %v258
    %v275 = vpack.c.bf16 %v259, %v259
    %v276 = vpack.c.bf16 %v260, %v260
    %v277 = vpack.c.bf16 %v261, %v261
    %v278 = vpack.c.bf16 %v262, %v262
    %v279 = vpack.c.bf16 %v263, %v263
    %v280 = vpack.c.bf16 %v264, %v264
    %s281 = smul.u32 4, 64
    %s282 = smul.u32 %s281, 8
    %s283 = sshll.u32 %s282, 4
    %284 = dma.done [#allocation5], %s283
    %v285 = vld [vmem:[#allocation2] sm:$0xff]
    %v286 = vld [vmem:[#allocation2 + $0x8] sm:$0xff]
    %v287 = vld [vmem:[#allocation2 + $0x10] sm:$0xff]
    %v288 = vld [vmem:[#allocation2 + $0x18] sm:$0xff]
    %v289 = vld [vmem:[#allocation2 + $0x20] sm:$0xff]
    %v290 = vld [vmem:[#allocation2 + $0x28] sm:$0xff]
    %v291 = vld [vmem:[#allocation2 + $0x30] sm:$0xff]
    %v292 = vld [vmem:[#allocation2 + $0x38] sm:$0xff]
    %v293 = vld [vmem:[#allocation2 + $0x40] sm:$0xff]
    %v294 = vld [vmem:[#allocation2 + $0x48] sm:$0xff]
    %v295 = vld [vmem:[#allocation2 + $0x50] sm:$0xff]
    %v296 = vld [vmem:[#allocation2 + $0x58] sm:$0xff]
    %v297 = vld [vmem:[#allocation2 + $0x60] sm:$0xff]
    %v298 = vld [vmem:[#allocation2 + $0x68] sm:$0xff]
    %v299 = vld [vmem:[#allocation2 + $0x70] sm:$0xff]
    %v300 = vld [vmem:[#allocation2 + $0x78] sm:$0xff]
    %v301 = vld [vmem:[#allocation2 + $0x80] sm:$0xff]
    %v302 = vld [vmem:[#allocation2 + $0x88] sm:$0xff]
    %v303 = vld [vmem:[#allocation2 + $0x90] sm:$0xff]
    %v304 = vld [vmem:[#allocation2 + $0x98] sm:$0xff]
    %v305 = vld [vmem:[#allocation2 + $0xa0] sm:$0xff]
    %v306 = vld [vmem:[#allocation2 + $0xa8] sm:$0xff]
    %v307 = vld [vmem:[#allocation2 + $0xb0] sm:$0xff]
    %v308 = vld [vmem:[#allocation2 + $0xb8] sm:$0xff]
    %v309 = vld [vmem:[#allocation2 + $0xc0] sm:$0xff]
    %v310 = vld [vmem:[#allocation2 + $0xc8] sm:$0xff]
    %v311 = vld [vmem:[#allocation2 + $0xd0] sm:$0xff]
    %v312 = vld [vmem:[#allocation2 + $0xd8] sm:$0xff]
    %v313 = vld [vmem:[#allocation2 + $0xe0] sm:$0xff]
    %v314 = vld [vmem:[#allocation2 + $0xe8] sm:$0xff]
    %v315 = vld [vmem:[#allocation2 + $0xf0] sm:$0xff]
    %v316 = vld [vmem:[#allocation2 + $0xf8] sm:$0xff]
    %v317 = vld [vmem:[#allocation2 + $0x100] sm:$0xff]
    %v318 = vld [vmem:[#allocation2 + $0x108] sm:$0xff]
    %v319 = vld [vmem:[#allocation2 + $0x110] sm:$0xff]
    %v320 = vld [vmem:[#allocation2 + $0x118] sm:$0xff]
    %v321 = vld [vmem:[#allocation2 + $0x120] sm:$0xff]
    %v322 = vld [vmem:[#allocation2 + $0x128] sm:$0xff]
    %v323 = vld [vmem:[#allocation2 + $0x130] sm:$0xff]
    %v324 = vld [vmem:[#allocation2 + $0x138] sm:$0xff]
    %v325 = vld [vmem:[#allocation2 + $0x140] sm:$0xff]
    %v326 = vld [vmem:[#allocation2 + $0x148] sm:$0xff]
    %v327 = vld [vmem:[#allocation2 + $0x150] sm:$0xff]
    %v328 = vld [vmem:[#allocation2 + $0x158] sm:$0xff]
    %v329 = vld [vmem:[#allocation2 + $0x160] sm:$0xff]
    %v330 = vld [vmem:[#allocation2 + $0x168] sm:$0xff]
    %v331 = vld [vmem:[#allocation2 + $0x170] sm:$0xff]
    %v332 = vld [vmem:[#allocation2 + $0x178] sm:$0xff]
    %v333 = vld [vmem:[#allocation2 + $0x180] sm:$0xff]
    %v334 = vld [vmem:[#allocation2 + $0x188] sm:$0xff]
    %v335 = vld [vmem:[#allocation2 + $0x190] sm:$0xff]
    %v336 = vld [vmem:[#allocation2 + $0x198] sm:$0xff]
    %v337 = vld [vmem:[#allocation2 + $0x1a0] sm:$0xff]
    %v338 = vld [vmem:[#allocation2 + $0x1a8] sm:$0xff]
    %v339 = vld [vmem:[#allocation2 + $0x1b0] sm:$0xff]
    %v340 = vld [vmem:[#allocation2 + $0x1b8] sm:$0xff]
    %v341 = vld [vmem:[#allocation2 + $0x1c0] sm:$0xff]
    %v342 = vld [vmem:[#allocation2 + $0x1c8] sm:$0xff]
    %v343 = vld [vmem:[#allocation2 + $0x1d0] sm:$0xff]
    %v344 = vld [vmem:[#allocation2 + $0x1d8] sm:$0xff]
    %v345 = vld [vmem:[#allocation2 + $0x1e0] sm:$0xff]
    %v346 = vld [vmem:[#allocation2 + $0x1e8] sm:$0xff]
    %v347 = vld [vmem:[#allocation2 + $0x1f0] sm:$0xff]
    %v348 = vld [vmem:[#allocation2 + $0x1f8] sm:$0xff]
    %v349 = vld [vmem:[#allocation2 + $0x200] sm:$0xff]
    %v350 = vld [vmem:[#allocation2 + $0x208] sm:$0xff]
    %v351 = vld [vmem:[#allocation2 + $0x210] sm:$0xff]
    %v352 = vld [vmem:[#allocation2 + $0x218] sm:$0xff]
    %v353 = vld [vmem:[#allocation2 + $0x220] sm:$0xff]
    %v354 = vld [vmem:[#allocation2 + $0x228] sm:$0xff]
    %v355 = vld [vmem:[#allocation2 + $0x230] sm:$0xff]
    %v356 = vld [vmem:[#allocation2 + $0x238] sm:$0xff]
    %v357 = vld [vmem:[#allocation2 + $0x240] sm:$0xff]
    %v358 = vld [vmem:[#allocation2 + $0x248] sm:$0xff]
    %v359 = vld [vmem:[#allocation2 + $0x250] sm:$0xff]
    %v360 = vld [vmem:[#allocation2 + $0x258] sm:$0xff]
    %v361 = vld [vmem:[#allocation2 + $0x260] sm:$0xff]
    %v362 = vld [vmem:[#allocation2 + $0x268] sm:$0xff]
    %v363 = vld [vmem:[#allocation2 + $0x270] sm:$0xff]
    %v364 = vld [vmem:[#allocation2 + $0x278] sm:$0xff]
    %v365 = vld [vmem:[#allocation2 + $0x280] sm:$0xff]
    %v366 = vld [vmem:[#allocation2 + $0x288] sm:$0xff]
    %v367 = vld [vmem:[#allocation2 + $0x290] sm:$0xff]
    %v368 = vld [vmem:[#allocation2 + $0x298] sm:$0xff]
    %v369 = vld [vmem:[#allocation2 + $0x2a0] sm:$0xff]
    %v370 = vld [vmem:[#allocation2 + $0x2a8] sm:$0xff]
    %v371 = vld [vmem:[#allocation2 + $0x2b0] sm:$0xff]
    %v372 = vld [vmem:[#allocation2 + $0x2b8] sm:$0xff]
    %v373 = vld [vmem:[#allocation2 + $0x2c0] sm:$0xff]
    %v374 = vld [vmem:[#allocation2 + $0x2c8] sm:$0xff]
    %v375 = vld [vmem:[#allocation2 + $0x2d0] sm:$0xff]
    %v376 = vld [vmem:[#allocation2 + $0x2d8] sm:$0xff]
    %v377 = vld [vmem:[#allocation2 + $0x2e0] sm:$0xff]
    %v378 = vld [vmem:[#allocation2 + $0x2e8] sm:$0xff]
    %v379 = vld [vmem:[#allocation2 + $0x2f0] sm:$0xff]
    %v380 = vld [vmem:[#allocation2 + $0x2f8] sm:$0xff]
    %v381 = vld [vmem:[#allocation2 + $0x300] sm:$0xff]
    %v382 = vld [vmem:[#allocation2 + $0x308] sm:$0xff]
    %v383 = vld [vmem:[#allocation2 + $0x310] sm:$0xff]
    %v384 = vld [vmem:[#allocation2 + $0x318] sm:$0xff]
    %v385 = vld [vmem:[#allocation2 + $0x320] sm:$0xff]
    %v386 = vld [vmem:[#allocation2 + $0x328] sm:$0xff]
    %v387 = vld [vmem:[#allocation2 + $0x330] sm:$0xff]
    %v388 = vld [vmem:[#allocation2 + $0x338] sm:$0xff]
    %v389 = vld [vmem:[#allocation2 + $0x340] sm:$0xff]
    %v390 = vld [vmem:[#allocation2 + $0x348] sm:$0xff]
    %v391 = vld [vmem:[#allocation2 + $0x350] sm:$0xff]
    %v392 = vld [vmem:[#allocation2 + $0x358] sm:$0xff]
    %v393 = vld [vmem:[#allocation2 + $0x360] sm:$0xff]
    %v394 = vld [vmem:[#allocation2 + $0x368] sm:$0xff]
    %v395 = vld [vmem:[#allocation2 + $0x370] sm:$0xff]
    %v396 = vld [vmem:[#allocation2 + $0x378] sm:$0xff]
    %v397 = vld [vmem:[#allocation2 + $0x380] sm:$0xff]
    %v398 = vld [vmem:[#allocation2 + $0x388] sm:$0xff]
    %v399 = vld [vmem:[#allocation2 + $0x390] sm:$0xff]
    %v400 = vld [vmem:[#allocation2 + $0x398] sm:$0xff]
    %v401 = vld [vmem:[#allocation2 + $0x3a0] sm:$0xff]
    %v402 = vld [vmem:[#allocation2 + $0x3a8] sm:$0xff]
    %v403 = vld [vmem:[#allocation2 + $0x3b0] sm:$0xff]
    %v404 = vld [vmem:[#allocation2 + $0x3b8] sm:$0xff]
    %v405 = vld [vmem:[#allocation2 + $0x3c0] sm:$0xff]
    %v406 = vld [vmem:[#allocation2 + $0x3c8] sm:$0xff]
    %v407 = vld [vmem:[#allocation2 + $0x3d0] sm:$0xff]
    %v408 = vld [vmem:[#allocation2 + $0x3d8] sm:$0xff]
    %v409 = vld [vmem:[#allocation2 + $0x3e0] sm:$0xff]
    %v410 = vld [vmem:[#allocation2 + $0x3e8] sm:$0xff]
    %v411 = vld [vmem:[#allocation2 + $0x3f0] sm:$0xff]
    %v412 = vld [vmem:[#allocation2 + $0x3f8] sm:$0xff]
    %v413 = vld [vmem:[#allocation2 + $0x400] sm:$0xff]
    %v414 = vld [vmem:[#allocation2 + $0x408] sm:$0xff]
    %v415 = vld [vmem:[#allocation2 + $0x410] sm:$0xff]
    %v416 = vld [vmem:[#allocation2 + $0x418] sm:$0xff]
    %v417 = vld [vmem:[#allocation2 + $0x420] sm:$0xff]
    %v418 = vld [vmem:[#allocation2 + $0x428] sm:$0xff]
    %v419 = vld [vmem:[#allocation2 + $0x430] sm:$0xff]
    %v420 = vld [vmem:[#allocation2 + $0x438] sm:$0xff]
    %v421 = vld [vmem:[#allocation2 + $0x440] sm:$0xff]
    %v422 = vld [vmem:[#allocation2 + $0x448] sm:$0xff]
    %v423 = vld [vmem:[#allocation2 + $0x450] sm:$0xff]
    %v424 = vld [vmem:[#allocation2 + $0x458] sm:$0xff]
    %v425 = vld [vmem:[#allocation2 + $0x460] sm:$0xff]
    %v426 = vld [vmem:[#allocation2 + $0x468] sm:$0xff]
    %v427 = vld [vmem:[#allocation2 + $0x470] sm:$0xff]
    %v428 = vld [vmem:[#allocation2 + $0x478] sm:$0xff]
    %v429 = vld [vmem:[#allocation2 + $0x480] sm:$0xff]
    %v430 = vld [vmem:[#allocation2 + $0x488] sm:$0xff]
    %v431 = vld [vmem:[#allocation2 + $0x490] sm:$0xff]
    %v432 = vld [vmem:[#allocation2 + $0x498] sm:$0xff]
    %v433 = vld [vmem:[#allocation2 + $0x4a0] sm:$0xff]
    %v434 = vld [vmem:[#allocation2 + $0x4a8] sm:$0xff]
    %v435 = vld [vmem:[#allocation2 + $0x4b0] sm:$0xff]
    %v436 = vld [vmem:[#allocation2 + $0x4b8] sm:$0xff]
    %v437 = vld [vmem:[#allocation2 + $0x4c0] sm:$0xff]
    %v438 = vld [vmem:[#allocation2 + $0x4c8] sm:$0xff]
    %v439 = vld [vmem:[#allocation2 + $0x4d0] sm:$0xff]
    %v440 = vld [vmem:[#allocation2 + $0x4d8] sm:$0xff]
    %v441 = vld [vmem:[#allocation2 + $0x4e0] sm:$0xff]
    %v442 = vld [vmem:[#allocation2 + $0x4e8] sm:$0xff]
    %v443 = vld [vmem:[#allocation2 + $0x4f0] sm:$0xff]
    %v444 = vld [vmem:[#allocation2 + $0x4f8] sm:$0xff]
    %v445 = vld [vmem:[#allocation2 + $0x500] sm:$0xff]
    %v446 = vld [vmem:[#allocation2 + $0x508] sm:$0xff]
    %v447 = vld [vmem:[#allocation2 + $0x510] sm:$0xff]
    %v448 = vld [vmem:[#allocation2 + $0x518] sm:$0xff]
    %v449 = vld [vmem:[#allocation2 + $0x520] sm:$0xff]
    %v450 = vld [vmem:[#allocation2 + $0x528] sm:$0xff]
    %v451 = vld [vmem:[#allocation2 + $0x530] sm:$0xff]
    %v452 = vld [vmem:[#allocation2 + $0x538] sm:$0xff]
    %v453 = vld [vmem:[#allocation2 + $0x540] sm:$0xff]
    %v454 = vld [vmem:[#allocation2 + $0x548] sm:$0xff]
    %v455 = vld [vmem:[#allocation2 + $0x550] sm:$0xff]
    %v456 = vld [vmem:[#allocation2 + $0x558] sm:$0xff]
    %v457 = vld [vmem:[#allocation2 + $0x560] sm:$0xff]
    %v458 = vld [vmem:[#allocation2 + $0x568] sm:$0xff]
    %v459 = vld [vmem:[#allocation2 + $0x570] sm:$0xff]
    %v460 = vld [vmem:[#allocation2 + $0x578] sm:$0xff]
    %v461 = vld [vmem:[#allocation2 + $0x580] sm:$0xff]
    %v462 = vld [vmem:[#allocation2 + $0x588] sm:$0xff]
    %v463 = vld [vmem:[#allocation2 + $0x590] sm:$0xff]
    %v464 = vld [vmem:[#allocation2 + $0x598] sm:$0xff]
    %v465 = vld [vmem:[#allocation2 + $0x5a0] sm:$0xff]
    %v466 = vld [vmem:[#allocation2 + $0x5a8] sm:$0xff]
    %v467 = vld [vmem:[#allocation2 + $0x5b0] sm:$0xff]
    %v468 = vld [vmem:[#allocation2 + $0x5b8] sm:$0xff]
    %v469 = vld [vmem:[#allocation2 + $0x5c0] sm:$0xff]
    %v470 = vld [vmem:[#allocation2 + $0x5c8] sm:$0xff]
    %v471 = vld [vmem:[#allocation2 + $0x5d0] sm:$0xff]
    %v472 = vld [vmem:[#allocation2 + $0x5d8] sm:$0xff]
    %v473 = vld [vmem:[#allocation2 + $0x5e0] sm:$0xff]
    %v474 = vld [vmem:[#allocation2 + $0x5e8] sm:$0xff]
    %v475 = vld [vmem:[#allocation2 + $0x5f0] sm:$0xff]
    %v476 = vld [vmem:[#allocation2 + $0x5f8] sm:$0xff]
    %v477 = vld [vmem:[#allocation2 + $0x600] sm:$0xff]
    %v478 = vld [vmem:[#allocation2 + $0x608] sm:$0xff]
    %v479 = vld [vmem:[#allocation2 + $0x610] sm:$0xff]
    %v480 = vld [vmem:[#allocation2 + $0x618] sm:$0xff]
    %v481 = vld [vmem:[#allocation2 + $0x620] sm:$0xff]
    %v482 = vld [vmem:[#allocation2 + $0x628] sm:$0xff]
    %v483 = vld [vmem:[#allocation2 + $0x630] sm:$0xff]
    %v484 = vld [vmem:[#allocation2 + $0x638] sm:$0xff]
    %v485 = vld [vmem:[#allocation2 + $0x640] sm:$0xff]
    %v486 = vld [vmem:[#allocation2 + $0x648] sm:$0xff]
    %v487 = vld [vmem:[#allocation2 + $0x650] sm:$0xff]
    %v488 = vld [vmem:[#allocation2 + $0x658] sm:$0xff]
    %v489 = vld [vmem:[#allocation2 + $0x660] sm:$0xff]
    %v490 = vld [vmem:[#allocation2 + $0x668] sm:$0xff]
    %v491 = vld [vmem:[#allocation2 + $0x670] sm:$0xff]
    %v492 = vld [vmem:[#allocation2 + $0x678] sm:$0xff]
    %v493 = vld [vmem:[#allocation2 + $0x680] sm:$0xff]
    %v494 = vld [vmem:[#allocation2 + $0x688] sm:$0xff]
    %v495 = vld [vmem:[#allocation2 + $0x690] sm:$0xff]
    %v496 = vld [vmem:[#allocation2 + $0x698] sm:$0xff]
    %v497 = vld [vmem:[#allocation2 + $0x6a0] sm:$0xff]
    %v498 = vld [vmem:[#allocation2 + $0x6a8] sm:$0xff]
    %v499 = vld [vmem:[#allocation2 + $0x6b0] sm:$0xff]
    %v500 = vld [vmem:[#allocation2 + $0x6b8] sm:$0xff]
    %v501 = vld [vmem:[#allocation2 + $0x6c0] sm:$0xff]
    %v502 = vld [vmem:[#allocation2 + $0x6c8] sm:$0xff]
    %v503 = vld [vmem:[#allocation2 + $0x6d0] sm:$0xff]
    %v504 = vld [vmem:[#allocation2 + $0x6d8] sm:$0xff]
    %v505 = vld [vmem:[#allocation2 + $0x6e0] sm:$0xff]
    %v506 = vld [vmem:[#allocation2 + $0x6e8] sm:$0xff]
    %v507 = vld [vmem:[#allocation2 + $0x6f0] sm:$0xff]
    %v508 = vld [vmem:[#allocation2 + $0x6f8] sm:$0xff]
    %v509 = vld [vmem:[#allocation2 + $0x700] sm:$0xff]
    %v510 = vld [vmem:[#allocation2 + $0x708] sm:$0xff]
    %v511 = vld [vmem:[#allocation2 + $0x710] sm:$0xff]
    %v512 = vld [vmem:[#allocation2 + $0x718] sm:$0xff]
    %v513 = vld [vmem:[#allocation2 + $0x720] sm:$0xff]
    %v514 = vld [vmem:[#allocation2 + $0x728] sm:$0xff]
    %v515 = vld [vmem:[#allocation2 + $0x730] sm:$0xff]
    %v516 = vld [vmem:[#allocation2 + $0x738] sm:$0xff]
    %v517 = vld [vmem:[#allocation2 + $0x740] sm:$0xff]
    %v518 = vld [vmem:[#allocation2 + $0x748] sm:$0xff]
    %v519 = vld [vmem:[#allocation2 + $0x750] sm:$0xff]
    %v520 = vld [vmem:[#allocation2 + $0x758] sm:$0xff]
    %v521 = vld [vmem:[#allocation2 + $0x760] sm:$0xff]
    %v522 = vld [vmem:[#allocation2 + $0x768] sm:$0xff]
    %v523 = vld [vmem:[#allocation2 + $0x770] sm:$0xff]
    %v524 = vld [vmem:[#allocation2 + $0x778] sm:$0xff]
    %v525 = vld [vmem:[#allocation2 + $0x780] sm:$0xff]
    %v526 = vld [vmem:[#allocation2 + $0x788] sm:$0xff]
    %v527 = vld [vmem:[#allocation2 + $0x790] sm:$0xff]
    %v528 = vld [vmem:[#allocation2 + $0x798] sm:$0xff]
    %v529 = vld [vmem:[#allocation2 + $0x7a0] sm:$0xff]
    %v530 = vld [vmem:[#allocation2 + $0x7a8] sm:$0xff]
    %v531 = vld [vmem:[#allocation2 + $0x7b0] sm:$0xff]
    %v532 = vld [vmem:[#allocation2 + $0x7b8] sm:$0xff]
    %v533 = vld [vmem:[#allocation2 + $0x7c0] sm:$0xff]
    %v534 = vld [vmem:[#allocation2 + $0x7c8] sm:$0xff]
    %v535 = vld [vmem:[#allocation2 + $0x7d0] sm:$0xff]
    %v536 = vld [vmem:[#allocation2 + $0x7d8] sm:$0xff]
    %v537 = vld [vmem:[#allocation2 + $0x7e0] sm:$0xff]
    %v538 = vld [vmem:[#allocation2 + $0x7e8] sm:$0xff]
    %v539 = vld [vmem:[#allocation2 + $0x7f0] sm:$0xff]
    %v540 = vld [vmem:[#allocation2 + $0x7f8] sm:$0xff]
    %s541 = sshll.u32 %s282, 4
    %542 = dma.done %s77, %s541
    %v543 = vld [vmem:[%s76] sm:$0xff]
    %v544 = vld [vmem:[%s76 + $0x8] sm:$0xff]
    %v545 = vld [vmem:[%s76 + $0x10] sm:$0xff]
    %v546 = vld [vmem:[%s76 + $0x18] sm:$0xff]
    %v547 = vld [vmem:[%s76 + $0x20] sm:$0xff]
    %v548 = vld [vmem:[%s76 + $0x28] sm:$0xff]
    %v549 = vld [vmem:[%s76 + $0x30] sm:$0xff]
    %v550 = vld [vmem:[%s76 + $0x38] sm:$0xff]
    %v551 = vld [vmem:[%s76 + $0x40] sm:$0xff]
    %v552 = vld [vmem:[%s76 + $0x48] sm:$0xff]
    %v553 = vld [vmem:[%s76 + $0x50] sm:$0xff]
    %v554 = vld [vmem:[%s76 + $0x58] sm:$0xff]
    %v555 = vld [vmem:[%s76 + $0x60] sm:$0xff]
    %v556 = vld [vmem:[%s76 + $0x68] sm:$0xff]
    %v557 = vld [vmem:[%s76 + $0x70] sm:$0xff]
    %v558 = vld [vmem:[%s76 + $0x78] sm:$0xff]
    %v559 = vld [vmem:[%s76 + $0x80] sm:$0xff]
    %v560 = vld [vmem:[%s76 + $0x88] sm:$0xff]
    %v561 = vld [vmem:[%s76 + $0x90] sm:$0xff]
    %v562 = vld [vmem:[%s76 + $0x98] sm:$0xff]
    %v563 = vld [vmem:[%s76 + $0xa0] sm:$0xff]
    %v564 = vld [vmem:[%s76 + $0xa8] sm:$0xff]
    %v565 = vld [vmem:[%s76 + $0xb0] sm:$0xff]
    %v566 = vld [vmem:[%s76 + $0xb8] sm:$0xff]
    %v567 = vld [vmem:[%s76 + $0xc0] sm:$0xff]
    %v568 = vld [vmem:[%s76 + $0xc8] sm:$0xff]
    %v569 = vld [vmem:[%s76 + $0xd0] sm:$0xff]
    %v570 = vld [vmem:[%s76 + $0xd8] sm:$0xff]
    %v571 = vld [vmem:[%s76 + $0xe0] sm:$0xff]
    %v572 = vld [vmem:[%s76 + $0xe8] sm:$0xff]
    %v573 = vld [vmem:[%s76 + $0xf0] sm:$0xff]
    %v574 = vld [vmem:[%s76 + $0xf8] sm:$0xff]
    %v575 = vld [vmem:[%s76 + $0x100] sm:$0xff]
    %v576 = vld [vmem:[%s76 + $0x108] sm:$0xff]
    %v577 = vld [vmem:[%s76 + $0x110] sm:$0xff]
    %v578 = vld [vmem:[%s76 + $0x118] sm:$0xff]
    %v579 = vld [vmem:[%s76 + $0x120] sm:$0xff]
    %v580 = vld [vmem:[%s76 + $0x128] sm:$0xff]
    %v581 = vld [vmem:[%s76 + $0x130] sm:$0xff]
    %v582 = vld [vmem:[%s76 + $0x138] sm:$0xff]
    %v583 = vld [vmem:[%s76 + $0x140] sm:$0xff]
    %v584 = vld [vmem:[%s76 + $0x148] sm:$0xff]
    %v585 = vld [vmem:[%s76 + $0x150] sm:$0xff]
    %v586 = vld [vmem:[%s76 + $0x158] sm:$0xff]
    %v587 = vld [vmem:[%s76 + $0x160] sm:$0xff]
    %v588 = vld [vmem:[%s76 + $0x168] sm:$0xff]
    %v589 = vld [vmem:[%s76 + $0x170] sm:$0xff]
    %v590 = vld [vmem:[%s76 + $0x178] sm:$0xff]
    %v591 = vld [vmem:[%s76 + $0x180] sm:$0xff]
    %v592 = vld [vmem:[%s76 + $0x188] sm:$0xff]
    %v593 = vld [vmem:[%s76 + $0x190] sm:$0xff]
    %v594 = vld [vmem:[%s76 + $0x198] sm:$0xff]
    %v595 = vld [vmem:[%s76 + $0x1a0] sm:$0xff]
    %v596 = vld [vmem:[%s76 + $0x1a8] sm:$0xff]
    %v597 = vld [vmem:[%s76 + $0x1b0] sm:$0xff]
    %v598 = vld [vmem:[%s76 + $0x1b8] sm:$0xff]
    %v599 = vld [vmem:[%s76 + $0x1c0] sm:$0xff]
    %v600 = vld [vmem:[%s76 + $0x1c8] sm:$0xff]
    %v601 = vld [vmem:[%s76 + $0x1d0] sm:$0xff]
    %v602 = vld [vmem:[%s76 + $0x1d8] sm:$0xff]
    %v603 = vld [vmem:[%s76 + $0x1e0] sm:$0xff]
    %v604 = vld [vmem:[%s76 + $0x1e8] sm:$0xff]
    %v605 = vld [vmem:[%s76 + $0x1f0] sm:$0xff]
    %v606 = vld [vmem:[%s76 + $0x1f8] sm:$0xff]
    %v607 = vld [vmem:[%s76 + $0x200] sm:$0xff]
    %v608 = vld [vmem:[%s76 + $0x208] sm:$0xff]
    %v609 = vld [vmem:[%s76 + $0x210] sm:$0xff]
    %v610 = vld [vmem:[%s76 + $0x218] sm:$0xff]
    %v611 = vld [vmem:[%s76 + $0x220] sm:$0xff]
    %v612 = vld [vmem:[%s76 + $0x228] sm:$0xff]
    %v613 = vld [vmem:[%s76 + $0x230] sm:$0xff]
    %v614 = vld [vmem:[%s76 + $0x238] sm:$0xff]
    %v615 = vld [vmem:[%s76 + $0x240] sm:$0xff]
    %v616 = vld [vmem:[%s76 + $0x248] sm:$0xff]
    %v617 = vld [vmem:[%s76 + $0x250] sm:$0xff]
    %v618 = vld [vmem:[%s76 + $0x258] sm:$0xff]
    %v619 = vld [vmem:[%s76 + $0x260] sm:$0xff]
    %v620 = vld [vmem:[%s76 + $0x268] sm:$0xff]
    %v621 = vld [vmem:[%s76 + $0x270] sm:$0xff]
    %v622 = vld [vmem:[%s76 + $0x278] sm:$0xff]
    %v623 = vld [vmem:[%s76 + $0x280] sm:$0xff]
    %v624 = vld [vmem:[%s76 + $0x288] sm:$0xff]
    %v625 = vld [vmem:[%s76 + $0x290] sm:$0xff]
    %v626 = vld [vmem:[%s76 + $0x298] sm:$0xff]
    %v627 = vld [vmem:[%s76 + $0x2a0] sm:$0xff]
    %v628 = vld [vmem:[%s76 + $0x2a8] sm:$0xff]
    %v629 = vld [vmem:[%s76 + $0x2b0] sm:$0xff]
    %v630 = vld [vmem:[%s76 + $0x2b8] sm:$0xff]
    %v631 = vld [vmem:[%s76 + $0x2c0] sm:$0xff]
    %v632 = vld [vmem:[%s76 + $0x2c8] sm:$0xff]
    %v633 = vld [vmem:[%s76 + $0x2d0] sm:$0xff]
    %v634 = vld [vmem:[%s76 + $0x2d8] sm:$0xff]
    %v635 = vld [vmem:[%s76 + $0x2e0] sm:$0xff]
    %v636 = vld [vmem:[%s76 + $0x2e8] sm:$0xff]
    %v637 = vld [vmem:[%s76 + $0x2f0] sm:$0xff]
    %v638 = vld [vmem:[%s76 + $0x2f8] sm:$0xff]
    %v639 = vld [vmem:[%s76 + $0x300] sm:$0xff]
    %v640 = vld [vmem:[%s76 + $0x308] sm:$0xff]
    %v641 = vld [vmem:[%s76 + $0x310] sm:$0xff]
    %v642 = vld [vmem:[%s76 + $0x318] sm:$0xff]
    %v643 = vld [vmem:[%s76 + $0x320] sm:$0xff]
    %v644 = vld [vmem:[%s76 + $0x328] sm:$0xff]
    %v645 = vld [vmem:[%s76 + $0x330] sm:$0xff]
    %v646 = vld [vmem:[%s76 + $0x338] sm:$0xff]
    %v647 = vld [vmem:[%s76 + $0x340] sm:$0xff]
    %v648 = vld [vmem:[%s76 + $0x348] sm:$0xff]
    %v649 = vld [vmem:[%s76 + $0x350] sm:$0xff]
    %v650 = vld [vmem:[%s76 + $0x358] sm:$0xff]
    %v651 = vld [vmem:[%s76 + $0x360] sm:$0xff]
    %v652 = vld [vmem:[%s76 + $0x368] sm:$0xff]
    %v653 = vld [vmem:[%s76 + $0x370] sm:$0xff]
    %v654 = vld [vmem:[%s76 + $0x378] sm:$0xff]
    %v655 = vld [vmem:[%s76 + $0x380] sm:$0xff]
    %v656 = vld [vmem:[%s76 + $0x388] sm:$0xff]
    %v657 = vld [vmem:[%s76 + $0x390] sm:$0xff]
    %v658 = vld [vmem:[%s76 + $0x398] sm:$0xff]
    %v659 = vld [vmem:[%s76 + $0x3a0] sm:$0xff]
    %v660 = vld [vmem:[%s76 + $0x3a8] sm:$0xff]
    %v661 = vld [vmem:[%s76 + $0x3b0] sm:$0xff]
    %v662 = vld [vmem:[%s76 + $0x3b8] sm:$0xff]
    %v663 = vld [vmem:[%s76 + $0x3c0] sm:$0xff]
    %v664 = vld [vmem:[%s76 + $0x3c8] sm:$0xff]
    %v665 = vld [vmem:[%s76 + $0x3d0] sm:$0xff]
    %v666 = vld [vmem:[%s76 + $0x3d8] sm:$0xff]
    %v667 = vld [vmem:[%s76 + $0x3e0] sm:$0xff]
    %v668 = vld [vmem:[%s76 + $0x3e8] sm:$0xff]
    %v669 = vld [vmem:[%s76 + $0x3f0] sm:$0xff]
    %v670 = vld [vmem:[%s76 + $0x3f8] sm:$0xff]
    %v671 = vld [vmem:[%s76 + $0x400] sm:$0xff]
    %v672 = vld [vmem:[%s76 + $0x408] sm:$0xff]
    %v673 = vld [vmem:[%s76 + $0x410] sm:$0xff]
    %v674 = vld [vmem:[%s76 + $0x418] sm:$0xff]
    %v675 = vld [vmem:[%s76 + $0x420] sm:$0xff]
    %v676 = vld [vmem:[%s76 + $0x428] sm:$0xff]
    %v677 = vld [vmem:[%s76 + $0x430] sm:$0xff]
    %v678 = vld [vmem:[%s76 + $0x438] sm:$0xff]
    %v679 = vld [vmem:[%s76 + $0x440] sm:$0xff]
    %v680 = vld [vmem:[%s76 + $0x448] sm:$0xff]
    %v681 = vld [vmem:[%s76 + $0x450] sm:$0xff]
    %v682 = vld [vmem:[%s76 + $0x458] sm:$0xff]
    %v683 = vld [vmem:[%s76 + $0x460] sm:$0xff]
    %v684 = vld [vmem:[%s76 + $0x468] sm:$0xff]
    %v685 = vld [vmem:[%s76 + $0x470] sm:$0xff]
    %v686 = vld [vmem:[%s76 + $0x478] sm:$0xff]
    %v687 = vld [vmem:[%s76 + $0x480] sm:$0xff]
    %v688 = vld [vmem:[%s76 + $0x488] sm:$0xff]
    %v689 = vld [vmem:[%s76 + $0x490] sm:$0xff]
    %v690 = vld [vmem:[%s76 + $0x498] sm:$0xff]
    %v691 = vld [vmem:[%s76 + $0x4a0] sm:$0xff]
    %v692 = vld [vmem:[%s76 + $0x4a8] sm:$0xff]
    %v693 = vld [vmem:[%s76 + $0x4b0] sm:$0xff]
    %v694 = vld [vmem:[%s76 + $0x4b8] sm:$0xff]
    %v695 = vld [vmem:[%s76 + $0x4c0] sm:$0xff]
    %v696 = vld [vmem:[%s76 + $0x4c8] sm:$0xff]
    %v697 = vld [vmem:[%s76 + $0x4d0] sm:$0xff]
    %v698 = vld [vmem:[%s76 + $0x4d8] sm:$0xff]
    %v699 = vld [vmem:[%s76 + $0x4e0] sm:$0xff]
    %v700 = vld [vmem:[%s76 + $0x4e8] sm:$0xff]
    %v701 = vld [vmem:[%s76 + $0x4f0] sm:$0xff]
    %v702 = vld [vmem:[%s76 + $0x4f8] sm:$0xff]
    %v703 = vld [vmem:[%s76 + $0x500] sm:$0xff]
    %v704 = vld [vmem:[%s76 + $0x508] sm:$0xff]
    %v705 = vld [vmem:[%s76 + $0x510] sm:$0xff]
    %v706 = vld [vmem:[%s76 + $0x518] sm:$0xff]
    %v707 = vld [vmem:[%s76 + $0x520] sm:$0xff]
    %v708 = vld [vmem:[%s76 + $0x528] sm:$0xff]
    %v709 = vld [vmem:[%s76 + $0x530] sm:$0xff]
    %v710 = vld [vmem:[%s76 + $0x538] sm:$0xff]
    %v711 = vld [vmem:[%s76 + $0x540] sm:$0xff]
    %v712 = vld [vmem:[%s76 + $0x548] sm:$0xff]
    %v713 = vld [vmem:[%s76 + $0x550] sm:$0xff]
    %v714 = vld [vmem:[%s76 + $0x558] sm:$0xff]
    %v715 = vld [vmem:[%s76 + $0x560] sm:$0xff]
    %v716 = vld [vmem:[%s76 + $0x568] sm:$0xff]
    %v717 = vld [vmem:[%s76 + $0x570] sm:$0xff]
    %v718 = vld [vmem:[%s76 + $0x578] sm:$0xff]
    %v719 = vld [vmem:[%s76 + $0x580] sm:$0xff]
    %v720 = vld [vmem:[%s76 + $0x588] sm:$0xff]
    %v721 = vld [vmem:[%s76 + $0x590] sm:$0xff]
    %v722 = vld [vmem:[%s76 + $0x598] sm:$0xff]
    %v723 = vld [vmem:[%s76 + $0x5a0] sm:$0xff]
    %v724 = vld [vmem:[%s76 + $0x5a8] sm:$0xff]
    %v725 = vld [vmem:[%s76 + $0x5b0] sm:$0xff]
    %v726 = vld [vmem:[%s76 + $0x5b8] sm:$0xff]
    %v727 = vld [vmem:[%s76 + $0x5c0] sm:$0xff]
    %v728 = vld [vmem:[%s76 + $0x5c8] sm:$0xff]
    %v729 = vld [vmem:[%s76 + $0x5d0] sm:$0xff]
    %v730 = vld [vmem:[%s76 + $0x5d8] sm:$0xff]
    %v731 = vld [vmem:[%s76 + $0x5e0] sm:$0xff]
    %v732 = vld [vmem:[%s76 + $0x5e8] sm:$0xff]
    %v733 = vld [vmem:[%s76 + $0x5f0] sm:$0xff]
    %v734 = vld [vmem:[%s76 + $0x5f8] sm:$0xff]
    %v735 = vld [vmem:[%s76 + $0x600] sm:$0xff]
    %v736 = vld [vmem:[%s76 + $0x608] sm:$0xff]
    %v737 = vld [vmem:[%s76 + $0x610] sm:$0xff]
    %v738 = vld [vmem:[%s76 + $0x618] sm:$0xff]
    %v739 = vld [vmem:[%s76 + $0x620] sm:$0xff]
    %v740 = vld [vmem:[%s76 + $0x628] sm:$0xff]
    %v741 = vld [vmem:[%s76 + $0x630] sm:$0xff]
    %v742 = vld [vmem:[%s76 + $0x638] sm:$0xff]
    %v743 = vld [vmem:[%s76 + $0x640] sm:$0xff]
    %v744 = vld [vmem:[%s76 + $0x648] sm:$0xff]
    %v745 = vld [vmem:[%s76 + $0x650] sm:$0xff]
    %v746 = vld [vmem:[%s76 + $0x658] sm:$0xff]
    %v747 = vld [vmem:[%s76 + $0x660] sm:$0xff]
    %v748 = vld [vmem:[%s76 + $0x668] sm:$0xff]
    %v749 = vld [vmem:[%s76 + $0x670] sm:$0xff]
    %v750 = vld [vmem:[%s76 + $0x678] sm:$0xff]
    %v751 = vld [vmem:[%s76 + $0x680] sm:$0xff]
    %v752 = vld [vmem:[%s76 + $0x688] sm:$0xff]
    %v753 = vld [vmem:[%s76 + $0x690] sm:$0xff]
    %v754 = vld [vmem:[%s76 + $0x698] sm:$0xff]
    %v755 = vld [vmem:[%s76 + $0x6a0] sm:$0xff]
    %v756 = vld [vmem:[%s76 + $0x6a8] sm:$0xff]
    %v757 = vld [vmem:[%s76 + $0x6b0] sm:$0xff]
    %v758 = vld [vmem:[%s76 + $0x6b8] sm:$0xff]
    %v759 = vld [vmem:[%s76 + $0x6c0] sm:$0xff]
    %v760 = vld [vmem:[%s76 + $0x6c8] sm:$0xff]
    %v761 = vld [vmem:[%s76 + $0x6d0] sm:$0xff]
    %v762 = vld [vmem:[%s76 + $0x6d8] sm:$0xff]
    %v763 = vld [vmem:[%s76 + $0x6e0] sm:$0xff]
    %v764 = vld [vmem:[%s76 + $0x6e8] sm:$0xff]
    %v765 = vld [vmem:[%s76 + $0x6f0] sm:$0xff]
    %v766 = vld [vmem:[%s76 + $0x6f8] sm:$0xff]
    %v767 = vld [vmem:[%s76 + $0x700] sm:$0xff]
    %v768 = vld [vmem:[%s76 + $0x708] sm:$0xff]
    %v769 = vld [vmem:[%s76 + $0x710] sm:$0xff]
    %v770 = vld [vmem:[%s76 + $0x718] sm:$0xff]
    %v771 = vld [vmem:[%s76 + $0x720] sm:$0xff]
    %v772 = vld [vmem:[%s76 + $0x728] sm:$0xff]
    %v773 = vld [vmem:[%s76 + $0x730] sm:$0xff]
    %v774 = vld [vmem:[%s76 + $0x738] sm:$0xff]
    %v775 = vld [vmem:[%s76 + $0x740] sm:$0xff]
    %v776 = vld [vmem:[%s76 + $0x748] sm:$0xff]
    %v777 = vld [vmem:[%s76 + $0x750] sm:$0xff]
    %v778 = vld [vmem:[%s76 + $0x758] sm:$0xff]
    %v779 = vld [vmem:[%s76 + $0x760] sm:$0xff]
    %v780 = vld [vmem:[%s76 + $0x768] sm:$0xff]
    %v781 = vld [vmem:[%s76 + $0x770] sm:$0xff]
    %v782 = vld [vmem:[%s76 + $0x778] sm:$0xff]
    %v783 = vld [vmem:[%s76 + $0x780] sm:$0xff]
    %v784 = vld [vmem:[%s76 + $0x788] sm:$0xff]
    %v785 = vld [vmem:[%s76 + $0x790] sm:$0xff]
    %v786 = vld [vmem:[%s76 + $0x798] sm:$0xff]
    %v787 = vld [vmem:[%s76 + $0x7a0] sm:$0xff]
    %v788 = vld [vmem:[%s76 + $0x7a8] sm:$0xff]
    %v789 = vld [vmem:[%s76 + $0x7b0] sm:$0xff]
    %v790 = vld [vmem:[%s76 + $0x7b8] sm:$0xff]
    %v791 = vld [vmem:[%s76 + $0x7c0] sm:$0xff]
    %v792 = vld [vmem:[%s76 + $0x7c8] sm:$0xff]
    %v793 = vld [vmem:[%s76 + $0x7d0] sm:$0xff]
    %v794 = vld [vmem:[%s76 + $0x7d8] sm:$0xff]
    %v795 = vld [vmem:[%s76 + $0x7e0] sm:$0xff]
    %v796 = vld [vmem:[%s76 + $0x7e8] sm:$0xff]
    %v797 = vld [vmem:[%s76 + $0x7f0] sm:$0xff]
    %v798 = vld [vmem:[%s76 + $0x7f8] sm:$0xff]
    %799 = vmatprep.subr.bf16.mxu0 %v544
    %800 = vmatpush1.bf16.msra.mxu0 %v543
    %801 = vmatprep.subr.bf16.mxu0 %v552
    %802 = vmatpush1.bf16.msra.mxu0 %v551
    %803 = vmatprep.subr.bf16.mxu0 %v560
    %804 = vmatpush1.bf16.msra.mxu0 %v559
    %805 = vmatprep.subr.bf16.mxu0 %v568
    %806 = vmatpush1.bf16.msra.mxu0 %v567
    %807 = vmatprep.subr.bf16.mxu0 %v576
    %808 = vmatpush1.bf16.msra.mxu0 %v575
    %809 = vmatprep.subr.bf16.mxu0 %v584
    %810 = vmatpush1.bf16.msra.mxu0 %v583
    %811 = vmatprep.subr.bf16.mxu0 %v592
    %812 = vmatpush1.bf16.msra.mxu0 %v591
    %813 = vmatprep.subr.bf16.mxu0 %v600
    %814 = vmatpush1.bf16.msra.mxu0 %v599
    %815 = vmatprep.subr.bf16.mxu0 %v608
    %816 = vmatpush1.bf16.msra.mxu0 %v607
    %817 = vmatprep.subr.bf16.mxu0 %v616
    %818 = vmatpush1.bf16.msra.mxu0 %v615
    %819 = vmatprep.subr.bf16.mxu0 %v624
    %820 = vmatpush1.bf16.msra.mxu0 %v623
    %821 = vmatprep.subr.bf16.mxu0 %v632
    %822 = vmatpush1.bf16.msra.mxu0 %v631
    %823 = vmatprep.subr.bf16.mxu0 %v640
    %824 = vmatpush1.bf16.msra.mxu0 %v639
    %825 = vmatprep.subr.bf16.mxu0 %v648
    %826 = vmatpush1.bf16.msra.mxu0 %v647
    %827 = vmatprep.subr.bf16.mxu0 %v656
    %828 = vmatpush1.bf16.msra.mxu0 %v655
    %829 = vmatprep.subr.bf16.mxu0 %v664
    %830 = vmatpush1.bf16.msra.mxu0 %v663
    %831 = vmatprep.mubr.bf16.mxu0 %v270
    %832 = vmatmul.mubr.bf16.gmra.mrb[0].mxu0 %v269
    %v833 = vpop.f32.mrb[0].mxu0
    %v834 = vadd.f32 0.0, %v833
    %v835 = vpop.f32.mrb[0].mxu0
    %v836 = vadd.f32 0.0, %v835
    %v837 = vpop.f32.mrb[0].mxu0
    %v838 = vpop.f32.mrb[0].mxu0
    %839 = vdwg.mxu0
    %840 = vmatprep.subr.bf16.mxu0 %v672
    %841 = vmatpush1.bf16.msra.mxu0 %v671
    %842 = vmatprep.subr.bf16.mxu0 %v680
    %843 = vmatpush1.bf16.msra.mxu0 %v679
    %844 = vmatprep.subr.bf16.mxu0 %v688
    %845 = vmatpush1.bf16.msra.mxu0 %v687
    %846 = vmatprep.subr.bf16.mxu0 %v696
    %847 = vmatpush1.bf16.msra.mxu0 %v695
    %848 = vmatprep.subr.bf16.mxu0 %v704
    %849 = vmatpush1.bf16.msra.mxu0 %v703
    %850 = vmatprep.subr.bf16.mxu0 %v712
    %851 = vmatpush1.bf16.msra.mxu0 %v711
    %852 = vmatprep.subr.bf16.mxu0 %v720
    %853 = vmatpush1.bf16.msra.mxu0 %v719
    %854 = vmatprep.subr.bf16.mxu0 %v728
    %855 = vmatpush1.bf16.msra.mxu0 %v727
    %856 = vmatprep.subr.bf16.mxu0 %v736
    %857 = vmatpush1.bf16.msra.mxu0 %v735
    %858 = vmatprep.subr.bf16.mxu0 %v744
    %859 = vmatpush1.bf16.msra.mxu0 %v743
    %860 = vmatprep.subr.bf16.mxu0 %v752
    %861 = vmatpush1.bf16.msra.mxu0 %v751
    %862 = vmatprep.subr.bf16.mxu0 %v760
    %863 = vmatpush1.bf16.msra.mxu0 %v759
    %864 = vmatprep.subr.bf16.mxu0 %v768
    %865 = vmatpush1.bf16.msra.mxu0 %v767
    %866 = vmatprep.subr.bf16.mxu0 %v776
    %867 = vmatpush1.bf16.msra.mxu0 %v775
    %868 = vmatprep.subr.bf16.mxu0 %v784
    %869 = vmatpush1.bf16.msra.mxu0 %v783
    %870 = vmatprep.subr.bf16.mxu0 %v792
    %871 = vmatpush1.bf16.msra.mxu0 %v791
    %872 = vmatprep.mubr.bf16.mxu0 %v272
    %873 = vmatmul.mubr.bf16.gmra.mrb[0].mxu0 %v271
    %v874 = vpop.f32.mrb[0].mxu0
    %v875 = vadd.f32 %v834, %v874
    %v876 = vpop.f32.mrb[0].mxu0
    %v877 = vadd.f32 %v836, %v876
    %v878 = vpop.f32.mrb[0].mxu0
    %v879 = vpop.f32.mrb[0].mxu0
    %880 = vdwg.mxu0
    %881 = vmatprep.subr.bf16.mxu0 %v546
    %882 = vmatpush1.bf16.msra.mxu0 %v545
    %883 = vmatprep.subr.bf16.mxu0 %v554
    %884 = vmatpush1.bf16.msra.mxu0 %v553
    %885 = vmatprep.subr.bf16.mxu0 %v562
    %886 = vmatpush1.bf16.msra.mxu0 %v561
    %887 = vmatprep.subr.bf16.mxu0 %v570
    %888 = vmatpush1.bf16.msra.mxu0 %v569
    %889 = vmatprep.subr.bf16.mxu0 %v578
    %890 = vmatpush1.bf16.msra.mxu0 %v577
    %891 = vmatprep.subr.bf16.mxu0 %v586
    %892 = vmatpush1.bf16.msra.mxu0 %v585
    %893 = vmatprep.subr.bf16.mxu0 %v594
    %894 = vmatpush1.bf16.msra.mxu0 %v593
    %895 = vmatprep.subr.bf16.mxu0 %v602
    %896 = vmatpush1.bf16.msra.mxu0 %v601
    %897 = vmatprep.subr.bf16.mxu0 %v610
    %898 = vmatpush1.bf16.msra.mxu0 %v609
    %899 = vmatprep.subr.bf16.mxu0 %v618
    %900 = vmatpush1.bf16.msra.mxu0 %v617
    %901 = vmatprep.subr.bf16.mxu0 %v626
    %902 = vmatpush1.bf16.msra.mxu0 %v625
    %903 = vmatprep.subr.bf16.mxu0 %v634
    %904 = vmatpush1.bf16.msra.mxu0 %v633
    %905 = vmatprep.subr.bf16.mxu0 %v642
    %906 = vmatpush1.bf16.msra.mxu0 %v641
    %907 = vmatprep.subr.bf16.mxu0 %v650
    %908 = vmatpush1.bf16.msra.mxu0 %v649
    %909 = vmatprep.subr.bf16.mxu0 %v658
    %910 = vmatpush1.bf16.msra.mxu0 %v657
    %911 = vmatprep.subr.bf16.mxu0 %v666
    %912 = vmatpush1.bf16.msra.mxu0 %v665
    %913 = vmatprep.mubr.bf16.mxu0 %v270
    %914 = vmatmul.mubr.bf16.gmra.mrb[0].mxu0 %v269
    %v915 = vpop.f32.mrb[0].mxu0
    %v916 = vadd.f32 0.0, %v915
    %v917 = vpop.f32.mrb[0].mxu0
    %v918 = vadd.f32 0.0, %v917
    %v919 = vpop.f32.mrb[0].mxu0
    %v920 = vpop.f32.mrb[0].mxu0
    %921 = vdwg.mxu0
    %922 = vmatprep.subr.bf16.mxu0 %v674
    %923 = vmatpush1.bf16.msra.mxu0 %v673
    %924 = vmatprep.subr.bf16.mxu0 %v682
    %925 = vmatpush1.bf16.msra.mxu0 %v681
    %926 = vmatprep.subr.bf16.mxu0 %v690
    %927 = vmatpush1.bf16.msra.mxu0 %v689
    %928 = vmatprep.subr.bf16.mxu0 %v698
    %929 = vmatpush1.bf16.msra.mxu0 %v697
    %930 = vmatprep.subr.bf16.mxu0 %v706
    %931 = vmatpush1.bf16.msra.mxu0 %v705
    %932 = vmatprep.subr.bf16.mxu0 %v714
    %933 = vmatpush1.bf16.msra.mxu0 %v713
    %934 = vmatprep.subr.bf16.mxu0 %v722
    %935 = vmatpush1.bf16.msra.mxu0 %v721
    %936 = vmatprep.subr.bf16.mxu0 %v730
    %937 = vmatpush1.bf16.msra.mxu0 %v729
    %938 = vmatprep.subr.bf16.mxu0 %v738
    %939 = vmatpush1.bf16.msra.mxu0 %v737
    %940 = vmatprep.subr.bf16.mxu0 %v746
    %941 = vmatpush1.bf16.msra.mxu0 %v745
    %942 = vmatprep.subr.bf16.mxu0 %v754
    %943 = vmatpush1.bf16.msra.mxu0 %v753
    %944 = vmatprep.subr.bf16.mxu0 %v762
    %945 = vmatpush1.bf16.msra.mxu0 %v761
    %946 = vmatprep.subr.bf16.mxu0 %v770
    %947 = vmatpush1.bf16.msra.mxu0 %v769
    %948 = vmatprep.subr.bf16.mxu0 %v778
    %949 = vmatpush1.bf16.msra.mxu0 %v777
    %950 = vmatprep.subr.bf16.mxu0 %v786
    %951 = vmatpush1.bf16.msra.mxu0 %v785
    %952 = vmatprep.subr.bf16.mxu0 %v794
    %953 = vmatpush1.bf16.msra.mxu0 %v793
    %954 = vmatprep.mubr.bf16.mxu0 %v272
    %955 = vmatmul.mubr.bf16.gmra.mrb[0].mxu0 %v271
    %v956 = vpop.f32.mrb[0].mxu0
    %v957 = vadd.f32 %v916, %v956
    %v958 = vpop.f32.mrb[0].mxu0
    %v959 = vadd.f32 %v918, %v958
    %v960 = vpop.f32.mrb[0].mxu0
    %v961 = vpop.f32.mrb[0].mxu0
    %962 = vdwg.mxu0
    %963 = vmatprep.subr.bf16.mxu0 %v548
    %964 = vmatpush1.bf16.msra.mxu0 %v547
    %965 = vmatprep.subr.bf16.mxu0 %v556
    %966 = vmatpush1.bf16.msra.mxu0 %v555
    %967 = vmatprep.subr.bf16.mxu0 %v564
    %968 = vmatpush1.bf16.msra.mxu0 %v563
    %969 = vmatprep.subr.bf16.mxu0 %v572
    %970 = vmatpush1.bf16.msra.mxu0 %v571
    %971 = vmatprep.subr.bf16.mxu0 %v580
    %972 = vmatpush1.bf16.msra.mxu0 %v579
    %973 = vmatprep.subr.bf16.mxu0 %v588
    %974 = vmatpush1.bf16.msra.mxu0 %v587
    %975 = vmatprep.subr.bf16.mxu0 %v596
    %976 = vmatpush1.bf16.msra.mxu0 %v595
    %977 = vmatprep.subr.bf16.mxu0 %v604
    %978 = vmatpush1.bf16.msra.mxu0 %v603
    %979 = vmatprep.subr.bf16.mxu0 %v612
    %980 = vmatpush1.bf16.msra.mxu0 %v611
    %981 = vmatprep.subr.bf16.mxu0 %v620
    %982 = vmatpush1.bf16.msra.mxu0 %v619
    %983 = vmatprep.subr.bf16.mxu0 %v628
    %984 = vmatpush1.bf16.msra.mxu0 %v627
    %985 = vmatprep.subr.bf16.mxu0 %v636
    %986 = vmatpush1.bf16.msra.mxu0 %v635
    %987 = vmatprep.subr.bf16.mxu0 %v644
    %988 = vmatpush1.bf16.msra.mxu0 %v643
    %989 = vmatprep.subr.bf16.mxu0 %v652
    %990 = vmatpush1.bf16.msra.mxu0 %v651
    %991 = vmatprep.subr.bf16.mxu0 %v660
    %992 = vmatpush1.bf16.msra.mxu0 %v659
    %993 = vmatprep.subr.bf16.mxu0 %v668
    %994 = vmatpush1.bf16.msra.mxu0 %v667
    %995 = vmatprep.mubr.bf16.mxu0 %v270
    %996 = vmatmul.mubr.bf16.gmra.mrb[0].mxu0 %v269
    %v997 = vpop.f32.mrb[0].mxu0
    %v998 = vadd.f32 0.0, %v997
    %v999 = vpop.f32.mrb[0].mxu0
    %v1000 = vadd.f32 0.0, %v999
    %v1001 = vpop.f32.mrb[0].mxu0
    %v1002 = vpop.f32.mrb[0].mxu0
    %1003 = vdwg.mxu0
    %1004 = vmatprep.subr.bf16.mxu0 %v676
    %1005 = vmatpush1.bf16.msra.mxu0 %v675
    %1006 = vmatprep.subr.bf16.mxu0 %v684
    %1007 = vmatpush1.bf16.msra.mxu0 %v683
    %1008 = vmatprep.subr.bf16.mxu0 %v692
    %1009 = vmatpush1.bf16.msra.mxu0 %v691
    %1010 = vmatprep.subr.bf16.mxu0 %v700
    %1011 = vmatpush1.bf16.msra.mxu0 %v699
    %1012 = vmatprep.subr.bf16.mxu0 %v708
    %1013 = vmatpush1.bf16.msra.mxu0 %v707
    %1014 = vmatprep.subr.bf16.mxu0 %v716
    %1015 = vmatpush1.bf16.msra.mxu0 %v715
    %1016 = vmatprep.subr.bf16.mxu0 %v724
    %1017 = vmatpush1.bf16.msra.mxu0 %v723
    %1018 = vmatprep.subr.bf16.mxu0 %v732
    %1019 = vmatpush1.bf16.msra.mxu0 %v731
    %1020 = vmatprep.subr.bf16.mxu0 %v740
    %1021 = vmatpush1.bf16.msra.mxu0 %v739
    %1022 = vmatprep.subr.bf16.mxu0 %v748
    %1023 = vmatpush1.bf16.msra.mxu0 %v747
    %1024 = vmatprep.subr.bf16.mxu0 %v756
    %1025 = vmatpush1.bf16.msra.mxu0 %v755
    %1026 = vmatprep.subr.bf16.mxu0 %v764
    %1027 = vmatpush1.bf16.msra.mxu0 %v763
    %1028 = vmatprep.subr.bf16.mxu0 %v772
    %1029 = vmatpush1.bf16.msra.mxu0 %v771
    %1030 = vmatprep.subr.bf16.mxu0 %v780
    %1031 = vmatpush1.bf16.msra.mxu0 %v779
    %1032 = vmatprep.subr.bf16.mxu0 %v788
    %1033 = vmatpush1.bf16.msra.mxu0 %v787
    %1034 = vmatprep.subr.bf16.mxu0 %v796
    %1035 = vmatpush1.bf16.msra.mxu0 %v795
    %1036 = vmatprep.mubr.bf16.mxu0 %v272
    %1037 = vmatmul.mubr.bf16.gmra.mrb[0].mxu0 %v271
    %v1038 = vpop.f32.mrb[0].mxu0
    %v1039 = vadd.f32 %v998, %v1038
    %v1040 = vpop.f32.mrb[0].mxu0
    %v1041 = vadd.f32 %v1000, %v1040
    %v1042 = vpop.f32.mrb[0].mxu0
    %v1043 = vpop.f32.mrb[0].mxu0
    %1044 = vdwg.mxu0
    %1045 = vmatprep.subr.bf16.mxu0 %v550
    %1046 = vmatpush1.bf16.msra.mxu0 %v549
    %1047 = vmatprep.subr.bf16.mxu0 %v558
    %1048 = vmatpush1.bf16.msra.mxu0 %v557
    %1049 = vmatprep.subr.bf16.mxu0 %v566
    %1050 = vmatpush1.bf16.msra.mxu0 %v565
    %1051 = vmatprep.subr.bf16.mxu0 %v574
    %1052 = vmatpush1.bf16.msra.mxu0 %v573
    %1053 = vmatprep.subr.bf16.mxu0 %v582
    %1054 = vmatpush1.bf16.msra.mxu0 %v581
    %1055 = vmatprep.subr.bf16.mxu0 %v590
    %1056 = vmatpush1.bf16.msra.mxu0 %v589
    %1057 = vmatprep.subr.bf16.mxu0 %v598
    %1058 = vmatpush1.bf16.msra.mxu0 %v597
    %1059 = vmatprep.subr.bf16.mxu0 %v606
    %1060 = vmatpush1.bf16.msra.mxu0 %v605
    %1061 = vmatprep.subr.bf16.mxu0 %v614
    %1062 = vmatpush1.bf16.msra.mxu0 %v613
    %1063 = vmatprep.subr.bf16.mxu0 %v622
    %1064 = vmatpush1.bf16.msra.mxu0 %v621
    %1065 = vmatprep.subr.bf16.mxu0 %v630
    %1066 = vmatpush1.bf16.msra.mxu0 %v629
    %1067 = vmatprep.subr.bf16.mxu0 %v638
    %1068 = vmatpush1.bf16.msra.mxu0 %v637
    %1069 = vmatprep.subr.bf16.mxu0 %v646
    %1070 = vmatpush1.bf16.msra.mxu0 %v645
    %1071 = vmatprep.subr.bf16.mxu0 %v654
    %1072 = vmatpush1.bf16.msra.mxu0 %v653
    %1073 = vmatprep.subr.bf16.mxu0 %v662
    %1074 = vmatpush1.bf16.msra.mxu0 %v661
    %1075 = vmatprep.subr.bf16.mxu0 %v670
    %1076 = vmatpush1.bf16.msra.mxu0 %v669
    %1077 = vmatprep.mubr.bf16.mxu0 %v270
    %1078 = vmatmul.mubr.bf16.gmra.mrb[0].mxu0 %v269
    %v1079 = vpop.f32.mrb[0].mxu0
    %v1080 = vadd.f32 0.0, %v1079
    %v1081 = vpop.f32.mrb[0].mxu0
    %v1082 = vadd.f32 0.0, %v1081
    %v1083 = vpop.f32.mrb[0].mxu0
    %v1084 = vpop.f32.mrb[0].mxu0
    %1085 = vdwg.mxu0
    %1086 = vmatprep.subr.bf16.mxu0 %v678
    %1087 = vmatpush1.bf16.msra.mxu0 %v677
    %1088 = vmatprep.subr.bf16.mxu0 %v686
    %1089 = vmatpush1.bf16.msra.mxu0 %v685
    %1090 = vmatprep.subr.bf16.mxu0 %v694
    %1091 = vmatpush1.bf16.msra.mxu0 %v693
    %1092 = vmatprep.subr.bf16.mxu0 %v702
    %1093 = vmatpush1.bf16.msra.mxu0 %v701
    %1094 = vmatprep.subr.bf16.mxu0 %v710
    %1095 = vmatpush1.bf16.msra.mxu0 %v709
    %1096 = vmatprep.subr.bf16.mxu0 %v718
    %1097 = vmatpush1.bf16.msra.mxu0 %v717
    %1098 = vmatprep.subr.bf16.mxu0 %v726
    %1099 = vmatpush1.bf16.msra.mxu0 %v725
    %1100 = vmatprep.subr.bf16.mxu0 %v734
    %1101 = vmatpush1.bf16.msra.mxu0 %v733
    %1102 = vmatprep.subr.bf16.mxu0 %v742
    %1103 = vmatpush1.bf16.msra.mxu0 %v741
    %1104 = vmatprep.subr.bf16.mxu0 %v750
    %1105 = vmatpush1.bf16.msra.mxu0 %v749
    %1106 = vmatprep.subr.bf16.mxu0 %v758
    %1107 = vmatpush1.bf16.msra.mxu0 %v757
    %1108 = vmatprep.subr.bf16.mxu0 %v766
    %1109 = vmatpush1.bf16.msra.mxu0 %v765
    %1110 = vmatprep.subr.bf16.mxu0 %v774
    %1111 = vmatpush1.bf16.msra.mxu0 %v773
    %1112 = vmatprep.subr.bf16.mxu0 %v782
    %1113 = vmatpush1.bf16.msra.mxu0 %v781
    %1114 = vmatprep.subr.bf16.mxu0 %v790
    %1115 = vmatpush1.bf16.msra.mxu0 %v789
    %1116 = vmatprep.subr.bf16.mxu0 %v798
    %1117 = vmatpush1.bf16.msra.mxu0 %v797
    %1118 = vmatprep.mubr.bf16.mxu0 %v272
    %1119 = vmatmul.mubr.bf16.gmra.mrb[0].mxu0 %v271
    %v1120 = vpop.f32.mrb[0].mxu0
    %v1121 = vadd.f32 %v1080, %v1120
    %v1122 = vpop.f32.mrb[0].mxu0
    %v1123 = vadd.f32 %v1082, %v1122
    %v1124 = vpop.f32.mrb[0].mxu0
    %v1125 = vpop.f32.mrb[0].mxu0
    %1126 = vdwg.mxu0
    %1127 = vmatprep.subr.bf16.mxu0 %v286
    %1128 = vmatpush1.bf16.msra.mxu0 %v285
    %1129 = vmatprep.subr.bf16.mxu0 %v294
    %1130 = vmatpush1.bf16.msra.mxu0 %v293
    %1131 = vmatprep.subr.bf16.mxu0 %v302
    %1132 = vmatpush1.bf16.msra.mxu0 %v301
    %1133 = vmatprep.subr.bf16.mxu0 %v310
    %1134 = vmatpush1.bf16.msra.mxu0 %v309
    %1135 = vmatprep.subr.bf16.mxu0 %v318
    %1136 = vmatpush1.bf16.msra.mxu0 %v317
    %1137 = vmatprep.subr.bf16.mxu0 %v326
    %1138 = vmatpush1.bf16.msra.mxu0 %v325
    %1139 = vmatprep.subr.bf16.mxu0 %v334
    %1140 = vmatpush1.bf16.msra.mxu0 %v333
    %1141 = vmatprep.subr.bf16.mxu0 %v342
    %1142 = vmatpush1.bf16.msra.mxu0 %v341
    %1143 = vmatprep.subr.bf16.mxu0 %v350
    %1144 = vmatpush1.bf16.msra.mxu0 %v349
    %1145 = vmatprep.subr.bf16.mxu0 %v358
    %1146 = vmatpush1.bf16.msra.mxu0 %v357
    %1147 = vmatprep.subr.bf16.mxu0 %v366
    %1148 = vmatpush1.bf16.msra.mxu0 %v365
    %1149 = vmatprep.subr.bf16.mxu0 %v374
    %1150 = vmatpush1.bf16.msra.mxu0 %v373
    %1151 = vmatprep.subr.bf16.mxu0 %v382
    %1152 = vmatpush1.bf16.msra.mxu0 %v381
    %1153 = vmatprep.subr.bf16.mxu0 %v390
    %1154 = vmatpush1.bf16.msra.mxu0 %v389
    %1155 = vmatprep.subr.bf16.mxu0 %v398
    %1156 = vmatpush1.bf16.msra.mxu0 %v397
    %1157 = vmatprep.subr.bf16.mxu0 %v406
    %1158 = vmatpush1.bf16.msra.mxu0 %v405
    %1159 = vmatprep.mubr.bf16.mxu0 %v266
    %1160 = vmatmul.mubr.bf16.gmra.mrb[0].mxu0 %v265
    %v1161 = vpop.f32.mrb[0].mxu0
    %v1162 = vadd.f32 %v875, %v1161
    %v1163 = vpop.f32.mrb[0].mxu0
    %v1164 = vadd.f32 %v877, %v1163
    %v1165 = vpop.f32.mrb[0].mxu0
    %v1166 = vpop.f32.mrb[0].mxu0
    %1167 = vdwg.mxu0
    %1168 = vmatprep.subr.bf16.mxu0 %v414
    %1169 = vmatpush1.bf16.msra.mxu0 %v413
    %1170 = vmatprep.subr.bf16.mxu0 %v422
    %1171 = vmatpush1.bf16.msra.mxu0 %v421
    %1172 = vmatprep.subr.bf16.mxu0 %v430
    %1173 = vmatpush1.bf16.msra.mxu0 %v429
    %1174 = vmatprep.subr.bf16.mxu0 %v438
    %1175 = vmatpush1.bf16.msra.mxu0 %v437
    %1176 = vmatprep.subr.bf16.mxu0 %v446
    %1177 = vmatpush1.bf16.msra.mxu0 %v445
    %1178 = vmatprep.subr.bf16.mxu0 %v454
    %1179 = vmatpush1.bf16.msra.mxu0 %v453
    %1180 = vmatprep.subr.bf16.mxu0 %v462
    %1181 = vmatpush1.bf16.msra.mxu0 %v461
    %1182 = vmatprep.subr.bf16.mxu0 %v470
    %1183 = vmatpush1.bf16.msra.mxu0 %v469
    %1184 = vmatprep.subr.bf16.mxu0 %v478
    %1185 = vmatpush1.bf16.msra.mxu0 %v477
    %1186 = vmatprep.subr.bf16.mxu0 %v486
    %1187 = vmatpush1.bf16.msra.mxu0 %v485
    %1188 = vmatprep.subr.bf16.mxu0 %v494
    %1189 = vmatpush1.bf16.msra.mxu0 %v493
    %1190 = vmatprep.subr.bf16.mxu0 %v502
    %1191 = vmatpush1.bf16.msra.mxu0 %v501
    %1192 = vmatprep.subr.bf16.mxu0 %v510
    %1193 = vmatpush1.bf16.msra.mxu0 %v509
    %1194 = vmatprep.subr.bf16.mxu0 %v518
    %1195 = vmatpush1.bf16.msra.mxu0 %v517
    %1196 = vmatprep.subr.bf16.mxu0 %v526
    %1197 = vmatpush1.bf16.msra.mxu0 %v525
    %1198 = vmatprep.subr.bf16.mxu0 %v534
    %1199 = vmatpush1.bf16.msra.mxu0 %v533
    %1200 = vmatprep.mubr.bf16.mxu0 %v268
    %1201 = vmatmul.mubr.bf16.gmra.mrb[0].mxu0 %v267
    %v1202 = vpop.f32.mrb[0].mxu0
    %v1203 = vadd.f32 %v1162, %v1202
    %v1204 = vpop.f32.mrb[0].mxu0
    %v1205 = vadd.f32 %v1164, %v1204
    %v1206 = vpop.f32.mrb[0].mxu0
    %v1207 = vpop.f32.mrb[0].mxu0
    %1208 = vdwg.mxu0
    %1209 = vmatprep.subr.bf16.mxu0 %v288
    %1210 = vmatpush1.bf16.msra.mxu0 %v287
    %1211 = vmatprep.subr.bf16.mxu0 %v296
    %1212 = vmatpush1.bf16.msra.mxu0 %v295
    %1213 = vmatprep.subr.bf16.mxu0 %v304
    %1214 = vmatpush1.bf16.msra.mxu0 %v303
    %1215 = vmatprep.subr.bf16.mxu0 %v312
    %1216 = vmatpush1.bf16.msra.mxu0 %v311
    %1217 = vmatprep.subr.bf16.mxu0 %v320
    %1218 = vmatpush1.bf16.msra.mxu0 %v319
    %1219 = vmatprep.subr.bf16.mxu0 %v328
    %1220 = vmatpush1.bf16.msra.mxu0 %v327
    %1221 = vmatprep.subr.bf16.mxu0 %v336
    %1222 = vmatpush1.bf16.msra.mxu0 %v335
    %1223 = vmatprep.subr.bf16.mxu0 %v344
    %1224 = vmatpush1.bf16.msra.mxu0 %v343
    %1225 = vmatprep.subr.bf16.mxu0 %v352
    %1226 = vmatpush1.bf16.msra.mxu0 %v351
    %1227 = vmatprep.subr.bf16.mxu0 %v360
    %1228 = vmatpush1.bf16.msra.mxu0 %v359
    %1229 = vmatprep.subr.bf16.mxu0 %v368
    %1230 = vmatpush1.bf16.msra.mxu0 %v367
    %1231 = vmatprep.subr.bf16.mxu0 %v376
    %1232 = vmatpush1.bf16.msra.mxu0 %v375
    %1233 = vmatprep.subr.bf16.mxu0 %v384
    %1234 = vmatpush1.bf16.msra.mxu0 %v383
    %1235 = vmatprep.subr.bf16.mxu0 %v392
    %1236 = vmatpush1.bf16.msra.mxu0 %v391
    %1237 = vmatprep.subr.bf16.mxu0 %v400
    %1238 = vmatpush1.bf16.msra.mxu0 %v399
    %1239 = vmatprep.subr.bf16.mxu0 %v408
    %1240 = vmatpush1.bf16.msra.mxu0 %v407
    %1241 = vmatprep.mubr.bf16.mxu0 %v266
    %1242 = vmatmul.mubr.bf16.gmra.mrb[0].mxu0 %v265
    %v1243 = vpop.f32.mrb[0].mxu0
    %v1244 = vadd.f32 %v957, %v1243
    %v1245 = vpop.f32.mrb[0].mxu0
    %v1246 = vadd.f32 %v959, %v1245
    %v1247 = vpop.f32.mrb[0].mxu0
    %v1248 = vpop.f32.mrb[0].mxu0
    %1249 = vdwg.mxu0
    %1250 = vmatprep.subr.bf16.mxu0 %v416
    %1251 = vmatpush1.bf16.msra.mxu0 %v415
    %1252 = vmatprep.subr.bf16.mxu0 %v424
    %1253 = vmatpush1.bf16.msra.mxu0 %v423
    %1254 = vmatprep.subr.bf16.mxu0 %v432
    %1255 = vmatpush1.bf16.msra.mxu0 %v431
    %1256 = vmatprep.subr.bf16.mxu0 %v440
    %1257 = vmatpush1.bf16.msra.mxu0 %v439
    %1258 = vmatprep.subr.bf16.mxu0 %v448
    %1259 = vmatpush1.bf16.msra.mxu0 %v447
    %1260 = vmatprep.subr.bf16.mxu0 %v456
    %1261 = vmatpush1.bf16.msra.mxu0 %v455
    %1262 = vmatprep.subr.bf16.mxu0 %v464
    %1263 = vmatpush1.bf16.msra.mxu0 %v463
    %1264 = vmatprep.subr.bf16.mxu0 %v472
    %1265 = vmatpush1.bf16.msra.mxu0 %v471
    %1266 = vmatprep.subr.bf16.mxu0 %v480
    %1267 = vmatpush1.bf16.msra.mxu0 %v479
    %1268 = vmatprep.subr.bf16.mxu0 %v488
    %1269 = vmatpush1.bf16.msra.mxu0 %v487
    %1270 = vmatprep.subr.bf16.mxu0 %v496
    %1271 = vmatpush1.bf16.msra.mxu0 %v495
    %1272 = vmatprep.subr.bf16.mxu0 %v504
    %1273 = vmatpush1.bf16.msra.mxu0 %v503
    %1274 = vmatprep.subr.bf16.mxu0 %v512
    %1275 = vmatpush1.bf16.msra.mxu0 %v511
    %1276 = vmatprep.subr.bf16.mxu0 %v520
    %1277 = vmatpush1.bf16.msra.mxu0 %v519
    %1278 = vmatprep.subr.bf16.mxu0 %v528
    %1279 = vmatpush1.bf16.msra.mxu0 %v527
    %1280 = vmatprep.subr.bf16.mxu0 %v536
    %1281 = vmatpush1.bf16.msra.mxu0 %v535
    %1282 = vmatprep.mubr.bf16.mxu0 %v268
    %1283 = vmatmul.mubr.bf16.gmra.mrb[0].mxu0 %v267
    %v1284 = vpop.f32.mrb[0].mxu0
    %v1285 = vadd.f32 %v1244, %v1284
    %v1286 = vpop.f32.mrb[0].mxu0
    %v1287 = vadd.f32 %v1246, %v1286
    %v1288 = vpop.f32.mrb[0].mxu0
    %v1289 = vpop.f32.mrb[0].mxu0
    %1290 = vdwg.mxu0
    %1291 = vmatprep.subr.bf16.mxu0 %v290
    %1292 = vmatpush1.bf16.msra.mxu0 %v289
    %1293 = vmatprep.subr.bf16.mxu0 %v298
    %1294 = vmatpush1.bf16.msra.mxu0 %v297
    %1295 = vmatprep.subr.bf16.mxu0 %v306
    %1296 = vmatpush1.bf16.msra.mxu0 %v305
    %1297 = vmatprep.subr.bf16.mxu0 %v314
    %1298 = vmatpush1.bf16.msra.mxu0 %v313
    %1299 = vmatprep.subr.bf16.mxu0 %v322
    %1300 = vmatpush1.bf16.msra.mxu0 %v321
    %1301 = vmatprep.subr.bf16.mxu0 %v330
    %1302 = vmatpush1.bf16.msra.mxu0 %v329
    %1303 = vmatprep.subr.bf16.mxu0 %v338
    %1304 = vmatpush1.bf16.msra.mxu0 %v337
    %1305 = vmatprep.subr.bf16.mxu0 %v346
    %1306 = vmatpush1.bf16.msra.mxu0 %v345
    %1307 = vmatprep.subr.bf16.mxu0 %v354
    %1308 = vmatpush1.bf16.msra.mxu0 %v353
    %1309 = vmatprep.subr.bf16.mxu0 %v362
    %1310 = vmatpush1.bf16.msra.mxu0 %v361
    %1311 = vmatprep.subr.bf16.mxu0 %v370
    %1312 = vmatpush1.bf16.msra.mxu0 %v369
    %1313 = vmatprep.subr.bf16.mxu0 %v378
    %1314 = vmatpush1.bf16.msra.mxu0 %v377
    %1315 = vmatprep.subr.bf16.mxu0 %v386
    %1316 = vmatpush1.bf16.msra.mxu0 %v385
    %1317 = vmatprep.subr.bf16.mxu0 %v394
    %1318 = vmatpush1.bf16.msra.mxu0 %v393
    %1319 = vmatprep.subr.bf16.mxu0 %v402
    %1320 = vmatpush1.bf16.msra.mxu0 %v401
    %1321 = vmatprep.subr.bf16.mxu0 %v410
    %1322 = vmatpush1.bf16.msra.mxu0 %v409
    %1323 = vmatprep.mubr.bf16.mxu0 %v266
    %1324 = vmatmul.mubr.bf16.gmra.mrb[0].mxu0 %v265
    %v1325 = vpop.f32.mrb[0].mxu0
    %v1326 = vadd.f32 %v1039, %v1325
    %v1327 = vpop.f32.mrb[0].mxu0
    %v1328 = vadd.f32 %v1041, %v1327
    %v1329 = vpop.f32.mrb[0].mxu0
    %v1330 = vpop.f32.mrb[0].mxu0
    %1331 = vdwg.mxu0
    %1332 = vmatprep.subr.bf16.mxu0 %v418
    %1333 = vmatpush1.bf16.msra.mxu0 %v417
    %1334 = vmatprep.subr.bf16.mxu0 %v426
    %1335 = vmatpush1.bf16.msra.mxu0 %v425
    %1336 = vmatprep.subr.bf16.mxu0 %v434
    %1337 = vmatpush1.bf16.msra.mxu0 %v433
    %1338 = vmatprep.subr.bf16.mxu0 %v442
    %1339 = vmatpush1.bf16.msra.mxu0 %v441
    %1340 = vmatprep.subr.bf16.mxu0 %v450
    %1341 = vmatpush1.bf16.msra.mxu0 %v449
    %1342 = vmatprep.subr.bf16.mxu0 %v458
    %1343 = vmatpush1.bf16.msra.mxu0 %v457
    %1344 = vmatprep.subr.bf16.mxu0 %v466
    %1345 = vmatpush1.bf16.msra.mxu0 %v465
    %1346 = vmatprep.subr.bf16.mxu0 %v474
    %1347 = vmatpush1.bf16.msra.mxu0 %v473
    %1348 = vmatprep.subr.bf16.mxu0 %v482
    %1349 = vmatpush1.bf16.msra.mxu0 %v481
    %1350 = vmatprep.subr.bf16.mxu0 %v490
    %1351 = vmatpush1.bf16.msra.mxu0 %v489
    %1352 = vmatprep.subr.bf16.mxu0 %v498
    %1353 = vmatpush1.bf16.msra.mxu0 %v497
    %1354 = vmatprep.subr.bf16.mxu0 %v506
    %1355 = vmatpush1.bf16.msra.mxu0 %v505
    %1356 = vmatprep.subr.bf16.mxu0 %v514
    %1357 = vmatpush1.bf16.msra.mxu0 %v513
    %1358 = vmatprep.subr.bf16.mxu0 %v522
    %1359 = vmatpush1.bf16.msra.mxu0 %v521
    %1360 = vmatprep.subr.bf16.mxu0 %v530
    %1361 = vmatpush1.bf16.msra.mxu0 %v529
    %1362 = vmatprep.subr.bf16.mxu0 %v538
    %1363 = vmatpush1.bf16.msra.mxu0 %v537
    %1364 = vmatprep.mubr.bf16.mxu0 %v268
    %1365 = vmatmul.mubr.bf16.gmra.mrb[0].mxu0 %v267
    %v1366 = vpop.f32.mrb[0].mxu0
    %v1367 = vadd.f32 %v1326, %v1366
    %v1368 = vpop.f32.mrb[0].mxu0
    %v1369 = vadd.f32 %v1328, %v1368
    %v1370 = vpop.f32.mrb[0].mxu0
    %v1371 = vpop.f32.mrb[0].mxu0
    %1372 = vdwg.mxu0
    %1373 = vmatprep.subr.bf16.mxu0 %v292
    %1374 = vmatpush1.bf16.msra.mxu0 %v291
    %1375 = vmatprep.subr.bf16.mxu0 %v300
    %1376 = vmatpush1.bf16.msra.mxu0 %v299
    %1377 = vmatprep.subr.bf16.mxu0 %v308
    %1378 = vmatpush1.bf16.msra.mxu0 %v307
    %1379 = vmatprep.subr.bf16.mxu0 %v316
    %1380 = vmatpush1.bf16.msra.mxu0 %v315
    %1381 = vmatprep.subr.bf16.mxu0 %v324
    %1382 = vmatpush1.bf16.msra.mxu0 %v323
    %1383 = vmatprep.subr.bf16.mxu0 %v332
    %1384 = vmatpush1.bf16.msra.mxu0 %v331
    %1385 = vmatprep.subr.bf16.mxu0 %v340
    %1386 = vmatpush1.bf16.msra.mxu0 %v339
    %1387 = vmatprep.subr.bf16.mxu0 %v348
    %1388 = vmatpush1.bf16.msra.mxu0 %v347
    %1389 = vmatprep.subr.bf16.mxu0 %v356
    %1390 = vmatpush1.bf16.msra.mxu0 %v355
    %1391 = vmatprep.subr.bf16.mxu0 %v364
    %1392 = vmatpush1.bf16.msra.mxu0 %v363
    %1393 = vmatprep.subr.bf16.mxu0 %v372
    %1394 = vmatpush1.bf16.msra.mxu0 %v371
    %1395 = vmatprep.subr.bf16.mxu0 %v380
    %1396 = vmatpush1.bf16.msra.mxu0 %v379
    %1397 = vmatprep.subr.bf16.mxu0 %v388
    %1398 = vmatpush1.bf16.msra.mxu0 %v387
    %1399 = vmatprep.subr.bf16.mxu0 %v396
    %1400 = vmatpush1.bf16.msra.mxu0 %v395
    %1401 = vmatprep.subr.bf16.mxu0 %v404
    %1402 = vmatpush1.bf16.msra.mxu0 %v403
    %1403 = vmatprep.subr.bf16.mxu0 %v412
    %1404 = vmatpush1.bf16.msra.mxu0 %v411
    %1405 = vmatprep.mubr.bf16.mxu0 %v266
    %1406 = vmatmul.mubr.bf16.gmra.mrb[0].mxu0 %v265
    %v1407 = vpop.f32.mrb[0].mxu0
    %v1408 = vadd.f32 %v1121, %v1407
    %v1409 = vpop.f32.mrb[0].mxu0
    %v1410 = vadd.f32 %v1123, %v1409
    %v1411 = vpop.f32.mrb[0].mxu0
    %v1412 = vpop.f32.mrb[0].mxu0
    %1413 = vdwg.mxu0
    %1414 = vmatprep.subr.bf16.mxu0 %v420
    %1415 = vmatpush1.bf16.msra.mxu0 %v419
    %1416 = vmatprep.subr.bf16.mxu0 %v428
    %1417 = vmatpush1.bf16.msra.mxu0 %v427
    %1418 = vmatprep.subr.bf16.mxu0 %v436
    %1419 = vmatpush1.bf16.msra.mxu0 %v435
    %1420 = vmatprep.subr.bf16.mxu0 %v444
    %1421 = vmatpush1.bf16.msra.mxu0 %v443
    %1422 = vmatprep.subr.bf16.mxu0 %v452
    %1423 = vmatpush1.bf16.msra.mxu0 %v451
    %1424 = vmatprep.subr.bf16.mxu0 %v460
    %1425 = vmatpush1.bf16.msra.mxu0 %v459
    %1426 = vmatprep.subr.bf16.mxu0 %v468
    %1427 = vmatpush1.bf16.msra.mxu0 %v467
    %1428 = vmatprep.subr.bf16.mxu0 %v476
    %1429 = vmatpush1.bf16.msra.mxu0 %v475
    %1430 = vmatprep.subr.bf16.mxu0 %v484
    %1431 = vmatpush1.bf16.msra.mxu0 %v483
    %1432 = vmatprep.subr.bf16.mxu0 %v492
    %1433 = vmatpush1.bf16.msra.mxu0 %v491
    %1434 = vmatprep.subr.bf16.mxu0 %v500
    %1435 = vmatpush1.bf16.msra.mxu0 %v499
    %1436 = vmatprep.subr.bf16.mxu0 %v508
    %1437 = vmatpush1.bf16.msra.mxu0 %v507
    %1438 = vmatprep.subr.bf16.mxu0 %v516
    %1439 = vmatpush1.bf16.msra.mxu0 %v515
    %1440 = vmatprep.subr.bf16.mxu0 %v524
    %1441 = vmatpush1.bf16.msra.mxu0 %v523
    %1442 = vmatprep.subr.bf16.mxu0 %v532
    %1443 = vmatpush1.bf16.msra.mxu0 %v531
    %1444 = vmatprep.subr.bf16.mxu0 %v540
    %1445 = vmatpush1.bf16.msra.mxu0 %v539
    %1446 = vmatprep.mubr.bf16.mxu0 %v268
    %1447 = vmatmul.mubr.bf16.gmra.mrb[0].mxu0 %v267
    %v1448 = vpop.f32.mrb[0].mxu0
    %v1449 = vadd.f32 %v1408, %v1448
    %v1450 = vpop.f32.mrb[0].mxu0
    %v1451 = vadd.f32 %v1410, %v1450
    %v1452 = vpop.f32.mrb[0].mxu0
    %v1453 = vpop.f32.mrb[0].mxu0
    %1454 = vdwg.mxu0
    %s1455 = sshll.u32 %s282, 4
    %1456 = dma.done %s114, %s1455
    %v1457 = vld [vmem:[%s113] sm:$0xff]
    %v1458 = vld [vmem:[%s113 + $0x8] sm:$0xff]
    %v1459 = vld [vmem:[%s113 + $0x10] sm:$0xff]
    %v1460 = vld [vmem:[%s113 + $0x18] sm:$0xff]
    %v1461 = vld [vmem:[%s113 + $0x20] sm:$0xff]
    %v1462 = vld [vmem:[%s113 + $0x28] sm:$0xff]
    %v1463 = vld [vmem:[%s113 + $0x30] sm:$0xff]
    %v1464 = vld [vmem:[%s113 + $0x38] sm:$0xff]
    %v1465 = vld [vmem:[%s113 + $0x40] sm:$0xff]
    %v1466 = vld [vmem:[%s113 + $0x48] sm:$0xff]
    %v1467 = vld [vmem:[%s113 + $0x50] sm:$0xff]
    %v1468 = vld [vmem:[%s113 + $0x58] sm:$0xff]
    %v1469 = vld [vmem:[%s113 + $0x60] sm:$0xff]
    %v1470 = vld [vmem:[%s113 + $0x68] sm:$0xff]
    %v1471 = vld [vmem:[%s113 + $0x70] sm:$0xff]
    %v1472 = vld [vmem:[%s113 + $0x78] sm:$0xff]
    %v1473 = vld [vmem:[%s113 + $0x80] sm:$0xff]
    %v1474 = vld [vmem:[%s113 + $0x88] sm:$0xff]
    %v1475 = vld [vmem:[%s113 + $0x90] sm:$0xff]
    %v1476 = vld [vmem:[%s113 + $0x98] sm:$0xff]
    %v1477 = vld [vmem:[%s113 + $0xa0] sm:$0xff]
    %v1478 = vld [vmem:[%s113 + $0xa8] sm:$0xff]
    %v1479 = vld [vmem:[%s113 + $0xb0] sm:$0xff]
    %v1480 = vld [vmem:[%s113 + $0xb8] sm:$0xff]
    %v1481 = vld [vmem:[%s113 + $0xc0] sm:$0xff]
    %v1482 = vld [vmem:[%s113 + $0xc8] sm:$0xff]
    %v1483 = vld [vmem:[%s113 + $0xd0] sm:$0xff]
    %v1484 = vld [vmem:[%s113 + $0xd8] sm:$0xff]
    %v1485 = vld [vmem:[%s113 + $0xe0] sm:$0xff]
    %v1486 = vld [vmem:[%s113 + $0xe8] sm:$0xff]
    %v1487 = vld [vmem:[%s113 + $0xf0] sm:$0xff]
    %v1488 = vld [vmem:[%s113 + $0xf8] sm:$0xff]
    %v1489 = vld [vmem:[%s113 + $0x100] sm:$0xff]
    %v1490 = vld [vmem:[%s113 + $0x108] sm:$0xff]
    %v1491 = vld [vmem:[%s113 + $0x110] sm:$0xff]
    %v1492 = vld [vmem:[%s113 + $0x118] sm:$0xff]
    %v1493 = vld [vmem:[%s113 + $0x120] sm:$0xff]
    %v1494 = vld [vmem:[%s113 + $0x128] sm:$0xff]
    %v1495 = vld [vmem:[%s113 + $0x130] sm:$0xff]
    %v1496 = vld [vmem:[%s113 + $0x138] sm:$0xff]
    %v1497 = vld [vmem:[%s113 + $0x140] sm:$0xff]
    %v1498 = vld [vmem:[%s113 + $0x148] sm:$0xff]
    %v1499 = vld [vmem:[%s113 + $0x150] sm:$0xff]
    %v1500 = vld [vmem:[%s113 + $0x158] sm:$0xff]
    %v1501 = vld [vmem:[%s113 + $0x160] sm:$0xff]
    %v1502 = vld [vmem:[%s113 + $0x168] sm:$0xff]
    %v1503 = vld [vmem:[%s113 + $0x170] sm:$0xff]
    %v1504 = vld [vmem:[%s113 + $0x178] sm:$0xff]
    %v1505 = vld [vmem:[%s113 + $0x180] sm:$0xff]
    %v1506 = vld [vmem:[%s113 + $0x188] sm:$0xff]
    %v1507 = vld [vmem:[%s113 + $0x190] sm:$0xff]
    %v1508 = vld [vmem:[%s113 + $0x198] sm:$0xff]
    %v1509 = vld [vmem:[%s113 + $0x1a0] sm:$0xff]
    %v1510 = vld [vmem:[%s113 + $0x1a8] sm:$0xff]
    %v1511 = vld [vmem:[%s113 + $0x1b0] sm:$0xff]
    %v1512 = vld [vmem:[%s113 + $0x1b8] sm:$0xff]
    %v1513 = vld [vmem:[%s113 + $0x1c0] sm:$0xff]
    %v1514 = vld [vmem:[%s113 + $0x1c8] sm:$0xff]
    %v1515 = vld [vmem:[%s113 + $0x1d0] sm:$0xff]
    %v1516 = vld [vmem:[%s113 + $0x1d8] sm:$0xff]
    %v1517 = vld [vmem:[%s113 + $0x1e0] sm:$0xff]
    %v1518 = vld [vmem:[%s113 + $0x1e8] sm:$0xff]
    %v1519 = vld [vmem:[%s113 + $0x1f0] sm:$0xff]
    %v1520 = vld [vmem:[%s113 + $0x1f8] sm:$0xff]
    %v1521 = vld [vmem:[%s113 + $0x200] sm:$0xff]
    %v1522 = vld [vmem:[%s113 + $0x208] sm:$0xff]
    %v1523 = vld [vmem:[%s113 + $0x210] sm:$0xff]
    %v1524 = vld [vmem:[%s113 + $0x218] sm:$0xff]
    %v1525 = vld [vmem:[%s113 + $0x220] sm:$0xff]
    %v1526 = vld [vmem:[%s113 + $0x228] sm:$0xff]
    %v1527 = vld [vmem:[%s113 + $0x230] sm:$0xff]
    %v1528 = vld [vmem:[%s113 + $0x238] sm:$0xff]
    %v1529 = vld [vmem:[%s113 + $0x240] sm:$0xff]
    %v1530 = vld [vmem:[%s113 + $0x248] sm:$0xff]
    %v1531 = vld [vmem:[%s113 + $0x250] sm:$0xff]
    %v1532 = vld [vmem:[%s113 + $0x258] sm:$0xff]
    %v1533 = vld [vmem:[%s113 + $0x260] sm:$0xff]
    %v1534 = vld [vmem:[%s113 + $0x268] sm:$0xff]
    %v1535 = vld [vmem:[%s113 + $0x270] sm:$0xff]
    %v1536 = vld [vmem:[%s113 + $0x278] sm:$0xff]
    %v1537 = vld [vmem:[%s113 + $0x280] sm:$0xff]
    %v1538 = vld [vmem:[%s113 + $0x288] sm:$0xff]
    %v1539 = vld [vmem:[%s113 + $0x290] sm:$0xff]
    %v1540 = vld [vmem:[%s113 + $0x298] sm:$0xff]
    %v1541 = vld [vmem:[%s113 + $0x2a0] sm:$0xff]
    %v1542 = vld [vmem:[%s113 + $0x2a8] sm:$0xff]
    %v1543 = vld [vmem:[%s113 + $0x2b0] sm:$0xff]
    %v1544 = vld [vmem:[%s113 + $0x2b8] sm:$0xff]
    %v1545 = vld [vmem:[%s113 + $0x2c0] sm:$0xff]
    %v1546 = vld [vmem:[%s113 + $0x2c8] sm:$0xff]
    %v1547 = vld [vmem:[%s113 + $0x2d0] sm:$0xff]
    %v1548 = vld [vmem:[%s113 + $0x2d8] sm:$0xff]
    %v1549 = vld [vmem:[%s113 + $0x2e0] sm:$0xff]
    %v1550 = vld [vmem:[%s113 + $0x2e8] sm:$0xff]
    %v1551 = vld [vmem:[%s113 + $0x2f0] sm:$0xff]
    %v1552 = vld [vmem:[%s113 + $0x2f8] sm:$0xff]
    %v1553 = vld [vmem:[%s113 + $0x300] sm:$0xff]
    %v1554 = vld [vmem:[%s113 + $0x308] sm:$0xff]
    %v1555 = vld [vmem:[%s113 + $0x310] sm:$0xff]
    %v1556 = vld [vmem:[%s113 + $0x318] sm:$0xff]
    %v1557 = vld [vmem:[%s113 + $0x320] sm:$0xff]
    %v1558 = vld [vmem:[%s113 + $0x328] sm:$0xff]
    %v1559 = vld [vmem:[%s113 + $0x330] sm:$0xff]
    %v1560 = vld [vmem:[%s113 + $0x338] sm:$0xff]
    %v1561 = vld [vmem:[%s113 + $0x340] sm:$0xff]
    %v1562 = vld [vmem:[%s113 + $0x348] sm:$0xff]
    %v1563 = vld [vmem:[%s113 + $0x350] sm:$0xff]
    %v1564 = vld [vmem:[%s113 + $0x358] sm:$0xff]
    %v1565 = vld [vmem:[%s113 + $0x360] sm:$0xff]
    %v1566 = vld [vmem:[%s113 + $0x368] sm:$0xff]
    %v1567 = vld [vmem:[%s113 + $0x370] sm:$0xff]
    %v1568 = vld [vmem:[%s113 + $0x378] sm:$0xff]
    %v1569 = vld [vmem:[%s113 + $0x380] sm:$0xff]
    %v1570 = vld [vmem:[%s113 + $0x388] sm:$0xff]
    %v1571 = vld [vmem:[%s113 + $0x390] sm:$0xff]
    %v1572 = vld [vmem:[%s113 + $0x398] sm:$0xff]
    %v1573 = vld [vmem:[%s113 + $0x3a0] sm:$0xff]
    %v1574 = vld [vmem:[%s113 + $0x3a8] sm:$0xff]
    %v1575 = vld [vmem:[%s113 + $0x3b0] sm:$0xff]
    %v1576 = vld [vmem:[%s113 + $0x3b8] sm:$0xff]
    %v1577 = vld [vmem:[%s113 + $0x3c0] sm:$0xff]
    %v1578 = vld [vmem:[%s113 + $0x3c8] sm:$0xff]
    %v1579 = vld [vmem:[%s113 + $0x3d0] sm:$0xff]
    %v1580 = vld [vmem:[%s113 + $0x3d8] sm:$0xff]
    %v1581 = vld [vmem:[%s113 + $0x3e0] sm:$0xff]
    %v1582 = vld [vmem:[%s113 + $0x3e8] sm:$0xff]
    %v1583 = vld [vmem:[%s113 + $0x3f0] sm:$0xff]
    %v1584 = vld [vmem:[%s113 + $0x3f8] sm:$0xff]
    %v1585 = vld [vmem:[%s113 + $0x400] sm:$0xff]
    %v1586 = vld [vmem:[%s113 + $0x408] sm:$0xff]
    %v1587 = vld [vmem:[%s113 + $0x410] sm:$0xff]
    %v1588 = vld [vmem:[%s113 + $0x418] sm:$0xff]
    %v1589 = vld [vmem:[%s113 + $0x420] sm:$0xff]
    %v1590 = vld [vmem:[%s113 + $0x428] sm:$0xff]
    %v1591 = vld [vmem:[%s113 + $0x430] sm:$0xff]
    %v1592 = vld [vmem:[%s113 + $0x438] sm:$0xff]
    %v1593 = vld [vmem:[%s113 + $0x440] sm:$0xff]
    %v1594 = vld [vmem:[%s113 + $0x448] sm:$0xff]
    %v1595 = vld [vmem:[%s113 + $0x450] sm:$0xff]
    %v1596 = vld [vmem:[%s113 + $0x458] sm:$0xff]
    %v1597 = vld [vmem:[%s113 + $0x460] sm:$0xff]
    %v1598 = vld [vmem:[%s113 + $0x468] sm:$0xff]
    %v1599 = vld [vmem:[%s113 + $0x470] sm:$0xff]
    %v1600 = vld [vmem:[%s113 + $0x478] sm:$0xff]
    %v1601 = vld [vmem:[%s113 + $0x480] sm:$0xff]
    %v1602 = vld [vmem:[%s113 + $0x488] sm:$0xff]
    %v1603 = vld [vmem:[%s113 + $0x490] sm:$0xff]
    %v1604 = vld [vmem:[%s113 + $0x498] sm:$0xff]
    %v1605 = vld [vmem:[%s113 + $0x4a0] sm:$0xff]
    %v1606 = vld [vmem:[%s113 + $0x4a8] sm:$0xff]
    %v1607 = vld [vmem:[%s113 + $0x4b0] sm:$0xff]
    %v1608 = vld [vmem:[%s113 + $0x4b8] sm:$0xff]
    %v1609 = vld [vmem:[%s113 + $0x4c0] sm:$0xff]
    %v1610 = vld [vmem:[%s113 + $0x4c8] sm:$0xff]
    %v1611 = vld [vmem:[%s113 + $0x4d0] sm:$0xff]
    %v1612 = vld [vmem:[%s113 + $0x4d8] sm:$0xff]
    %v1613 = vld [vmem:[%s113 + $0x4e0] sm:$0xff]
    %v1614 = vld [vmem:[%s113 + $0x4e8] sm:$0xff]
    %v1615 = vld [vmem:[%s113 + $0x4f0] sm:$0xff]
    %v1616 = vld [vmem:[%s113 + $0x4f8] sm:$0xff]
    %v1617 = vld [vmem:[%s113 + $0x500] sm:$0xff]
    %v1618 = vld [vmem:[%s113 + $0x508] sm:$0xff]
    %v1619 = vld [vmem:[%s113 + $0x510] sm:$0xff]
    %v1620 = vld [vmem:[%s113 + $0x518] sm:$0xff]
    %v1621 = vld [vmem:[%s113 + $0x520] sm:$0xff]
    %v1622 = vld [vmem:[%s113 + $0x528] sm:$0xff]
    %v1623 = vld [vmem:[%s113 + $0x530] sm:$0xff]
    %v1624 = vld [vmem:[%s113 + $0x538] sm:$0xff]
    %v1625 = vld [vmem:[%s113 + $0x540] sm:$0xff]
    %v1626 = vld [vmem:[%s113 + $0x548] sm:$0xff]
    %v1627 = vld [vmem:[%s113 + $0x550] sm:$0xff]
    %v1628 = vld [vmem:[%s113 + $0x558] sm:$0xff]
    %v1629 = vld [vmem:[%s113 + $0x560] sm:$0xff]
    %v1630 = vld [vmem:[%s113 + $0x568] sm:$0xff]
    %v1631 = vld [vmem:[%s113 + $0x570] sm:$0xff]
    %v1632 = vld [vmem:[%s113 + $0x578] sm:$0xff]
    %v1633 = vld [vmem:[%s113 + $0x580] sm:$0xff]
    %v1634 = vld [vmem:[%s113 + $0x588] sm:$0xff]
    %v1635 = vld [vmem:[%s113 + $0x590] sm:$0xff]
    %v1636 = vld [vmem:[%s113 + $0x598] sm:$0xff]
    %v1637 = vld [vmem:[%s113 + $0x5a0] sm:$0xff]
    %v1638 = vld [vmem:[%s113 + $0x5a8] sm:$0xff]
    %v1639 = vld [vmem:[%s113 + $0x5b0] sm:$0xff]
    %v1640 = vld [vmem:[%s113 + $0x5b8] sm:$0xff]
    %v1641 = vld [vmem:[%s113 + $0x5c0] sm:$0xff]
    %v1642 = vld [vmem:[%s113 + $0x5c8] sm:$0xff]
    %v1643 = vld [vmem:[%s113 + $0x5d0] sm:$0xff]
    %v1644 = vld [vmem:[%s113 + $0x5d8] sm:$0xff]
    %v1645 = vld [vmem:[%s113 + $0x5e0] sm:$0xff]
    %v1646 = vld [vmem:[%s113 + $0x5e8] sm:$0xff]
    %v1647 = vld [vmem:[%s113 + $0x5f0] sm:$0xff]
    %v1648 = vld [vmem:[%s113 + $0x5f8] sm:$0xff]
    %v1649 = vld [vmem:[%s113 + $0x600] sm:$0xff]
    %v1650 = vld [vmem:[%s113 + $0x608] sm:$0xff]
    %v1651 = vld [vmem:[%s113 + $0x610] sm:$0xff]
    %v1652 = vld [vmem:[%s113 + $0x618] sm:$0xff]
    %v1653 = vld [vmem:[%s113 + $0x620] sm:$0xff]
    %v1654 = vld [vmem:[%s113 + $0x628] sm:$0xff]
    %v1655 = vld [vmem:[%s113 + $0x630] sm:$0xff]
    %v1656 = vld [vmem:[%s113 + $0x638] sm:$0xff]
    %v1657 = vld [vmem:[%s113 + $0x640] sm:$0xff]
    %v1658 = vld [vmem:[%s113 + $0x648] sm:$0xff]
    %v1659 = vld [vmem:[%s113 + $0x650] sm:$0xff]
    %v1660 = vld [vmem:[%s113 + $0x658] sm:$0xff]
    %v1661 = vld [vmem:[%s113 + $0x660] sm:$0xff]
    %v1662 = vld [vmem:[%s113 + $0x668] sm:$0xff]
    %v1663 = vld [vmem:[%s113 + $0x670] sm:$0xff]
    %v1664 = vld [vmem:[%s113 + $0x678] sm:$0xff]
    %v1665 = vld [vmem:[%s113 + $0x680] sm:$0xff]
    %v1666 = vld [vmem:[%s113 + $0x688] sm:$0xff]
    %v1667 = vld [vmem:[%s113 + $0x690] sm:$0xff]
    %v1668 = vld [vmem:[%s113 + $0x698] sm:$0xff]
    %v1669 = vld [vmem:[%s113 + $0x6a0] sm:$0xff]
    %v1670 = vld [vmem:[%s113 + $0x6a8] sm:$0xff]
    %v1671 = vld [vmem:[%s113 + $0x6b0] sm:$0xff]
    %v1672 = vld [vmem:[%s113 + $0x6b8] sm:$0xff]
    %v1673 = vld [vmem:[%s113 + $0x6c0] sm:$0xff]
    %v1674 = vld [vmem:[%s113 + $0x6c8] sm:$0xff]
    %v1675 = vld [vmem:[%s113 + $0x6d0] sm:$0xff]
    %v1676 = vld [vmem:[%s113 + $0x6d8] sm:$0xff]
    %v1677 = vld [vmem:[%s113 + $0x6e0] sm:$0xff]
    %v1678 = vld [vmem:[%s113 + $0x6e8] sm:$0xff]
    %v1679 = vld [vmem:[%s113 + $0x6f0] sm:$0xff]
    %v1680 = vld [vmem:[%s113 + $0x6f8] sm:$0xff]
    %v1681 = vld [vmem:[%s113 + $0x700] sm:$0xff]
    %v1682 = vld [vmem:[%s113 + $0x708] sm:$0xff]
    %v1683 = vld [vmem:[%s113 + $0x710] sm:$0xff]
    %v1684 = vld [vmem:[%s113 + $0x718] sm:$0xff]
    %v1685 = vld [vmem:[%s113 + $0x720] sm:$0xff]
    %v1686 = vld [vmem:[%s113 + $0x728] sm:$0xff]
    %v1687 = vld [vmem:[%s113 + $0x730] sm:$0xff]
    %v1688 = vld [vmem:[%s113 + $0x738] sm:$0xff]
    %v1689 = vld [vmem:[%s113 + $0x740] sm:$0xff]
    %v1690 = vld [vmem:[%s113 + $0x748] sm:$0xff]
    %v1691 = vld [vmem:[%s113 + $0x750] sm:$0xff]
    %v1692 = vld [vmem:[%s113 + $0x758] sm:$0xff]
    %v1693 = vld [vmem:[%s113 + $0x760] sm:$0xff]
    %v1694 = vld [vmem:[%s113 + $0x768] sm:$0xff]
    %v1695 = vld [vmem:[%s113 + $0x770] sm:$0xff]
    %v1696 = vld [vmem:[%s113 + $0x778] sm:$0xff]
    %v1697 = vld [vmem:[%s113 + $0x780] sm:$0xff]
    %v1698 = vld [vmem:[%s113 + $0x788] sm:$0xff]
    %v1699 = vld [vmem:[%s113 + $0x790] sm:$0xff]
    %v1700 = vld [vmem:[%s113 + $0x798] sm:$0xff]
    %v1701 = vld [vmem:[%s113 + $0x7a0] sm:$0xff]
    %v1702 = vld [vmem:[%s113 + $0x7a8] sm:$0xff]
    %v1703 = vld [vmem:[%s113 + $0x7b0] sm:$0xff]
    %v1704 = vld [vmem:[%s113 + $0x7b8] sm:$0xff]
    %v1705 = vld [vmem:[%s113 + $0x7c0] sm:$0xff]
    %v1706 = vld [vmem:[%s113 + $0x7c8] sm:$0xff]
    %v1707 = vld [vmem:[%s113 + $0x7d0] sm:$0xff]
    %v1708 = vld [vmem:[%s113 + $0x7d8] sm:$0xff]
    %v1709 = vld [vmem:[%s113 + $0x7e0] sm:$0xff]
    %v1710 = vld [vmem:[%s113 + $0x7e8] sm:$0xff]
    %v1711 = vld [vmem:[%s113 + $0x7f0] sm:$0xff]
    %v1712 = vld [vmem:[%s113 + $0x7f8] sm:$0xff]
    %1713 = vmatprep.subr.bf16.mxu0 %v1458
    %1714 = vmatpush1.bf16.msra.mxu0 %v1457
    %1715 = vmatprep.subr.bf16.mxu0 %v1466
    %1716 = vmatpush1.bf16.msra.mxu0 %v1465
    %1717 = vmatprep.subr.bf16.mxu0 %v1474
    %1718 = vmatpush1.bf16.msra.mxu0 %v1473
    %1719 = vmatprep.subr.bf16.mxu0 %v1482
    %1720 = vmatpush1.bf16.msra.mxu0 %v1481
    %1721 = vmatprep.subr.bf16.mxu0 %v1490
    %1722 = vmatpush1.bf16.msra.mxu0 %v1489
    %1723 = vmatprep.subr.bf16.mxu0 %v1498
    %1724 = vmatpush1.bf16.msra.mxu0 %v1497
    %1725 = vmatprep.subr.bf16.mxu0 %v1506
    %1726 = vmatpush1.bf16.msra.mxu0 %v1505
    %1727 = vmatprep.subr.bf16.mxu0 %v1514
    %1728 = vmatpush1.bf16.msra.mxu0 %v1513
    %1729 = vmatprep.subr.bf16.mxu0 %v1522
    %1730 = vmatpush1.bf16.msra.mxu0 %v1521
    %1731 = vmatprep.subr.bf16.mxu0 %v1530
    %1732 = vmatpush1.bf16.msra.mxu0 %v1529
    %1733 = vmatprep.subr.bf16.mxu0 %v1538
    %1734 = vmatpush1.bf16.msra.mxu0 %v1537
    %1735 = vmatprep.subr.bf16.mxu0 %v1546
    %1736 = vmatpush1.bf16.msra.mxu0 %v1545
    %1737 = vmatprep.subr.bf16.mxu0 %v1554
    %1738 = vmatpush1.bf16.msra.mxu0 %v1553
    %1739 = vmatprep.subr.bf16.mxu0 %v1562
    %1740 = vmatpush1.bf16.msra.mxu0 %v1561
    %1741 = vmatprep.subr.bf16.mxu0 %v1570
    %1742 = vmatpush1.bf16.msra.mxu0 %v1569
    %1743 = vmatprep.subr.bf16.mxu0 %v1578
    %1744 = vmatpush1.bf16.msra.mxu0 %v1577
    %1745 = vmatprep.mubr.bf16.mxu0 %v274
    %1746 = vmatmul.mubr.bf16.gmra.mrb[0].mxu0 %v273
    %v1747 = vpop.f32.mrb[0].mxu0
    %v1748 = vadd.f32 0.0, %v1747
    %v1749 = vpop.f32.mrb[0].mxu0
    %v1750 = vadd.f32 0.0, %v1749
    %v1751 = vpop.f32.mrb[0].mxu0
    %v1752 = vpop.f32.mrb[0].mxu0
    %1753 = vdwg.mxu0
    %1754 = vmatprep.subr.bf16.mxu0 %v1586
    %1755 = vmatpush1.bf16.msra.mxu0 %v1585
    %1756 = vmatprep.subr.bf16.mxu0 %v1594
    %1757 = vmatpush1.bf16.msra.mxu0 %v1593
    %1758 = vmatprep.subr.bf16.mxu0 %v1602
    %1759 = vmatpush1.bf16.msra.mxu0 %v1601
    %1760 = vmatprep.subr.bf16.mxu0 %v1610
    %1761 = vmatpush1.bf16.msra.mxu0 %v1609
    %1762 = vmatprep.subr.bf16.mxu0 %v1618
    %1763 = vmatpush1.bf16.msra.mxu0 %v1617
    %1764 = vmatprep.subr.bf16.mxu0 %v1626
    %1765 = vmatpush1.bf16.msra.mxu0 %v1625
    %1766 = vmatprep.subr.bf16.mxu0 %v1634
    %1767 = vmatpush1.bf16.msra.mxu0 %v1633
    %1768 = vmatprep.subr.bf16.mxu0 %v1642
    %1769 = vmatpush1.bf16.msra.mxu0 %v1641
    %1770 = vmatprep.subr.bf16.mxu0 %v1650
    %1771 = vmatpush1.bf16.msra.mxu0 %v1649
    %1772 = vmatprep.subr.bf16.mxu0 %v1658
    %1773 = vmatpush1.bf16.msra.mxu0 %v1657
    %1774 = vmatprep.subr.bf16.mxu0 %v1666
    %1775 = vmatpush1.bf16.msra.mxu0 %v1665
    %1776 = vmatprep.subr.bf16.mxu0 %v1674
    %1777 = vmatpush1.bf16.msra.mxu0 %v1673
    %1778 = vmatprep.subr.bf16.mxu0 %v1682
    %1779 = vmatpush1.bf16.msra.mxu0 %v1681
    %1780 = vmatprep.subr.bf16.mxu0 %v1690
    %1781 = vmatpush1.bf16.msra.mxu0 %v1689
    %1782 = vmatprep.subr.bf16.mxu0 %v1698
    %1783 = vmatpush1.bf16.msra.mxu0 %v1697
    %1784 = vmatprep.subr.bf16.mxu0 %v1706
    %1785 = vmatpush1.bf16.msra.mxu0 %v1705
    %1786 = vmatprep.mubr.bf16.mxu0 %v276
    %1787 = vmatmul.mubr.bf16.gmra.mrb[0].mxu0 %v275
    %v1788 = vpop.f32.mrb[0].mxu0
    %v1789 = vadd.f32 %v1748, %v1788
    %v1790 = vpop.f32.mrb[0].mxu0
    %v1791 = vadd.f32 %v1750, %v1790
    %v1792 = vpop.f32.mrb[0].mxu0
    %v1793 = vpop.f32.mrb[0].mxu0
    %1794 = vdwg.mxu0
    %1795 = vmatprep.subr.bf16.mxu0 %v1460
    %1796 = vmatpush1.bf16.msra.mxu0 %v1459
    %1797 = vmatprep.subr.bf16.mxu0 %v1468
    %1798 = vmatpush1.bf16.msra.mxu0 %v1467
    %1799 = vmatprep.subr.bf16.mxu0 %v1476
    %1800 = vmatpush1.bf16.msra.mxu0 %v1475
    %1801 = vmatprep.subr.bf16.mxu0 %v1484
    %1802 = vmatpush1.bf16.msra.mxu0 %v1483
    %1803 = vmatprep.subr.bf16.mxu0 %v1492
    %1804 = vmatpush1.bf16.msra.mxu0 %v1491
    %1805 = vmatprep.subr.bf16.mxu0 %v1500
    %1806 = vmatpush1.bf16.msra.mxu0 %v1499
    %1807 = vmatprep.subr.bf16.mxu0 %v1508
    %1808 = vmatpush1.bf16.msra.mxu0 %v1507
    %1809 = vmatprep.subr.bf16.mxu0 %v1516
    %1810 = vmatpush1.bf16.msra.mxu0 %v1515
    %1811 = vmatprep.subr.bf16.mxu0 %v1524
    %1812 = vmatpush1.bf16.msra.mxu0 %v1523
    %1813 = vmatprep.subr.bf16.mxu0 %v1532
    %1814 = vmatpush1.bf16.msra.mxu0 %v1531
    %1815 = vmatprep.subr.bf16.mxu0 %v1540
    %1816 = vmatpush1.bf16.msra.mxu0 %v1539
    %1817 = vmatprep.subr.bf16.mxu0 %v1548
    %1818 = vmatpush1.bf16.msra.mxu0 %v1547
    %1819 = vmatprep.subr.bf16.mxu0 %v1556
    %1820 = vmatpush1.bf16.msra.mxu0 %v1555
    %1821 = vmatprep.subr.bf16.mxu0 %v1564
    %1822 = vmatpush1.bf16.msra.mxu0 %v1563
    %1823 = vmatprep.subr.bf16.mxu0 %v1572
    %1824 = vmatpush1.bf16.msra.mxu0 %v1571
    %1825 = vmatprep.subr.bf16.mxu0 %v1580
    %1826 = vmatpush1.bf16.msra.mxu0 %v1579
    %1827 = vmatprep.mubr.bf16.mxu0 %v274
    %1828 = vmatmul.mubr.bf16.gmra.mrb[0].mxu0 %v273
    %v1829 = vpop.f32.mrb[0].mxu0
    %v1830 = vadd.f32 0.0, %v1829
    %v1831 = vpop.f32.mrb[0].mxu0
    %v1832 = vadd.f32 0.0, %v1831
    %v1833 = vpop.f32.mrb[0].mxu0
    %v1834 = vpop.f32.mrb[0].mxu0
    %1835 = vdwg.mxu0
    %1836 = vmatprep.subr.bf16.mxu0 %v1588
    %1837 = vmatpush1.bf16.msra.mxu0 %v1587
    %1838 = vmatprep.subr.bf16.mxu0 %v1596
    %1839 = vmatpush1.bf16.msra.mxu0 %v1595
    %1840 = vmatprep.subr.bf16.mxu0 %v1604
    %1841 = vmatpush1.bf16.msra.mxu0 %v1603
    %1842 = vmatprep.subr.bf16.mxu0 %v1612
    %1843 = vmatpush1.bf16.msra.mxu0 %v1611
    %1844 = vmatprep.subr.bf16.mxu0 %v1620
    %1845 = vmatpush1.bf16.msra.mxu0 %v1619
    %1846 = vmatprep.subr.bf16.mxu0 %v1628
    %1847 = vmatpush1.bf16.msra.mxu0 %v1627
    %1848 = vmatprep.subr.bf16.mxu0 %v1636
    %1849 = vmatpush1.bf16.msra.mxu0 %v1635
    %1850 = vmatprep.subr.bf16.mxu0 %v1644
    %1851 = vmatpush1.bf16.msra.mxu0 %v1643
    %1852 = vmatprep.subr.bf16.mxu0 %v1652
    %1853 = vmatpush1.bf16.msra.mxu0 %v1651
    %1854 = vmatprep.subr.bf16.mxu0 %v1660
    %1855 = vmatpush1.bf16.msra.mxu0 %v1659
    %1856 = vmatprep.subr.bf16.mxu0 %v1668
    %1857 = vmatpush1.bf16.msra.mxu0 %v1667
    %1858 = vmatprep.subr.bf16.mxu0 %v1676
    %1859 = vmatpush1.bf16.msra.mxu0 %v1675
    %1860 = vmatprep.subr.bf16.mxu0 %v1684
    %1861 = vmatpush1.bf16.msra.mxu0 %v1683
    %1862 = vmatprep.subr.bf16.mxu0 %v1692
    %1863 = vmatpush1.bf16.msra.mxu0 %v1691
    %1864 = vmatprep.subr.bf16.mxu0 %v1700
    %1865 = vmatpush1.bf16.msra.mxu0 %v1699
    %1866 = vmatprep.subr.bf16.mxu0 %v1708
    %1867 = vmatpush1.bf16.msra.mxu0 %v1707
    %1868 = vmatprep.mubr.bf16.mxu0 %v276
    %1869 = vmatmul.mubr.bf16.gmra.mrb[0].mxu0 %v275
    %v1870 = vpop.f32.mrb[0].mxu0
    %v1871 = vadd.f32 %v1830, %v1870
    %v1872 = vpop.f32.mrb[0].mxu0
    %v1873 = vadd.f32 %v1832, %v1872
    %v1874 = vpop.f32.mrb[0].mxu0
    %v1875 = vpop.f32.mrb[0].mxu0
    %1876 = vdwg.mxu0
    %1877 = vmatprep.subr.bf16.mxu0 %v1462
    %1878 = vmatpush1.bf16.msra.mxu0 %v1461
    %1879 = vmatprep.subr.bf16.mxu0 %v1470
    %1880 = vmatpush1.bf16.msra.mxu0 %v1469
    %1881 = vmatprep.subr.bf16.mxu0 %v1478
    %1882 = vmatpush1.bf16.msra.mxu0 %v1477
    %1883 = vmatprep.subr.bf16.mxu0 %v1486
    %1884 = vmatpush1.bf16.msra.mxu0 %v1485
    %1885 = vmatprep.subr.bf16.mxu0 %v1494
    %1886 = vmatpush1.bf16.msra.mxu0 %v1493
    %1887 = vmatprep.subr.bf16.mxu0 %v1502
    %1888 = vmatpush1.bf16.msra.mxu0 %v1501
    %1889 = vmatprep.subr.bf16.mxu0 %v1510
    %1890 = vmatpush1.bf16.msra.mxu0 %v1509
    %1891 = vmatprep.subr.bf16.mxu0 %v1518
    %1892 = vmatpush1.bf16.msra.mxu0 %v1517
    %1893 = vmatprep.subr.bf16.mxu0 %v1526
    %1894 = vmatpush1.bf16.msra.mxu0 %v1525
    %1895 = vmatprep.subr.bf16.mxu0 %v1534
    %1896 = vmatpush1.bf16.msra.mxu0 %v1533
    %1897 = vmatprep.subr.bf16.mxu0 %v1542
    %1898 = vmatpush1.bf16.msra.mxu0 %v1541
    %1899 = vmatprep.subr.bf16.mxu0 %v1550
    %1900 = vmatpush1.bf16.msra.mxu0 %v1549
    %1901 = vmatprep.subr.bf16.mxu0 %v1558
    %1902 = vmatpush1.bf16.msra.mxu0 %v1557
    %1903 = vmatprep.subr.bf16.mxu0 %v1566
    %1904 = vmatpush1.bf16.msra.mxu0 %v1565
    %1905 = vmatprep.subr.bf16.mxu0 %v1574
    %1906 = vmatpush1.bf16.msra.mxu0 %v1573
    %1907 = vmatprep.subr.bf16.mxu0 %v1582
    %1908 = vmatpush1.bf16.msra.mxu0 %v1581
    %1909 = vmatprep.mubr.bf16.mxu0 %v274
    %1910 = vmatmul.mubr.bf16.gmra.mrb[0].mxu0 %v273
    %v1911 = vpop.f32.mrb[0].mxu0
    %v1912 = vadd.f32 0.0, %v1911
    %v1913 = vpop.f32.mrb[0].mxu0
    %v1914 = vadd.f32 0.0, %v1913
    %v1915 = vpop.f32.mrb[0].mxu0
    %v1916 = vpop.f32.mrb[0].mxu0
    %1917 = vdwg.mxu0
    %1918 = vmatprep.subr.bf16.mxu0 %v1590
    %1919 = vmatpush1.bf16.msra.mxu0 %v1589
    %1920 = vmatprep.subr.bf16.mxu0 %v1598
    %1921 = vmatpush1.bf16.msra.mxu0 %v1597
    %1922 = vmatprep.subr.bf16.mxu0 %v1606
    %1923 = vmatpush1.bf16.msra.mxu0 %v1605
    %1924 = vmatprep.subr.bf16.mxu0 %v1614
    %1925 = vmatpush1.bf16.msra.mxu0 %v1613
    %1926 = vmatprep.subr.bf16.mxu0 %v1622
    %1927 = vmatpush1.bf16.msra.mxu0 %v1621
    %1928 = vmatprep.subr.bf16.mxu0 %v1630
    %1929 = vmatpush1.bf16.msra.mxu0 %v1629
    %1930 = vmatprep.subr.bf16.mxu0 %v1638
    %1931 = vmatpush1.bf16.msra.mxu0 %v1637
    %1932 = vmatprep.subr.bf16.mxu0 %v1646
    %1933 = vmatpush1.bf16.msra.mxu0 %v1645
    %1934 = vmatprep.subr.bf16.mxu0 %v1654
    %1935 = vmatpush1.bf16.msra.mxu0 %v1653
    %1936 = vmatprep.subr.bf16.mxu0 %v1662
    %1937 = vmatpush1.bf16.msra.mxu0 %v1661
    %1938 = vmatprep.subr.bf16.mxu0 %v1670
    %1939 = vmatpush1.bf16.msra.mxu0 %v1669
    %1940 = vmatprep.subr.bf16.mxu0 %v1678
    %1941 = vmatpush1.bf16.msra.mxu0 %v1677
    %1942 = vmatprep.subr.bf16.mxu0 %v1686
    %1943 = vmatpush1.bf16.msra.mxu0 %v1685
    %1944 = vmatprep.subr.bf16.mxu0 %v1694
    %1945 = vmatpush1.bf16.msra.mxu0 %v1693
    %1946 = vmatprep.subr.bf16.mxu0 %v1702
    %1947 = vmatpush1.bf16.msra.mxu0 %v1701
    %1948 = vmatprep.subr.bf16.mxu0 %v1710
    %1949 = vmatpush1.bf16.msra.mxu0 %v1709
    %1950 = vmatprep.mubr.bf16.mxu0 %v276
    %1951 = vmatmul.mubr.bf16.gmra.mrb[0].mxu0 %v275
    %v1952 = vpop.f32.mrb[0].mxu0
    %v1953 = vadd.f32 %v1912, %v1952
    %v1954 = vpop.f32.mrb[0].mxu0
    %v1955 = vadd.f32 %v1914, %v1954
    %v1956 = vpop.f32.mrb[0].mxu0
    %v1957 = vpop.f32.mrb[0].mxu0
    %1958 = vdwg.mxu0
    %1959 = vmatprep.subr.bf16.mxu0 %v1464
    %1960 = vmatpush1.bf16.msra.mxu0 %v1463
    %1961 = vmatprep.subr.bf16.mxu0 %v1472
    %1962 = vmatpush1.bf16.msra.mxu0 %v1471
    %1963 = vmatprep.subr.bf16.mxu0 %v1480
    %1964 = vmatpush1.bf16.msra.mxu0 %v1479
    %1965 = vmatprep.subr.bf16.mxu0 %v1488
    %1966 = vmatpush1.bf16.msra.mxu0 %v1487
    %1967 = vmatprep.subr.bf16.mxu0 %v1496
    %1968 = vmatpush1.bf16.msra.mxu0 %v1495
    %1969 = vmatprep.subr.bf16.mxu0 %v1504
    %1970 = vmatpush1.bf16.msra.mxu0 %v1503
    %1971 = vmatprep.subr.bf16.mxu0 %v1512
    %1972 = vmatpush1.bf16.msra.mxu0 %v1511
    %1973 = vmatprep.subr.bf16.mxu0 %v1520
    %1974 = vmatpush1.bf16.msra.mxu0 %v1519
    %1975 = vmatprep.subr.bf16.mxu0 %v1528
    %1976 = vmatpush1.bf16.msra.mxu0 %v1527
    %1977 = vmatprep.subr.bf16.mxu0 %v1536
    %1978 = vmatpush1.bf16.msra.mxu0 %v1535
    %1979 = vmatprep.subr.bf16.mxu0 %v1544
    %1980 = vmatpush1.bf16.msra.mxu0 %v1543
    %1981 = vmatprep.subr.bf16.mxu0 %v1552
    %1982 = vmatpush1.bf16.msra.mxu0 %v1551
    %1983 = vmatprep.subr.bf16.mxu0 %v1560
    %1984 = vmatpush1.bf16.msra.mxu0 %v1559
    %1985 = vmatprep.subr.bf16.mxu0 %v1568
    %1986 = vmatpush1.bf16.msra.mxu0 %v1567
    %1987 = vmatprep.subr.bf16.mxu0 %v1576
    %1988 = vmatpush1.bf16.msra.mxu0 %v1575
    %1989 = vmatprep.subr.bf16.mxu0 %v1584
    %1990 = vmatpush1.bf16.msra.mxu0 %v1583
    %1991 = vmatprep.mubr.bf16.mxu0 %v274
    %1992 = vmatmul.mubr.bf16.gmra.mrb[0].mxu0 %v273
    %v1993 = vpop.f32.mrb[0].mxu0
    %v1994 = vadd.f32 0.0, %v1993
    %v1995 = vpop.f32.mrb[0].mxu0
    %v1996 = vadd.f32 0.0, %v1995
    %v1997 = vpop.f32.mrb[0].mxu0
    %v1998 = vpop.f32.mrb[0].mxu0
    %1999 = vdwg.mxu0
    %2000 = vmatprep.subr.bf16.mxu0 %v1592
    %2001 = vmatpush1.bf16.msra.mxu0 %v1591
    %2002 = vmatprep.subr.bf16.mxu0 %v1600
    %2003 = vmatpush1.bf16.msra.mxu0 %v1599
    %2004 = vmatprep.subr.bf16.mxu0 %v1608
    %2005 = vmatpush1.bf16.msra.mxu0 %v1607
    %2006 = vmatprep.subr.bf16.mxu0 %v1616
    %2007 = vmatpush1.bf16.msra.mxu0 %v1615
    %2008 = vmatprep.subr.bf16.mxu0 %v1624
    %2009 = vmatpush1.bf16.msra.mxu0 %v1623
    %2010 = vmatprep.subr.bf16.mxu0 %v1632
    %2011 = vmatpush1.bf16.msra.mxu0 %v1631
    %2012 = vmatprep.subr.bf16.mxu0 %v1640
    %2013 = vmatpush1.bf16.msra.mxu0 %v1639
    %2014 = vmatprep.subr.bf16.mxu0 %v1648
    %2015 = vmatpush1.bf16.msra.mxu0 %v1647
    %2016 = vmatprep.subr.bf16.mxu0 %v1656
    %2017 = vmatpush1.bf16.msra.mxu0 %v1655
    %2018 = vmatprep.subr.bf16.mxu0 %v1664
    %2019 = vmatpush1.bf16.msra.mxu0 %v1663
    %2020 = vmatprep.subr.bf16.mxu0 %v1672
    %2021 = vmatpush1.bf16.msra.mxu0 %v1671
    %2022 = vmatprep.subr.bf16.mxu0 %v1680
    %2023 = vmatpush1.bf16.msra.mxu0 %v1679
    %2024 = vmatprep.subr.bf16.mxu0 %v1688
    %2025 = vmatpush1.bf16.msra.mxu0 %v1687
    %2026 = vmatprep.subr.bf16.mxu0 %v1696
    %2027 = vmatpush1.bf16.msra.mxu0 %v1695
    %2028 = vmatprep.subr.bf16.mxu0 %v1704
    %2029 = vmatpush1.bf16.msra.mxu0 %v1703
    %2030 = vmatprep.subr.bf16.mxu0 %v1712
    %2031 = vmatpush1.bf16.msra.mxu0 %v1711
    %2032 = vmatprep.mubr.bf16.mxu0 %v276
    %2033 = vmatmul.mubr.bf16.gmra.mrb[0].mxu0 %v275
    %v2034 = vpop.f32.mrb[0].mxu0
    %v2035 = vadd.f32 %v1994, %v2034
    %v2036 = vpop.f32.mrb[0].mxu0
    %v2037 = vadd.f32 %v1996, %v2036
    %v2038 = vpop.f32.mrb[0].mxu0
    %v2039 = vpop.f32.mrb[0].mxu0
    %2040 = vdwg.mxu0
    %v2041 = vadd.f32 %v1203, %v1789
    %v2042 = vadd.f32 %v1205, %v1791
    %v2043 = vadd.f32 %v1285, %v1871
    %v2044 = vadd.f32 %v1287, %v1873
    %v2045 = vadd.f32 %v1367, %v1953
    %v2046 = vadd.f32 %v1369, %v1955
    %v2047 = vadd.f32 %v1449, %v2035
    %v2048 = vadd.f32 %v1451, %v2037
    %s2049 = sshll.u32 %s282, 4
    %2050 = dma.done %s151, %s2049
    %v2051 = vld [vmem:[%s150] sm:$0xff]
    %v2052 = vld [vmem:[%s150 + $0x8] sm:$0xff]
    %v2053 = vld [vmem:[%s150 + $0x10] sm:$0xff]
    %v2054 = vld [vmem:[%s150 + $0x18] sm:$0xff]
    %v2055 = vld [vmem:[%s150 + $0x20] sm:$0xff]
    %v2056 = vld [vmem:[%s150 + $0x28] sm:$0xff]
    %v2057 = vld [vmem:[%s150 + $0x30] sm:$0xff]
    %v2058 = vld [vmem:[%s150 + $0x38] sm:$0xff]
    %v2059 = vld [vmem:[%s150 + $0x40] sm:$0xff]
    %v2060 = vld [vmem:[%s150 + $0x48] sm:$0xff]
    %v2061 = vld [vmem:[%s150 + $0x50] sm:$0xff]
    %v2062 = vld [vmem:[%s150 + $0x58] sm:$0xff]
    %v2063 = vld [vmem:[%s150 + $0x60] sm:$0xff]
    %v2064 = vld [vmem:[%s150 + $0x68] sm:$0xff]
    %v2065 = vld [vmem:[%s150 + $0x70] sm:$0xff]
    %v2066 = vld [vmem:[%s150 + $0x78] sm:$0xff]
    %v2067 = vld [vmem:[%s150 + $0x80] sm:$0xff]
    %v2068 = vld [vmem:[%s150 + $0x88] sm:$0xff]
    %v2069 = vld [vmem:[%s150 + $0x90] sm:$0xff]
    %v2070 = vld [vmem:[%s150 + $0x98] sm:$0xff]
    %v2071 = vld [vmem:[%s150 + $0xa0] sm:$0xff]
    %v2072 = vld [vmem:[%s150 + $0xa8] sm:$0xff]
    %v2073 = vld [vmem:[%s150 + $0xb0] sm:$0xff]
    %v2074 = vld [vmem:[%s150 + $0xb8] sm:$0xff]
    %v2075 = vld [vmem:[%s150 + $0xc0] sm:$0xff]
    %v2076 = vld [vmem:[%s150 + $0xc8] sm:$0xff]
    %v2077 = vld [vmem:[%s150 + $0xd0] sm:$0xff]
    %v2078 = vld [vmem:[%s150 + $0xd8] sm:$0xff]
    %v2079 = vld [vmem:[%s150 + $0xe0] sm:$0xff]
    %v2080 = vld [vmem:[%s150 + $0xe8] sm:$0xff]
    %v2081 = vld [vmem:[%s150 + $0xf0] sm:$0xff]
    %v2082 = vld [vmem:[%s150 + $0xf8] sm:$0xff]
    %v2083 = vld [vmem:[%s150 + $0x100] sm:$0xff]
    %v2084 = vld [vmem:[%s150 + $0x108] sm:$0xff]
    %v2085 = vld [vmem:[%s150 + $0x110] sm:$0xff]
    %v2086 = vld [vmem:[%s150 + $0x118] sm:$0xff]
    %v2087 = vld [vmem:[%s150 + $0x120] sm:$0xff]
    %v2088 = vld [vmem:[%s150 + $0x128] sm:$0xff]
    %v2089 = vld [vmem:[%s150 + $0x130] sm:$0xff]
    %v2090 = vld [vmem:[%s150 + $0x138] sm:$0xff]
    %v2091 = vld [vmem:[%s150 + $0x140] sm:$0xff]
    %v2092 = vld [vmem:[%s150 + $0x148] sm:$0xff]
    %v2093 = vld [vmem:[%s150 + $0x150] sm:$0xff]
    %v2094 = vld [vmem:[%s150 + $0x158] sm:$0xff]
    %v2095 = vld [vmem:[%s150 + $0x160] sm:$0xff]
    %v2096 = vld [vmem:[%s150 + $0x168] sm:$0xff]
    %v2097 = vld [vmem:[%s150 + $0x170] sm:$0xff]
    %v2098 = vld [vmem:[%s150 + $0x178] sm:$0xff]
    %v2099 = vld [vmem:[%s150 + $0x180] sm:$0xff]
    %v2100 = vld [vmem:[%s150 + $0x188] sm:$0xff]
    %v2101 = vld [vmem:[%s150 + $0x190] sm:$0xff]
    %v2102 = vld [vmem:[%s150 + $0x198] sm:$0xff]
    %v2103 = vld [vmem:[%s150 + $0x1a0] sm:$0xff]
    %v2104 = vld [vmem:[%s150 + $0x1a8] sm:$0xff]
    %v2105 = vld [vmem:[%s150 + $0x1b0] sm:$0xff]
    %v2106 = vld [vmem:[%s150 + $0x1b8] sm:$0xff]
    %v2107 = vld [vmem:[%s150 + $0x1c0] sm:$0xff]
    %v2108 = vld [vmem:[%s150 + $0x1c8] sm:$0xff]
    %v2109 = vld [vmem:[%s150 + $0x1d0] sm:$0xff]
    %v2110 = vld [vmem:[%s150 + $0x1d8] sm:$0xff]
    %v2111 = vld [vmem:[%s150 + $0x1e0] sm:$0xff]
    %v2112 = vld [vmem:[%s150 + $0x1e8] sm:$0xff]
    %v2113 = vld [vmem:[%s150 + $0x1f0] sm:$0xff]
    %v2114 = vld [vmem:[%s150 + $0x1f8] sm:$0xff]
    %v2115 = vld [vmem:[%s150 + $0x200] sm:$0xff]
    %v2116 = vld [vmem:[%s150 + $0x208] sm:$0xff]
    %v2117 = vld [vmem:[%s150 + $0x210] sm:$0xff]
    %v2118 = vld [vmem:[%s150 + $0x218] sm:$0xff]
    %v2119 = vld [vmem:[%s150 + $0x220] sm:$0xff]
    %v2120 = vld [vmem:[%s150 + $0x228] sm:$0xff]
    %v2121 = vld [vmem:[%s150 + $0x230] sm:$0xff]
    %v2122 = vld [vmem:[%s150 + $0x238] sm:$0xff]
    %v2123 = vld [vmem:[%s150 + $0x240] sm:$0xff]
    %v2124 = vld [vmem:[%s150 + $0x248] sm:$0xff]
    %v2125 = vld [vmem:[%s150 + $0x250] sm:$0xff]
    %v2126 = vld [vmem:[%s150 + $0x258] sm:$0xff]
    %v2127 = vld [vmem:[%s150 + $0x260] sm:$0xff]
    %v2128 = vld [vmem:[%s150 + $0x268] sm:$0xff]
    %v2129 = vld [vmem:[%s150 + $0x270] sm:$0xff]
    %v2130 = vld [vmem:[%s150 + $0x278] sm:$0xff]
    %v2131 = vld [vmem:[%s150 + $0x280] sm:$0xff]
    %v2132 = vld [vmem:[%s150 + $0x288] sm:$0xff]
    %v2133 = vld [vmem:[%s150 + $0x290] sm:$0xff]
    %v2134 = vld [vmem:[%s150 + $0x298] sm:$0xff]
    %v2135 = vld [vmem:[%s150 + $0x2a0] sm:$0xff]
    %v2136 = vld [vmem:[%s150 + $0x2a8] sm:$0xff]
    %v2137 = vld [vmem:[%s150 + $0x2b0] sm:$0xff]
    %v2138 = vld [vmem:[%s150 + $0x2b8] sm:$0xff]
    %v2139 = vld [vmem:[%s150 + $0x2c0] sm:$0xff]
    %v2140 = vld [vmem:[%s150 + $0x2c8] sm:$0xff]
    %v2141 = vld [vmem:[%s150 + $0x2d0] sm:$0xff]
    %v2142 = vld [vmem:[%s150 + $0x2d8] sm:$0xff]
    %v2143 = vld [vmem:[%s150 + $0x2e0] sm:$0xff]
    %v2144 = vld [vmem:[%s150 + $0x2e8] sm:$0xff]
    %v2145 = vld [vmem:[%s150 + $0x2f0] sm:$0xff]
    %v2146 = vld [vmem:[%s150 + $0x2f8] sm:$0xff]
    %v2147 = vld [vmem:[%s150 + $0x300] sm:$0xff]
    %v2148 = vld [vmem:[%s150 + $0x308] sm:$0xff]
    %v2149 = vld [vmem:[%s150 + $0x310] sm:$0xff]
    %v2150 = vld [vmem:[%s150 + $0x318] sm:$0xff]
    %v2151 = vld [vmem:[%s150 + $0x320] sm:$0xff]
    %v2152 = vld [vmem:[%s150 + $0x328] sm:$0xff]
    %v2153 = vld [vmem:[%s150 + $0x330] sm:$0xff]
    %v2154 = vld [vmem:[%s150 + $0x338] sm:$0xff]
    %v2155 = vld [vmem:[%s150 + $0x340] sm:$0xff]
    %v2156 = vld [vmem:[%s150 + $0x348] sm:$0xff]
    %v2157 = vld [vmem:[%s150 + $0x350] sm:$0xff]
    %v2158 = vld [vmem:[%s150 + $0x358] sm:$0xff]
    %v2159 = vld [vmem:[%s150 + $0x360] sm:$0xff]
    %v2160 = vld [vmem:[%s150 + $0x368] sm:$0xff]
    %v2161 = vld [vmem:[%s150 + $0x370] sm:$0xff]
    %v2162 = vld [vmem:[%s150 + $0x378] sm:$0xff]
    %v2163 = vld [vmem:[%s150 + $0x380] sm:$0xff]
    %v2164 = vld [vmem:[%s150 + $0x388] sm:$0xff]
    %v2165 = vld [vmem:[%s150 + $0x390] sm:$0xff]
    %v2166 = vld [vmem:[%s150 + $0x398] sm:$0xff]
    %v2167 = vld [vmem:[%s150 + $0x3a0] sm:$0xff]
    %v2168 = vld [vmem:[%s150 + $0x3a8] sm:$0xff]
    %v2169 = vld [vmem:[%s150 + $0x3b0] sm:$0xff]
    %v2170 = vld [vmem:[%s150 + $0x3b8] sm:$0xff]
    %v2171 = vld [vmem:[%s150 + $0x3c0] sm:$0xff]
    %v2172 = vld [vmem:[%s150 + $0x3c8] sm:$0xff]
    %v2173 = vld [vmem:[%s150 + $0x3d0] sm:$0xff]
    %v2174 = vld [vmem:[%s150 + $0x3d8] sm:$0xff]
    %v2175 = vld [vmem:[%s150 + $0x3e0] sm:$0xff]
    %v2176 = vld [vmem:[%s150 + $0x3e8] sm:$0xff]
    %v2177 = vld [vmem:[%s150 + $0x3f0] sm:$0xff]
    %v2178 = vld [vmem:[%s150 + $0x3f8] sm:$0xff]
    %v2179 = vld [vmem:[%s150 + $0x400] sm:$0xff]
    %v2180 = vld [vmem:[%s150 + $0x408] sm:$0xff]
    %v2181 = vld [vmem:[%s150 + $0x410] sm:$0xff]
    %v2182 = vld [vmem:[%s150 + $0x418] sm:$0xff]
    %v2183 = vld [vmem:[%s150 + $0x420] sm:$0xff]
    %v2184 = vld [vmem:[%s150 + $0x428] sm:$0xff]
    %v2185 = vld [vmem:[%s150 + $0x430] sm:$0xff]
    %v2186 = vld [vmem:[%s150 + $0x438] sm:$0xff]
    %v2187 = vld [vmem:[%s150 + $0x440] sm:$0xff]
    %v2188 = vld [vmem:[%s150 + $0x448] sm:$0xff]
    %v2189 = vld [vmem:[%s150 + $0x450] sm:$0xff]
    %v2190 = vld [vmem:[%s150 + $0x458] sm:$0xff]
    %v2191 = vld [vmem:[%s150 + $0x460] sm:$0xff]
    %v2192 = vld [vmem:[%s150 + $0x468] sm:$0xff]
    %v2193 = vld [vmem:[%s150 + $0x470] sm:$0xff]
    %v2194 = vld [vmem:[%s150 + $0x478] sm:$0xff]
    %v2195 = vld [vmem:[%s150 + $0x480] sm:$0xff]
    %v2196 = vld [vmem:[%s150 + $0x488] sm:$0xff]
    %v2197 = vld [vmem:[%s150 + $0x490] sm:$0xff]
    %v2198 = vld [vmem:[%s150 + $0x498] sm:$0xff]
    %v2199 = vld [vmem:[%s150 + $0x4a0] sm:$0xff]
    %v2200 = vld [vmem:[%s150 + $0x4a8] sm:$0xff]
    %v2201 = vld [vmem:[%s150 + $0x4b0] sm:$0xff]
    %v2202 = vld [vmem:[%s150 + $0x4b8] sm:$0xff]
    %v2203 = vld [vmem:[%s150 + $0x4c0] sm:$0xff]
    %v2204 = vld [vmem:[%s150 + $0x4c8] sm:$0xff]
    %v2205 = vld [vmem:[%s150 + $0x4d0] sm:$0xff]
    %v2206 = vld [vmem:[%s150 + $0x4d8] sm:$0xff]
    %v2207 = vld [vmem:[%s150 + $0x4e0] sm:$0xff]
    %v2208 = vld [vmem:[%s150 + $0x4e8] sm:$0xff]
    %v2209 = vld [vmem:[%s150 + $0x4f0] sm:$0xff]
    %v2210 = vld [vmem:[%s150 + $0x4f8] sm:$0xff]
    %v2211 = vld [vmem:[%s150 + $0x500] sm:$0xff]
    %v2212 = vld [vmem:[%s150 + $0x508] sm:$0xff]
    %v2213 = vld [vmem:[%s150 + $0x510] sm:$0xff]
    %v2214 = vld [vmem:[%s150 + $0x518] sm:$0xff]
    %v2215 = vld [vmem:[%s150 + $0x520] sm:$0xff]
    %v2216 = vld [vmem:[%s150 + $0x528] sm:$0xff]
    %v2217 = vld [vmem:[%s150 + $0x530] sm:$0xff]
    %v2218 = vld [vmem:[%s150 + $0x538] sm:$0xff]
    %v2219 = vld [vmem:[%s150 + $0x540] sm:$0xff]
    %v2220 = vld [vmem:[%s150 + $0x548] sm:$0xff]
    %v2221 = vld [vmem:[%s150 + $0x550] sm:$0xff]
    %v2222 = vld [vmem:[%s150 + $0x558] sm:$0xff]
    %v2223 = vld [vmem:[%s150 + $0x560] sm:$0xff]
    %v2224 = vld [vmem:[%s150 + $0x568] sm:$0xff]
    %v2225 = vld [vmem:[%s150 + $0x570] sm:$0xff]
    %v2226 = vld [vmem:[%s150 + $0x578] sm:$0xff]
    %v2227 = vld [vmem:[%s150 + $0x580] sm:$0xff]
    %v2228 = vld [vmem:[%s150 + $0x588] sm:$0xff]
    %v2229 = vld [vmem:[%s150 + $0x590] sm:$0xff]
    %v2230 = vld [vmem:[%s150 + $0x598] sm:$0xff]
    %v2231 = vld [vmem:[%s150 + $0x5a0] sm:$0xff]
    %v2232 = vld [vmem:[%s150 + $0x5a8] sm:$0xff]
    %v2233 = vld [vmem:[%s150 + $0x5b0] sm:$0xff]
    %v2234 = vld [vmem:[%s150 + $0x5b8] sm:$0xff]
    %v2235 = vld [vmem:[%s150 + $0x5c0] sm:$0xff]
    %v2236 = vld [vmem:[%s150 + $0x5c8] sm:$0xff]
    %v2237 = vld [vmem:[%s150 + $0x5d0] sm:$0xff]
    %v2238 = vld [vmem:[%s150 + $0x5d8] sm:$0xff]
    %v2239 = vld [vmem:[%s150 + $0x5e0] sm:$0xff]
    %v2240 = vld [vmem:[%s150 + $0x5e8] sm:$0xff]
    %v2241 = vld [vmem:[%s150 + $0x5f0] sm:$0xff]
    %v2242 = vld [vmem:[%s150 + $0x5f8] sm:$0xff]
    %v2243 = vld [vmem:[%s150 + $0x600] sm:$0xff]
    %v2244 = vld [vmem:[%s150 + $0x608] sm:$0xff]
    %v2245 = vld [vmem:[%s150 + $0x610] sm:$0xff]
    %v2246 = vld [vmem:[%s150 + $0x618] sm:$0xff]
    %v2247 = vld [vmem:[%s150 + $0x620] sm:$0xff]
    %v2248 = vld [vmem:[%s150 + $0x628] sm:$0xff]
    %v2249 = vld [vmem:[%s150 + $0x630] sm:$0xff]
    %v2250 = vld [vmem:[%s150 + $0x638] sm:$0xff]
    %v2251 = vld [vmem:[%s150 + $0x640] sm:$0xff]
    %v2252 = vld [vmem:[%s150 + $0x648] sm:$0xff]
    %v2253 = vld [vmem:[%s150 + $0x650] sm:$0xff]
    %v2254 = vld [vmem:[%s150 + $0x658] sm:$0xff]
    %v2255 = vld [vmem:[%s150 + $0x660] sm:$0xff]
    %v2256 = vld [vmem:[%s150 + $0x668] sm:$0xff]
    %v2257 = vld [vmem:[%s150 + $0x670] sm:$0xff]
    %v2258 = vld [vmem:[%s150 + $0x678] sm:$0xff]
    %v2259 = vld [vmem:[%s150 + $0x680] sm:$0xff]
    %v2260 = vld [vmem:[%s150 + $0x688] sm:$0xff]
    %v2261 = vld [vmem:[%s150 + $0x690] sm:$0xff]
    %v2262 = vld [vmem:[%s150 + $0x698] sm:$0xff]
    %v2263 = vld [vmem:[%s150 + $0x6a0] sm:$0xff]
    %v2264 = vld [vmem:[%s150 + $0x6a8] sm:$0xff]
    %v2265 = vld [vmem:[%s150 + $0x6b0] sm:$0xff]
    %v2266 = vld [vmem:[%s150 + $0x6b8] sm:$0xff]
    %v2267 = vld [vmem:[%s150 + $0x6c0] sm:$0xff]
    %v2268 = vld [vmem:[%s150 + $0x6c8] sm:$0xff]
    %v2269 = vld [vmem:[%s150 + $0x6d0] sm:$0xff]
    %v2270 = vld [vmem:[%s150 + $0x6d8] sm:$0xff]
    %v2271 = vld [vmem:[%s150 + $0x6e0] sm:$0xff]
    %v2272 = vld [vmem:[%s150 + $0x6e8] sm:$0xff]
    %v2273 = vld [vmem:[%s150 + $0x6f0] sm:$0xff]
    %v2274 = vld [vmem:[%s150 + $0x6f8] sm:$0xff]
    %v2275 = vld [vmem:[%s150 + $0x700] sm:$0xff]
    %v2276 = vld [vmem:[%s150 + $0x708] sm:$0xff]
    %v2277 = vld [vmem:[%s150 + $0x710] sm:$0xff]
    %v2278 = vld [vmem:[%s150 + $0x718] sm:$0xff]
    %v2279 = vld [vmem:[%s150 + $0x720] sm:$0xff]
    %v2280 = vld [vmem:[%s150 + $0x728] sm:$0xff]
    %v2281 = vld [vmem:[%s150 + $0x730] sm:$0xff]
    %v2282 = vld [vmem:[%s150 + $0x738] sm:$0xff]
    %v2283 = vld [vmem:[%s150 + $0x740] sm:$0xff]
    %v2284 = vld [vmem:[%s150 + $0x748] sm:$0xff]
    %v2285 = vld [vmem:[%s150 + $0x750] sm:$0xff]
    %v2286 = vld [vmem:[%s150 + $0x758] sm:$0xff]
    %v2287 = vld [vmem:[%s150 + $0x760] sm:$0xff]
    %v2288 = vld [vmem:[%s150 + $0x768] sm:$0xff]
    %v2289 = vld [vmem:[%s150 + $0x770] sm:$0xff]
    %v2290 = vld [vmem:[%s150 + $0x778] sm:$0xff]
    %v2291 = vld [vmem:[%s150 + $0x780] sm:$0xff]
    %v2292 = vld [vmem:[%s150 + $0x788] sm:$0xff]
    %v2293 = vld [vmem:[%s150 + $0x790] sm:$0xff]
    %v2294 = vld [vmem:[%s150 + $0x798] sm:$0xff]
    %v2295 = vld [vmem:[%s150 + $0x7a0] sm:$0xff]
    %v2296 = vld [vmem:[%s150 + $0x7a8] sm:$0xff]
    %v2297 = vld [vmem:[%s150 + $0x7b0] sm:$0xff]
    %v2298 = vld [vmem:[%s150 + $0x7b8] sm:$0xff]
    %v2299 = vld [vmem:[%s150 + $0x7c0] sm:$0xff]
    %v2300 = vld [vmem:[%s150 + $0x7c8] sm:$0xff]
    %v2301 = vld [vmem:[%s150 + $0x7d0] sm:$0xff]
    %v2302 = vld [vmem:[%s150 + $0x7d8] sm:$0xff]
    %v2303 = vld [vmem:[%s150 + $0x7e0] sm:$0xff]
    %v2304 = vld [vmem:[%s150 + $0x7e8] sm:$0xff]
    %v2305 = vld [vmem:[%s150 + $0x7f0] sm:$0xff]
    %v2306 = vld [vmem:[%s150 + $0x7f8] sm:$0xff]
    %2307 = vmatprep.subr.bf16.mxu0 %v2052
    %2308 = vmatpush1.bf16.msra.mxu0 %v2051
    %2309 = vmatprep.subr.bf16.mxu0 %v2060
    %2310 = vmatpush1.bf16.msra.mxu0 %v2059
    %2311 = vmatprep.subr.bf16.mxu0 %v2068
    %2312 = vmatpush1.bf16.msra.mxu0 %v2067
    %2313 = vmatprep.subr.bf16.mxu0 %v2076
    %2314 = vmatpush1.bf16.msra.mxu0 %v2075
    %2315 = vmatprep.subr.bf16.mxu0 %v2084
    %2316 = vmatpush1.bf16.msra.mxu0 %v2083
    %2317 = vmatprep.subr.bf16.mxu0 %v2092
    %2318 = vmatpush1.bf16.msra.mxu0 %v2091
    %2319 = vmatprep.subr.bf16.mxu0 %v2100
    %2320 = vmatpush1.bf16.msra.mxu0 %v2099
    %2321 = vmatprep.subr.bf16.mxu0 %v2108
    %2322 = vmatpush1.bf16.msra.mxu0 %v2107
    %2323 = vmatprep.subr.bf16.mxu0 %v2116
    %2324 = vmatpush1.bf16.msra.mxu0 %v2115
    %2325 = vmatprep.subr.bf16.mxu0 %v2124
    %2326 = vmatpush1.bf16.msra.mxu0 %v2123
    %2327 = vmatprep.subr.bf16.mxu0 %v2132
    %2328 = vmatpush1.bf16.msra.mxu0 %v2131
    %2329 = vmatprep.subr.bf16.mxu0 %v2140
    %2330 = vmatpush1.bf16.msra.mxu0 %v2139
    %2331 = vmatprep.subr.bf16.mxu0 %v2148
    %2332 = vmatpush1.bf16.msra.mxu0 %v2147
    %2333 = vmatprep.subr.bf16.mxu0 %v2156
    %2334 = vmatpush1.bf16.msra.mxu0 %v2155
    %2335 = vmatprep.subr.bf16.mxu0 %v2164
    %2336 = vmatpush1.bf16.msra.mxu0 %v2163
    %2337 = vmatprep.subr.bf16.mxu0 %v2172
    %2338 = vmatpush1.bf16.msra.mxu0 %v2171
    %2339 = vmatprep.mubr.bf16.mxu0 %v278
    %2340 = vmatmul.mubr.bf16.gmra.mrb[0].mxu0 %v277
    %v2341 = vpop.f32.mrb[0].mxu0
    %v2342 = vadd.f32 0.0, %v2341
    %v2343 = vpop.f32.mrb[0].mxu0
    %v2344 = vadd.f32 0.0, %v2343
    %v2345 = vpop.f32.mrb[0].mxu0
    %v2346 = vpop.f32.mrb[0].mxu0
    %2347 = vdwg.mxu0
    %2348 = vmatprep.subr.bf16.mxu0 %v2180
    %2349 = vmatpush1.bf16.msra.mxu0 %v2179
    %2350 = vmatprep.subr.bf16.mxu0 %v2188
    %2351 = vmatpush1.bf16.msra.mxu0 %v2187
    %2352 = vmatprep.subr.bf16.mxu0 %v2196
    %2353 = vmatpush1.bf16.msra.mxu0 %v2195
    %2354 = vmatprep.subr.bf16.mxu0 %v2204
    %2355 = vmatpush1.bf16.msra.mxu0 %v2203
    %2356 = vmatprep.subr.bf16.mxu0 %v2212
    %2357 = vmatpush1.bf16.msra.mxu0 %v2211
    %2358 = vmatprep.subr.bf16.mxu0 %v2220
    %2359 = vmatpush1.bf16.msra.mxu0 %v2219
    %2360 = vmatprep.subr.bf16.mxu0 %v2228
    %2361 = vmatpush1.bf16.msra.mxu0 %v2227
    %2362 = vmatprep.subr.bf16.mxu0 %v2236
    %2363 = vmatpush1.bf16.msra.mxu0 %v2235
    %2364 = vmatprep.subr.bf16.mxu0 %v2244
    %2365 = vmatpush1.bf16.msra.mxu0 %v2243
    %2366 = vmatprep.subr.bf16.mxu0 %v2252
    %2367 = vmatpush1.bf16.msra.mxu0 %v2251
    %2368 = vmatprep.subr.bf16.mxu0 %v2260
    %2369 = vmatpush1.bf16.msra.mxu0 %v2259
    %2370 = vmatprep.subr.bf16.mxu0 %v2268
    %2371 = vmatpush1.bf16.msra.mxu0 %v2267
    %2372 = vmatprep.subr.bf16.mxu0 %v2276
    %2373 = vmatpush1.bf16.msra.mxu0 %v2275
    %2374 = vmatprep.subr.bf16.mxu0 %v2284
    %2375 = vmatpush1.bf16.msra.mxu0 %v2283
    %2376 = vmatprep.subr.bf16.mxu0 %v2292
    %2377 = vmatpush1.bf16.msra.mxu0 %v2291
    %2378 = vmatprep.subr.bf16.mxu0 %v2300
    %2379 = vmatpush1.bf16.msra.mxu0 %v2299
    %2380 = vmatprep.mubr.bf16.mxu0 %v280
    %2381 = vmatmul.mubr.bf16.gmra.mrb[0].mxu0 %v279
    %v2382 = vpop.f32.mrb[0].mxu0
    %v2383 = vadd.f32 %v2342, %v2382
    %v2384 = vpop.f32.mrb[0].mxu0
    %v2385 = vadd.f32 %v2344, %v2384
    %v2386 = vpop.f32.mrb[0].mxu0
    %v2387 = vpop.f32.mrb[0].mxu0
    %2388 = vdwg.mxu0
    %2389 = vmatprep.subr.bf16.mxu0 %v2054
    %2390 = vmatpush1.bf16.msra.mxu0 %v2053
    %2391 = vmatprep.subr.bf16.mxu0 %v2062
    %2392 = vmatpush1.bf16.msra.mxu0 %v2061
    %2393 = vmatprep.subr.bf16.mxu0 %v2070
    %2394 = vmatpush1.bf16.msra.mxu0 %v2069
    %2395 = vmatprep.subr.bf16.mxu0 %v2078
    %2396 = vmatpush1.bf16.msra.mxu0 %v2077
    %2397 = vmatprep.subr.bf16.mxu0 %v2086
    %2398 = vmatpush1.bf16.msra.mxu0 %v2085
    %2399 = vmatprep.subr.bf16.mxu0 %v2094
    %2400 = vmatpush1.bf16.msra.mxu0 %v2093
    %2401 = vmatprep.subr.bf16.mxu0 %v2102
    %2402 = vmatpush1.bf16.msra.mxu0 %v2101
    %2403 = vmatprep.subr.bf16.mxu0 %v2110
    %2404 = vmatpush1.bf16.msra.mxu0 %v2109
    %2405 = vmatprep.subr.bf16.mxu0 %v2118
    %2406 = vmatpush1.bf16.msra.mxu0 %v2117
    %2407 = vmatprep.subr.bf16.mxu0 %v2126
    %2408 = vmatpush1.bf16.msra.mxu0 %v2125
    %2409 = vmatprep.subr.bf16.mxu0 %v2134
    %2410 = vmatpush1.bf16.msra.mxu0 %v2133
    %2411 = vmatprep.subr.bf16.mxu0 %v2142
    %2412 = vmatpush1.bf16.msra.mxu0 %v2141
    %2413 = vmatprep.subr.bf16.mxu0 %v2150
    %2414 = vmatpush1.bf16.msra.mxu0 %v2149
    %2415 = vmatprep.subr.bf16.mxu0 %v2158
    %2416 = vmatpush1.bf16.msra.mxu0 %v2157
    %2417 = vmatprep.subr.bf16.mxu0 %v2166
    %2418 = vmatpush1.bf16.msra.mxu0 %v2165
    %2419 = vmatprep.subr.bf16.mxu0 %v2174
    %2420 = vmatpush1.bf16.msra.mxu0 %v2173
    %2421 = vmatprep.mubr.bf16.mxu0 %v278
    %2422 = vmatmul.mubr.bf16.gmra.mrb[0].mxu0 %v277
    %v2423 = vpop.f32.mrb[0].mxu0
    %v2424 = vadd.f32 0.0, %v2423
    %v2425 = vpop.f32.mrb[0].mxu0
    %v2426 = vadd.f32 0.0, %v2425
    %v2427 = vpop.f32.mrb[0].mxu0
    %v2428 = vpop.f32.mrb[0].mxu0
    %2429 = vdwg.mxu0
    %2430 = vmatprep.subr.bf16.mxu0 %v2182
    %2431 = vmatpush1.bf16.msra.mxu0 %v2181
    %2432 = vmatprep.subr.bf16.mxu0 %v2190
    %2433 = vmatpush1.bf16.msra.mxu0 %v2189
    %2434 = vmatprep.subr.bf16.mxu0 %v2198
    %2435 = vmatpush1.bf16.msra.mxu0 %v2197
    %2436 = vmatprep.subr.bf16.mxu0 %v2206
    %2437 = vmatpush1.bf16.msra.mxu0 %v2205
    %2438 = vmatprep.subr.bf16.mxu0 %v2214
    %2439 = vmatpush1.bf16.msra.mxu0 %v2213
    %2440 = vmatprep.subr.bf16.mxu0 %v2222
    %2441 = vmatpush1.bf16.msra.mxu0 %v2221
    %2442 = vmatprep.subr.bf16.mxu0 %v2230
    %2443 = vmatpush1.bf16.msra.mxu0 %v2229
    %2444 = vmatprep.subr.bf16.mxu0 %v2238
    %2445 = vmatpush1.bf16.msra.mxu0 %v2237
    %2446 = vmatprep.subr.bf16.mxu0 %v2246
    %2447 = vmatpush1.bf16.msra.mxu0 %v2245
    %2448 = vmatprep.subr.bf16.mxu0 %v2254
    %2449 = vmatpush1.bf16.msra.mxu0 %v2253
    %2450 = vmatprep.subr.bf16.mxu0 %v2262
    %2451 = vmatpush1.bf16.msra.mxu0 %v2261
    %2452 = vmatprep.subr.bf16.mxu0 %v2270
    %2453 = vmatpush1.bf16.msra.mxu0 %v2269
    %2454 = vmatprep.subr.bf16.mxu0 %v2278
    %2455 = vmatpush1.bf16.msra.mxu0 %v2277
    %2456 = vmatprep.subr.bf16.mxu0 %v2286
    %2457 = vmatpush1.bf16.msra.mxu0 %v2285
    %2458 = vmatprep.subr.bf16.mxu0 %v2294
    %2459 = vmatpush1.bf16.msra.mxu0 %v2293
    %2460 = vmatprep.subr.bf16.mxu0 %v2302
    %2461 = vmatpush1.bf16.msra.mxu0 %v2301
    %2462 = vmatprep.mubr.bf16.mxu0 %v280
    %2463 = vmatmul.mubr.bf16.gmra.mrb[0].mxu0 %v279
    %v2464 = vpop.f32.mrb[0].mxu0
    %v2465 = vadd.f32 %v2424, %v2464
    %v2466 = vpop.f32.mrb[0].mxu0
    %v2467 = vadd.f32 %v2426, %v2466
    %v2468 = vpop.f32.mrb[0].mxu0
    %v2469 = vpop.f32.mrb[0].mxu0
    %2470 = vdwg.mxu0
    %2471 = vmatprep.subr.bf16.mxu0 %v2056
    %2472 = vmatpush1.bf16.msra.mxu0 %v2055
    %2473 = vmatprep.subr.bf16.mxu0 %v2064
    %2474 = vmatpush1.bf16.msra.mxu0 %v2063
    %2475 = vmatprep.subr.bf16.mxu0 %v2072
    %2476 = vmatpush1.bf16.msra.mxu0 %v2071
    %2477 = vmatprep.subr.bf16.mxu0 %v2080
    %2478 = vmatpush1.bf16.msra.mxu0 %v2079
    %2479 = vmatprep.subr.bf16.mxu0 %v2088
    %2480 = vmatpush1.bf16.msra.mxu0 %v2087
    %2481 = vmatprep.subr.bf16.mxu0 %v2096
    %2482 = vmatpush1.bf16.msra.mxu0 %v2095
    %2483 = vmatprep.subr.bf16.mxu0 %v2104
    %2484 = vmatpush1.bf16.msra.mxu0 %v2103
    %2485 = vmatprep.subr.bf16.mxu0 %v2112
    %2486 = vmatpush1.bf16.msra.mxu0 %v2111
    %2487 = vmatprep.subr.bf16.mxu0 %v2120
    %2488 = vmatpush1.bf16.msra.mxu0 %v2119
    %2489 = vmatprep.subr.bf16.mxu0 %v2128
    %2490 = vmatpush1.bf16.msra.mxu0 %v2127
    %2491 = vmatprep.subr.bf16.mxu0 %v2136
    %2492 = vmatpush1.bf16.msra.mxu0 %v2135
    %2493 = vmatprep.subr.bf16.mxu0 %v2144
    %2494 = vmatpush1.bf16.msra.mxu0 %v2143
    %2495 = vmatprep.subr.bf16.mxu0 %v2152
    %2496 = vmatpush1.bf16.msra.mxu0 %v2151
    %2497 = vmatprep.subr.bf16.mxu0 %v2160
    %2498 = vmatpush1.bf16.msra.mxu0 %v2159
    %2499 = vmatprep.subr.bf16.mxu0 %v2168
    %2500 = vmatpush1.bf16.msra.mxu0 %v2167
    %2501 = vmatprep.subr.bf16.mxu0 %v2176
    %2502 = vmatpush1.bf16.msra.mxu0 %v2175
    %2503 = vmatprep.mubr.bf16.mxu0 %v278
    %2504 = vmatmul.mubr.bf16.gmra.mrb[0].mxu0 %v277
    %v2505 = vpop.f32.mrb[0].mxu0
    %v2506 = vadd.f32 0.0, %v2505
    %v2507 = vpop.f32.mrb[0].mxu0
    %v2508 = vadd.f32 0.0, %v2507
    %v2509 = vpop.f32.mrb[0].mxu0
    %v2510 = vpop.f32.mrb[0].mxu0
    %2511 = vdwg.mxu0
    %2512 = vmatprep.subr.bf16.mxu0 %v2184
    %2513 = vmatpush1.bf16.msra.mxu0 %v2183
    %2514 = vmatprep.subr.bf16.mxu0 %v2192
    %2515 = vmatpush1.bf16.msra.mxu0 %v2191
    %2516 = vmatprep.subr.bf16.mxu0 %v2200
    %2517 = vmatpush1.bf16.msra.mxu0 %v2199
    %2518 = vmatprep.subr.bf16.mxu0 %v2208
    %2519 = vmatpush1.bf16.msra.mxu0 %v2207
    %2520 = vmatprep.subr.bf16.mxu0 %v2216
    %2521 = vmatpush1.bf16.msra.mxu0 %v2215
    %2522 = vmatprep.subr.bf16.mxu0 %v2224
    %2523 = vmatpush1.bf16.msra.mxu0 %v2223
    %2524 = vmatprep.subr.bf16.mxu0 %v2232
    %2525 = vmatpush1.bf16.msra.mxu0 %v2231
    %2526 = vmatprep.subr.bf16.mxu0 %v2240
    %2527 = vmatpush1.bf16.msra.mxu0 %v2239
    %2528 = vmatprep.subr.bf16.mxu0 %v2248
    %2529 = vmatpush1.bf16.msra.mxu0 %v2247
    %2530 = vmatprep.subr.bf16.mxu0 %v2256
    %2531 = vmatpush1.bf16.msra.mxu0 %v2255
    %2532 = vmatprep.subr.bf16.mxu0 %v2264
    %2533 = vmatpush1.bf16.msra.mxu0 %v2263
    %2534 = vmatprep.subr.bf16.mxu0 %v2272
    %2535 = vmatpush1.bf16.msra.mxu0 %v2271
    %2536 = vmatprep.subr.bf16.mxu0 %v2280
    %2537 = vmatpush1.bf16.msra.mxu0 %v2279
    %2538 = vmatprep.subr.bf16.mxu0 %v2288
    %2539 = vmatpush1.bf16.msra.mxu0 %v2287
    %2540 = vmatprep.subr.bf16.mxu0 %v2296
    %2541 = vmatpush1.bf16.msra.mxu0 %v2295
    %2542 = vmatprep.subr.bf16.mxu0 %v2304
    %2543 = vmatpush1.bf16.msra.mxu0 %v2303
    %2544 = vmatprep.mubr.bf16.mxu0 %v280
    %2545 = vmatmul.mubr.bf16.gmra.mrb[0].mxu0 %v279
    %v2546 = vpop.f32.mrb[0].mxu0
    %v2547 = vadd.f32 %v2506, %v2546
    %v2548 = vpop.f32.mrb[0].mxu0
    %v2549 = vadd.f32 %v2508, %v2548
    %v2550 = vpop.f32.mrb[0].mxu0
    %v2551 = vpop.f32.mrb[0].mxu0
    %2552 = vdwg.mxu0
    %2553 = vmatprep.subr.bf16.mxu0 %v2058
    %2554 = vmatpush1.bf16.msra.mxu0 %v2057
    %2555 = vmatprep.subr.bf16.mxu0 %v2066
    %2556 = vmatpush1.bf16.msra.mxu0 %v2065
    %2557 = vmatprep.subr.bf16.mxu0 %v2074
    %2558 = vmatpush1.bf16.msra.mxu0 %v2073
    %2559 = vmatprep.subr.bf16.mxu0 %v2082
    %2560 = vmatpush1.bf16.msra.mxu0 %v2081
    %2561 = vmatprep.subr.bf16.mxu0 %v2090
    %2562 = vmatpush1.bf16.msra.mxu0 %v2089
    %2563 = vmatprep.subr.bf16.mxu0 %v2098
    %2564 = vmatpush1.bf16.msra.mxu0 %v2097
    %2565 = vmatprep.subr.bf16.mxu0 %v2106
    %2566 = vmatpush1.bf16.msra.mxu0 %v2105
    %2567 = vmatprep.subr.bf16.mxu0 %v2114
    %2568 = vmatpush1.bf16.msra.mxu0 %v2113
    %2569 = vmatprep.subr.bf16.mxu0 %v2122
    %2570 = vmatpush1.bf16.msra.mxu0 %v2121
    %2571 = vmatprep.subr.bf16.mxu0 %v2130
    %2572 = vmatpush1.bf16.msra.mxu0 %v2129
    %2573 = vmatprep.subr.bf16.mxu0 %v2138
    %2574 = vmatpush1.bf16.msra.mxu0 %v2137
    %2575 = vmatprep.subr.bf16.mxu0 %v2146
    %2576 = vmatpush1.bf16.msra.mxu0 %v2145
    %2577 = vmatprep.subr.bf16.mxu0 %v2154
    %2578 = vmatpush1.bf16.msra.mxu0 %v2153
    %2579 = vmatprep.subr.bf16.mxu0 %v2162
    %2580 = vmatpush1.bf16.msra.mxu0 %v2161
    %2581 = vmatprep.subr.bf16.mxu0 %v2170
    %2582 = vmatpush1.bf16.msra.mxu0 %v2169
    %2583 = vmatprep.subr.bf16.mxu0 %v2178
    %2584 = vmatpush1.bf16.msra.mxu0 %v2177
    %2585 = vmatprep.mubr.bf16.mxu0 %v278
    %2586 = vmatmul.mubr.bf16.gmra.mrb[0].mxu0 %v277
    %v2587 = vpop.f32.mrb[0].mxu0
    %v2588 = vadd.f32 0.0, %v2587
    %v2589 = vpop.f32.mrb[0].mxu0
    %v2590 = vadd.f32 0.0, %v2589
    %v2591 = vpop.f32.mrb[0].mxu0
    %v2592 = vpop.f32.mrb[0].mxu0
    %2593 = vdwg.mxu0
    %2594 = vmatprep.subr.bf16.mxu0 %v2186
    %2595 = vmatpush1.bf16.msra.mxu0 %v2185
    %2596 = vmatprep.subr.bf16.mxu0 %v2194
    %2597 = vmatpush1.bf16.msra.mxu0 %v2193
    %2598 = vmatprep.subr.bf16.mxu0 %v2202
    %2599 = vmatpush1.bf16.msra.mxu0 %v2201
    %2600 = vmatprep.subr.bf16.mxu0 %v2210
    %2601 = vmatpush1.bf16.msra.mxu0 %v2209
    %2602 = vmatprep.subr.bf16.mxu0 %v2218
    %2603 = vmatpush1.bf16.msra.mxu0 %v2217
    %2604 = vmatprep.subr.bf16.mxu0 %v2226
    %2605 = vmatpush1.bf16.msra.mxu0 %v2225
    %2606 = vmatprep.subr.bf16.mxu0 %v2234
    %2607 = vmatpush1.bf16.msra.mxu0 %v2233
    %2608 = vmatprep.subr.bf16.mxu0 %v2242
    %2609 = vmatpush1.bf16.msra.mxu0 %v2241
    %2610 = vmatprep.subr.bf16.mxu0 %v2250
    %2611 = vmatpush1.bf16.msra.mxu0 %v2249
    %2612 = vmatprep.subr.bf16.mxu0 %v2258
    %2613 = vmatpush1.bf16.msra.mxu0 %v2257
    %2614 = vmatprep.subr.bf16.mxu0 %v2266
    %2615 = vmatpush1.bf16.msra.mxu0 %v2265
    %2616 = vmatprep.subr.bf16.mxu0 %v2274
    %2617 = vmatpush1.bf16.msra.mxu0 %v2273
    %2618 = vmatprep.subr.bf16.mxu0 %v2282
    %2619 = vmatpush1.bf16.msra.mxu0 %v2281
    %2620 = vmatprep.subr.bf16.mxu0 %v2290
    %2621 = vmatpush1.bf16.msra.mxu0 %v2289
    %2622 = vmatprep.subr.bf16.mxu0 %v2298
    %2623 = vmatpush1.bf16.msra.mxu0 %v2297
    %2624 = vmatprep.subr.bf16.mxu0 %v2306
    %2625 = vmatpush1.bf16.msra.mxu0 %v2305
    %2626 = vmatprep.mubr.bf16.mxu0 %v280
    %2627 = vmatmul.mubr.bf16.gmra.mrb[0].mxu0 %v279
    %v2628 = vpop.f32.mrb[0].mxu0
    %v2629 = vadd.f32 %v2588, %v2628
    %v2630 = vpop.f32.mrb[0].mxu0
    %v2631 = vadd.f32 %v2590, %v2630
    %v2632 = vpop.f32.mrb[0].mxu0
    %v2633 = vpop.f32.mrb[0].mxu0
    %2634 = vdwg.mxu0
    %v2635 = vadd.f32 %v2041, %v2383
    %v2636 = vadd.f32 %v2042, %v2385
    %v2637 = vadd.f32 %v2043, %v2465
    %v2638 = vadd.f32 %v2044, %v2467
    %v2639 = vadd.f32 %v2045, %v2547
    %v2640 = vadd.f32 %v2046, %v2549
    %v2641 = vadd.f32 %v2047, %v2629
    %v2642 = vadd.f32 %v2048, %v2631
    %v2643 = vrot.slane %v2635, 4
    %v2644 = vadd.f32 %v2635, %v2643
    %v2645 = vrot.slane %v2644, 2
    %v2646 = vadd.f32 %v2644, %v2645
    %v2647 = vrot.slane %v2646, 1
    %v2648 = vadd.f32 %v2646, %v2647
    %v2649 = vrot.slane %v2636, 4
    %v2650 = vadd.f32 %v2636, %v2649
    %v2651 = vrot.slane %v2650, 2
    %v2652 = vadd.f32 %v2650, %v2651
    %v2653 = vrot.slane %v2652, 1
    %v2654 = vadd.f32 %v2652, %v2653
    %v2655 = vrot.slane %v2637, 4
    %v2656 = vadd.f32 %v2637, %v2655
    %v2657 = vrot.slane %v2656, 2
    %v2658 = vadd.f32 %v2656, %v2657
    %v2659 = vrot.slane %v2658, 1
    %v2660 = vadd.f32 %v2658, %v2659
    %v2661 = vrot.slane %v2638, 4
    %v2662 = vadd.f32 %v2638, %v2661
    %v2663 = vrot.slane %v2662, 2
    %v2664 = vadd.f32 %v2662, %v2663
    %v2665 = vrot.slane %v2664, 1
    %v2666 = vadd.f32 %v2664, %v2665
    %v2667 = vrot.slane %v2639, 4
    %v2668 = vadd.f32 %v2639, %v2667
    %v2669 = vrot.slane %v2668, 2
    %v2670 = vadd.f32 %v2668, %v2669
    %v2671 = vrot.slane %v2670, 1
    %v2672 = vadd.f32 %v2670, %v2671
    %v2673 = vrot.slane %v2640, 4
    %v2674 = vadd.f32 %v2640, %v2673
    %v2675 = vrot.slane %v2674, 2
    %v2676 = vadd.f32 %v2674, %v2675
    %v2677 = vrot.slane %v2676, 1
    %v2678 = vadd.f32 %v2676, %v2677
    %v2679 = vrot.slane %v2641, 4
    %v2680 = vadd.f32 %v2641, %v2679
    %v2681 = vrot.slane %v2680, 2
    %v2682 = vadd.f32 %v2680, %v2681
    %v2683 = vrot.slane %v2682, 1
    %v2684 = vadd.f32 %v2682, %v2683
    %v2685 = vrot.slane %v2642, 4
    %v2686 = vadd.f32 %v2642, %v2685
    %v2687 = vrot.slane %v2686, 2
    %v2688 = vadd.f32 %v2686, %v2687
    %v2689 = vrot.slane %v2688, 1
    %v2690 = vadd.f32 %v2688, %v2689
    %v2691 = vrcp.pop 8.0
    %v2692 = vmul.f32 %v2648, %v2691
    %v2693 = vmul.f32 %v2654, %v2691
    %v2694 = vmul.f32 %v2660, %v2691
    %v2695 = vmul.f32 %v2666, %v2691
    %v2696 = vmul.f32 %v2672, %v2691
    %v2697 = vmul.f32 %v2678, %v2691
    %v2698 = vmul.f32 %v2684, %v2691
    %v2699 = vmul.f32 %v2690, %v2691
    %v2700 = vsub.f32 %v2635, %v2692
    %v2701 = vsub.f32 %v2636, %v2693
    %v2702 = vsub.f32 %v2637, %v2694
    %v2703 = vsub.f32 %v2638, %v2695
    %v2704 = vsub.f32 %v2639, %v2696
    %v2705 = vsub.f32 %v2640, %v2697
    %v2706 = vsub.f32 %v2641, %v2698
    %v2707 = vsub.f32 %v2642, %v2699
    %v2708 = vmul.f32 %v2700, %v2700
    %v2709 = vmul.f32 %v2701, %v2701
    %v2710 = vmul.f32 %v2702, %v2702
    %v2711 = vmul.f32 %v2703, %v2703
    %v2712 = vmul.f32 %v2704, %v2704
    %v2713 = vmul.f32 %v2705, %v2705
    %v2714 = vmul.f32 %v2706, %v2706
    %v2715 = vmul.f32 %v2707, %v2707
    %v2716 = vrot.slane %v2708, 4
    %v2717 = vadd.f32 %v2708, %v2716
    %v2718 = vrot.slane %v2717, 2
    %v2719 = vadd.f32 %v2717, %v2718
    %v2720 = vrot.slane %v2719, 1
    %v2721 = vadd.f32 %v2719, %v2720
    %v2722 = vrot.slane %v2709, 4
    %v2723 = vadd.f32 %v2709, %v2722
    %v2724 = vrot.slane %v2723, 2
    %v2725 = vadd.f32 %v2723, %v2724
    %v2726 = vrot.slane %v2725, 1
    %v2727 = vadd.f32 %v2725, %v2726
    %v2728 = vrot.slane %v2710, 4
    %v2729 = vadd.f32 %v2710, %v2728
    %v2730 = vrot.slane %v2729, 2
    %v2731 = vadd.f32 %v2729, %v2730
    %v2732 = vrot.slane %v2731, 1
    %v2733 = vadd.f32 %v2731, %v2732
    %v2734 = vrot.slane %v2711, 4
    %v2735 = vadd.f32 %v2711, %v2734
    %v2736 = vrot.slane %v2735, 2
    %v2737 = vadd.f32 %v2735, %v2736
    %v2738 = vrot.slane %v2737, 1
    %v2739 = vadd.f32 %v2737, %v2738
    %v2740 = vrot.slane %v2712, 4
    %v2741 = vadd.f32 %v2712, %v2740
    %v2742 = vrot.slane %v2741, 2
    %v2743 = vadd.f32 %v2741, %v2742
    %v2744 = vrot.slane %v2743, 1
    %v2745 = vadd.f32 %v2743, %v2744
    %v2746 = vrot.slane %v2713, 4
    %v2747 = vadd.f32 %v2713, %v2746
    %v2748 = vrot.slane %v2747, 2
    %v2749 = vadd.f32 %v2747, %v2748
    %v2750 = vrot.slane %v2749, 1
    %v2751 = vadd.f32 %v2749, %v2750
    %v2752 = vrot.slane %v2714, 4
    %v2753 = vadd.f32 %v2714, %v2752
    %v2754 = vrot.slane %v2753, 2
    %v2755 = vadd.f32 %v2753, %v2754
    %v2756 = vrot.slane %v2755, 1
    %v2757 = vadd.f32 %v2755, %v2756
    %v2758 = vrot.slane %v2715, 4
    %v2759 = vadd.f32 %v2715, %v2758
    %v2760 = vrot.slane %v2759, 2
    %v2761 = vadd.f32 %v2759, %v2760
    %v2762 = vrot.slane %v2761, 1
    %v2763 = vadd.f32 %v2761, %v2762
    %v2764 = vmul.f32 %v2721, %v2691
    %v2765 = vmul.f32 %v2727, %v2691
    %v2766 = vmul.f32 %v2733, %v2691
    %v2767 = vmul.f32 %v2739, %v2691
    %v2768 = vmul.f32 %v2745, %v2691
    %v2769 = vmul.f32 %v2751, %v2691
    %v2770 = vmul.f32 %v2757, %v2691
    %v2771 = vmul.f32 %v2763, %v2691
    %v2772 = vadd.f32 %v2764, 1e-05
    %v2773 = vadd.f32 %v2765, 1e-05
    %v2774 = vadd.f32 %v2766, 1e-05
    %v2775 = vadd.f32 %v2767, 1e-05
    %v2776 = vadd.f32 %v2768, 1e-05
    %v2777 = vadd.f32 %v2769, 1e-05
    %v2778 = vadd.f32 %v2770, 1e-05
    %v2779 = vadd.f32 %v2771, 1e-05
    %v2780 = vrsqrt.pop %v2772
    %v2781 = vrsqrt.pop %v2773
    %v2782 = vrsqrt.pop %v2774
    %v2783 = vrsqrt.pop %v2775
    %v2784 = vrsqrt.pop %v2776
    %v2785 = vrsqrt.pop %v2777
    %v2786 = vrsqrt.pop %v2778
    %v2787 = vrsqrt.pop %v2779
    %v2796 = vcombine.low %v2780, %v2781
    %v2797 = vcombine.low %v2782, %v2783
    %v2798 = vcombine.low %v2784, %v2785
    %v2799 = vcombine.low %v2786, %v2787
    %v2801 = vunpack.c.l.s4 1966171168
    %v2802 = vunpack.c.0.s8 %v2801
    %v2803 = vlaneseq
    %v2804 = vshrl.u32 %v2803, 7
    %v2805 = vsub.s32 %v2802, %v2804
    %v2806 = vrot.slane %v2796, %v2805
    %v2808 = vunpack.c.l.s4 1966171168
    %v2809 = vunpack.c.0.s8 %v2808
    %v2810 = vlaneseq
    %v2811 = vshrl.u32 %v2810, 7
    %v2812 = vsub.s32 %v2809, %v2811
    %v2813 = vrot.slane %v2797, %v2812
    %v2815 = vunpack.c.l.s4 1966171168
    %v2816 = vunpack.c.0.s8 %v2815
    %v2817 = vlaneseq
    %v2818 = vshrl.u32 %v2817, 7
    %v2819 = vsub.s32 %v2816, %v2818
    %v2820 = vrot.slane %v2798, %v2819
    %v2822 = vunpack.c.l.s4 1966171168
    %v2823 = vunpack.c.0.s8 %v2822
    %v2824 = vlaneseq
    %v2825 = vshrl.u32 %v2824, 7
    %v2826 = vsub.s32 %v2823, %v2825
    %v2827 = vrot.slane %v2799, %v2826
    %v2828 = vcombine.low %v2806, %v2813
    %v2829 = vcombine.low %v2820, %v2827
    %v2831 = vunpack.c.l.s4 1966171168
    %v2832 = vunpack.c.0.s8 %v2831
    %v2833 = vlaneseq
    %v2834 = vshrl.u32 %v2833, 7
    %v2835 = vsub.s32 %v2832, %v2834
    %v2836 = vrot.slane %v2828, %v2835
    %v2838 = vunpack.c.l.s4 1966171168
    %v2839 = vunpack.c.0.s8 %v2838
    %v2840 = vlaneseq
    %v2841 = vshrl.u32 %v2840, 7
    %v2842 = vsub.s32 %v2839, %v2841
    %v2843 = vrot.slane %v2829, %v2842
    %v2844 = vcombine.low %v2836, %v2843
    %v2846 = vmul.f32 %v235, %v2844
    %v2848 = vlaneseq
    %v2849 = vshrl.u32 %v2848, 7
    %v2850 = vsub.s32 0, %v2849
    %v2851 = vrot.slane %v2846, %v2850
    %v2852 = vlaneseq
    %v2853 = vshrl.u32 %v2852, 7
    %v2854 = vsub.s32 1, %v2853
    %v2855 = vrot.slane %v2846, %v2854
    %v2856 = vlaneseq
    %v2857 = vshrl.u32 %v2856, 7
    %v2858 = vsub.s32 2, %v2857
    %v2859 = vrot.slane %v2846, %v2858
    %v2860 = vlaneseq
    %v2861 = vshrl.u32 %v2860, 7
    %v2862 = vsub.s32 3, %v2861
    %v2863 = vrot.slane %v2846, %v2862
    %v2864 = vlaneseq
    %v2865 = vshrl.u32 %v2864, 7
    %v2866 = vsub.s32 4, %v2865
    %v2867 = vrot.slane %v2846, %v2866
    %v2868 = vlaneseq
    %v2869 = vshrl.u32 %v2868, 7
    %v2870 = vsub.s32 5, %v2869
    %v2871 = vrot.slane %v2846, %v2870
    %v2872 = vlaneseq
    %v2873 = vshrl.u32 %v2872, 7
    %v2874 = vsub.s32 6, %v2873
    %v2875 = vrot.slane %v2846, %v2874
    %v2876 = vlaneseq
    %v2877 = vshrl.u32 %v2876, 7
    %v2878 = vsub.s32 7, %v2877
    %v2879 = vrot.slane %v2846, %v2878
    %v2888 = vmul.f32 %v2692, %v2851
    %v2889 = vmul.f32 %v2693, %v2855
    %v2890 = vmul.f32 %v2694, %v2859
    %v2891 = vmul.f32 %v2695, %v2863
    %v2892 = vmul.f32 %v2696, %v2867
    %v2893 = vmul.f32 %v2697, %v2871
    %v2894 = vmul.f32 %v2698, %v2875
    %v2895 = vmul.f32 %v2699, %v2879
    %v2904 = vcombine.low %v2888, %v2889
    %v2905 = vcombine.low %v2890, %v2891
    %v2906 = vcombine.low %v2892, %v2893
    %v2907 = vcombine.low %v2894, %v2895
    %v2909 = vunpack.c.l.s4 1966171168
    %v2910 = vunpack.c.0.s8 %v2909
    %v2911 = vlaneseq
    %v2912 = vshrl.u32 %v2911, 7
    %v2913 = vsub.s32 %v2910, %v2912
    %v2914 = vrot.slane %v2904, %v2913
    %v2916 = vunpack.c.l.s4 1966171168
    %v2917 = vunpack.c.0.s8 %v2916
    %v2918 = vlaneseq
    %v2919 = vshrl.u32 %v2918, 7
    %v2920 = vsub.s32 %v2917, %v2919
    %v2921 = vrot.slane %v2905, %v2920
    %v2923 = vunpack.c.l.s4 1966171168
    %v2924 = vunpack.c.0.s8 %v2923
    %v2925 = vlaneseq
    %v2926 = vshrl.u32 %v2925, 7
    %v2927 = vsub.s32 %v2924, %v2926
    %v2928 = vrot.slane %v2906, %v2927
    %v2930 = vunpack.c.l.s4 1966171168
    %v2931 = vunpack.c.0.s8 %v2930
    %v2932 = vlaneseq
    %v2933 = vshrl.u32 %v2932, 7
    %v2934 = vsub.s32 %v2931, %v2933
    %v2935 = vrot.slane %v2907, %v2934
    %v2936 = vcombine.low %v2914, %v2921
    %v2937 = vcombine.low %v2928, %v2935
    %v2939 = vunpack.c.l.s4 1966171168
    %v2940 = vunpack.c.0.s8 %v2939
    %v2941 = vlaneseq
    %v2942 = vshrl.u32 %v2941, 7
    %v2943 = vsub.s32 %v2940, %v2942
    %v2944 = vrot.slane %v2936, %v2943
    %v2946 = vunpack.c.l.s4 1966171168
    %v2947 = vunpack.c.0.s8 %v2946
    %v2948 = vlaneseq
    %v2949 = vshrl.u32 %v2948, 7
    %v2950 = vsub.s32 %v2947, %v2949
    %v2951 = vrot.slane %v2937, %v2950
    %v2952 = vcombine.low %v2944, %v2951
    %v2954 = vsub.f32 %v239, %v2952
    %v2955 = vmul.f32 %v2635, %v2851
    %v2956 = vmul.f32 %v2636, %v2855
    %v2957 = vmul.f32 %v2637, %v2859
    %v2958 = vmul.f32 %v2638, %v2863
    %v2959 = vmul.f32 %v2639, %v2867
    %v2960 = vmul.f32 %v2640, %v2871
    %v2961 = vmul.f32 %v2641, %v2875
    %v2962 = vmul.f32 %v2642, %v2879
    %v2964 = vlaneseq
    %v2965 = vshrl.u32 %v2964, 7
    %v2966 = vsub.s32 0, %v2965
    %v2967 = vrot.slane %v2954, %v2966
    %v2968 = vlaneseq
    %v2969 = vshrl.u32 %v2968, 7
    %v2970 = vsub.s32 1, %v2969
    %v2971 = vrot.slane %v2954, %v2970
    %v2972 = vlaneseq
    %v2973 = vshrl.u32 %v2972, 7
    %v2974 = vsub.s32 2, %v2973
    %v2975 = vrot.slane %v2954, %v2974
    %v2976 = vlaneseq
    %v2977 = vshrl.u32 %v2976, 7
    %v2978 = vsub.s32 3, %v2977
    %v2979 = vrot.slane %v2954, %v2978
    %v2980 = vlaneseq
    %v2981 = vshrl.u32 %v2980, 7
    %v2982 = vsub.s32 4, %v2981
    %v2983 = vrot.slane %v2954, %v2982
    %v2984 = vlaneseq
    %v2985 = vshrl.u32 %v2984, 7
    %v2986 = vsub.s32 5, %v2985
    %v2987 = vrot.slane %v2954, %v2986
    %v2988 = vlaneseq
    %v2989 = vshrl.u32 %v2988, 7
    %v2990 = vsub.s32 6, %v2989
    %v2991 = vrot.slane %v2954, %v2990
    %v2992 = vlaneseq
    %v2993 = vshrl.u32 %v2992, 7
    %v2994 = vsub.s32 7, %v2993
    %v2995 = vrot.slane %v2954, %v2994
    %v3004 = vadd.f32 %v2955, %v2967
    %v3005 = vadd.f32 %v2956, %v2971
    %v3006 = vadd.f32 %v2957, %v2975
    %v3007 = vadd.f32 %v2958, %v2979
    %v3008 = vadd.f32 %v2959, %v2983
    %v3009 = vadd.f32 %v2960, %v2987
    %v3010 = vadd.f32 %v2961, %v2991
    %v3011 = vadd.f32 %v2962, %v2995
    %v3012 = vmax.f32 %v3004, 0.0
    %v3013 = vmax.f32 %v3005, 0.0
    %v3014 = vmax.f32 %v3006, 0.0
    %v3015 = vmax.f32 %v3007, 0.0
    %v3016 = vmax.f32 %v3008, 0.0
    %v3017 = vmax.f32 %v3009, 0.0
    %v3018 = vmax.f32 %v3010, 0.0
    %v3019 = vmax.f32 %v3011, 0.0
    %s3020 = smul.u32 4, 128
    %s3021 = smul.u32 %s3020, 8
    %s3022 = sshll.u32 %s3021, 4
    %3023 = dma.done %s186, %s3022
    %v3024 = vpack.c.bf16 %v3012, %v3012
    %v3025 = vpack.c.bf16 %v3013, %v3013
    %v3026 = vpack.c.bf16 %v3014, %v3014
    %v3027 = vpack.c.bf16 %v3015, %v3015
    %v3028 = vpack.c.bf16 %v3016, %v3016
    %v3029 = vpack.c.bf16 %v3017, %v3017
    %v3030 = vpack.c.bf16 %v3018, %v3018
    %v3031 = vpack.c.bf16 %v3019, %v3019
    %v3032 = vld [vmem:[#allocation3] sm:$0xff]
    %v3033 = vld [vmem:[#allocation3 + $0x8] sm:$0xff]
    %v3034 = vld [vmem:[#allocation3 + $0x10] sm:$0xff]
    %v3035 = vld [vmem:[#allocation3 + $0x18] sm:$0xff]
    %v3036 = vld [vmem:[#allocation3 + $0x20] sm:$0xff]
    %v3037 = vld [vmem:[#allocation3 + $0x28] sm:$0xff]
    %v3038 = vld [vmem:[#allocation3 + $0x30] sm:$0xff]
    %v3039 = vld [vmem:[#allocation3 + $0x38] sm:$0xff]
    %v3040 = vld [vmem:[#allocation3 + $0x40] sm:$0xff]
    %v3041 = vld [vmem:[#allocation3 + $0x48] sm:$0xff]
    %v3042 = vld [vmem:[#allocation3 + $0x50] sm:$0xff]
    %v3043 = vld [vmem:[#allocation3 + $0x58] sm:$0xff]
    %v3044 = vld [vmem:[#allocation3 + $0x60] sm:$0xff]
    %v3045 = vld [vmem:[#allocation3 + $0x68] sm:$0xff]
    %v3046 = vld [vmem:[#allocation3 + $0x70] sm:$0xff]
    %v3047 = vld [vmem:[#allocation3 + $0x78] sm:$0xff]
    %v3048 = vld [vmem:[#allocation3 + $0x80] sm:$0xff]
    %v3049 = vld [vmem:[#allocation3 + $0x88] sm:$0xff]
    %v3050 = vld [vmem:[#allocation3 + $0x90] sm:$0xff]
    %v3051 = vld [vmem:[#allocation3 + $0x98] sm:$0xff]
    %v3052 = vld [vmem:[#allocation3 + $0xa0] sm:$0xff]
    %v3053 = vld [vmem:[#allocation3 + $0xa8] sm:$0xff]
    %v3054 = vld [vmem:[#allocation3 + $0xb0] sm:$0xff]
    %v3055 = vld [vmem:[#allocation3 + $0xb8] sm:$0xff]
    %v3056 = vld [vmem:[#allocation3 + $0xc0] sm:$0xff]
    %v3057 = vld [vmem:[#allocation3 + $0xc8] sm:$0xff]
    %v3058 = vld [vmem:[#allocation3 + $0xd0] sm:$0xff]
    %v3059 = vld [vmem:[#allocation3 + $0xd8] sm:$0xff]
    %v3060 = vld [vmem:[#allocation3 + $0xe0] sm:$0xff]
    %v3061 = vld [vmem:[#allocation3 + $0xe8] sm:$0xff]
    %v3062 = vld [vmem:[#allocation3 + $0xf0] sm:$0xff]
    %v3063 = vld [vmem:[#allocation3 + $0xf8] sm:$0xff]
    %v3064 = vld [vmem:[#allocation3 + $0x100] sm:$0xff]
    %v3065 = vld [vmem:[#allocation3 + $0x108] sm:$0xff]
    %v3066 = vld [vmem:[#allocation3 + $0x110] sm:$0xff]
    %v3067 = vld [vmem:[#allocation3 + $0x118] sm:$0xff]
    %v3068 = vld [vmem:[#allocation3 + $0x120] sm:$0xff]
    %v3069 = vld [vmem:[#allocation3 + $0x128] sm:$0xff]
    %v3070 = vld [vmem:[#allocation3 + $0x130] sm:$0xff]
    %v3071 = vld [vmem:[#allocation3 + $0x138] sm:$0xff]
    %v3072 = vld [vmem:[#allocation3 + $0x140] sm:$0xff]
    %v3073 = vld [vmem:[#allocation3 + $0x148] sm:$0xff]
    %v3074 = vld [vmem:[#allocation3 + $0x150] sm:$0xff]
    %v3075 = vld [vmem:[#allocation3 + $0x158] sm:$0xff]
    %v3076 = vld [vmem:[#allocation3 + $0x160] sm:$0xff]
    %v3077 = vld [vmem:[#allocation3 + $0x168] sm:$0xff]
    %v3078 = vld [vmem:[#allocation3 + $0x170] sm:$0xff]
    %v3079 = vld [vmem:[#allocation3 + $0x178] sm:$0xff]
    %v3080 = vld [vmem:[#allocation3 + $0x180] sm:$0xff]
    %v3081 = vld [vmem:[#allocation3 + $0x188] sm:$0xff]
    %v3082 = vld [vmem:[#allocation3 + $0x190] sm:$0xff]
    %v3083 = vld [vmem:[#allocation3 + $0x198] sm:$0xff]
    %v3084 = vld [vmem:[#allocation3 + $0x1a0] sm:$0xff]
    %v3085 = vld [vmem:[#allocation3 + $0x1a8] sm:$0xff]
    %v3086 = vld [vmem:[#allocation3 + $0x1b0] sm:$0xff]
    %v3087 = vld [vmem:[#allocation3 + $0x1b8] sm:$0xff]
    %v3088 = vld [vmem:[#allocation3 + $0x1c0] sm:$0xff]
    %v3089 = vld [vmem:[#allocation3 + $0x1c8] sm:$0xff]
    %v3090 = vld [vmem:[#allocation3 + $0x1d0] sm:$0xff]
    %v3091 = vld [vmem:[#allocation3 + $0x1d8] sm:$0xff]
    %v3092 = vld [vmem:[#allocation3 + $0x1e0] sm:$0xff]
    %v3093 = vld [vmem:[#allocation3 + $0x1e8] sm:$0xff]
    %v3094 = vld [vmem:[#allocation3 + $0x1f0] sm:$0xff]
    %v3095 = vld [vmem:[#allocation3 + $0x1f8] sm:$0xff]
    %v3096 = vld [vmem:[#allocation3 + $0x200] sm:$0xff]
    %v3097 = vld [vmem:[#allocation3 + $0x208] sm:$0xff]
    %v3098 = vld [vmem:[#allocation3 + $0x210] sm:$0xff]
    %v3099 = vld [vmem:[#allocation3 + $0x218] sm:$0xff]
    %v3100 = vld [vmem:[#allocation3 + $0x220] sm:$0xff]
    %v3101 = vld [vmem:[#allocation3 + $0x228] sm:$0xff]
    %v3102 = vld [vmem:[#allocation3 + $0x230] sm:$0xff]
    %v3103 = vld [vmem:[#allocation3 + $0x238] sm:$0xff]
    %v3104 = vld [vmem:[#allocation3 + $0x240] sm:$0xff]
    %v3105 = vld [vmem:[#allocation3 + $0x248] sm:$0xff]
    %v3106 = vld [vmem:[#allocation3 + $0x250] sm:$0xff]
    %v3107 = vld [vmem:[#allocation3 + $0x258] sm:$0xff]
    %v3108 = vld [vmem:[#allocation3 + $0x260] sm:$0xff]
    %v3109 = vld [vmem:[#allocation3 + $0x268] sm:$0xff]
    %v3110 = vld [vmem:[#allocation3 + $0x270] sm:$0xff]
    %v3111 = vld [vmem:[#allocation3 + $0x278] sm:$0xff]
    %v3112 = vld [vmem:[#allocation3 + $0x280] sm:$0xff]
    %v3113 = vld [vmem:[#allocation3 + $0x288] sm:$0xff]
    %v3114 = vld [vmem:[#allocation3 + $0x290] sm:$0xff]
    %v3115 = vld [vmem:[#allocation3 + $0x298] sm:$0xff]
    %v3116 = vld [vmem:[#allocation3 + $0x2a0] sm:$0xff]
    %v3117 = vld [vmem:[#allocation3 + $0x2a8] sm:$0xff]
    %v3118 = vld [vmem:[#allocation3 + $0x2b0] sm:$0xff]
    %v3119 = vld [vmem:[#allocation3 + $0x2b8] sm:$0xff]
    %v3120 = vld [vmem:[#allocation3 + $0x2c0] sm:$0xff]
    %v3121 = vld [vmem:[#allocation3 + $0x2c8] sm:$0xff]
    %v3122 = vld [vmem:[#allocation3 + $0x2d0] sm:$0xff]
    %v3123 = vld [vmem:[#allocation3 + $0x2d8] sm:$0xff]
    %v3124 = vld [vmem:[#allocation3 + $0x2e0] sm:$0xff]
    %v3125 = vld [vmem:[#allocation3 + $0x2e8] sm:$0xff]
    %v3126 = vld [vmem:[#allocation3 + $0x2f0] sm:$0xff]
    %v3127 = vld [vmem:[#allocation3 + $0x2f8] sm:$0xff]
    %v3128 = vld [vmem:[#allocation3 + $0x300] sm:$0xff]
    %v3129 = vld [vmem:[#allocation3 + $0x308] sm:$0xff]
    %v3130 = vld [vmem:[#allocation3 + $0x310] sm:$0xff]
    %v3131 = vld [vmem:[#allocation3 + $0x318] sm:$0xff]
    %v3132 = vld [vmem:[#allocation3 + $0x320] sm:$0xff]
    %v3133 = vld [vmem:[#allocation3 + $0x328] sm:$0xff]
    %v3134 = vld [vmem:[#allocation3 + $0x330] sm:$0xff]
    %v3135 = vld [vmem:[#allocation3 + $0x338] sm:$0xff]
    %v3136 = vld [vmem:[#allocation3 + $0x340] sm:$0xff]
    %v3137 = vld [vmem:[#allocation3 + $0x348] sm:$0xff]
    %v3138 = vld [vmem:[#allocation3 + $0x350] sm:$0xff]
    %v3139 = vld [vmem:[#allocation3 + $0x358] sm:$0xff]
    %v3140 = vld [vmem:[#allocation3 + $0x360] sm:$0xff]
    %v3141 = vld [vmem:[#allocation3 + $0x368] sm:$0xff]
    %v3142 = vld [vmem:[#allocation3 + $0x370] sm:$0xff]
    %v3143 = vld [vmem:[#allocation3 + $0x378] sm:$0xff]
    %v3144 = vld [vmem:[#allocation3 + $0x380] sm:$0xff]
    %v3145 = vld [vmem:[#allocation3 + $0x388] sm:$0xff]
    %v3146 = vld [vmem:[#allocation3 + $0x390] sm:$0xff]
    %v3147 = vld [vmem:[#allocation3 + $0x398] sm:$0xff]
    %v3148 = vld [vmem:[#allocation3 + $0x3a0] sm:$0xff]
    %v3149 = vld [vmem:[#allocation3 + $0x3a8] sm:$0xff]
    %v3150 = vld [vmem:[#allocation3 + $0x3b0] sm:$0xff]
    %v3151 = vld [vmem:[#allocation3 + $0x3b8] sm:$0xff]
    %v3152 = vld [vmem:[#allocation3 + $0x3c0] sm:$0xff]
    %v3153 = vld [vmem:[#allocation3 + $0x3c8] sm:$0xff]
    %v3154 = vld [vmem:[#allocation3 + $0x3d0] sm:$0xff]
    %v3155 = vld [vmem:[#allocation3 + $0x3d8] sm:$0xff]
    %v3156 = vld [vmem:[#allocation3 + $0x3e0] sm:$0xff]
    %v3157 = vld [vmem:[#allocation3 + $0x3e8] sm:$0xff]
    %v3158 = vld [vmem:[#allocation3 + $0x3f0] sm:$0xff]
    %v3159 = vld [vmem:[#allocation3 + $0x3f8] sm:$0xff]
    %v3160 = vld [vmem:[#allocation3 + $0x400] sm:$0xff]
    %v3161 = vld [vmem:[#allocation3 + $0x408] sm:$0xff]
    %v3162 = vld [vmem:[#allocation3 + $0x410] sm:$0xff]
    %v3163 = vld [vmem:[#allocation3 + $0x418] sm:$0xff]
    %v3164 = vld [vmem:[#allocation3 + $0x420] sm:$0xff]
    %v3165 = vld [vmem:[#allocation3 + $0x428] sm:$0xff]
    %v3166 = vld [vmem:[#allocation3 + $0x430] sm:$0xff]
    %v3167 = vld [vmem:[#allocation3 + $0x438] sm:$0xff]
    %v3168 = vld [vmem:[#allocation3 + $0x440] sm:$0xff]
    %v3169 = vld [vmem:[#allocation3 + $0x448] sm:$0xff]
    %v3170 = vld [vmem:[#allocation3 + $0x450] sm:$0xff]
    %v3171 = vld [vmem:[#allocation3 + $0x458] sm:$0xff]
    %v3172 = vld [vmem:[#allocation3 + $0x460] sm:$0xff]
    %v3173 = vld [vmem:[#allocation3 + $0x468] sm:$0xff]
    %v3174 = vld [vmem:[#allocation3 + $0x470] sm:$0xff]
    %v3175 = vld [vmem:[#allocation3 + $0x478] sm:$0xff]
    %v3176 = vld [vmem:[#allocation3 + $0x480] sm:$0xff]
    %v3177 = vld [vmem:[#allocation3 + $0x488] sm:$0xff]
    %v3178 = vld [vmem:[#allocation3 + $0x490] sm:$0xff]
    %v3179 = vld [vmem:[#allocation3 + $0x498] sm:$0xff]
    %v3180 = vld [vmem:[#allocation3 + $0x4a0] sm:$0xff]
    %v3181 = vld [vmem:[#allocation3 + $0x4a8] sm:$0xff]
    %v3182 = vld [vmem:[#allocation3 + $0x4b0] sm:$0xff]
    %v3183 = vld [vmem:[#allocation3 + $0x4b8] sm:$0xff]
    %v3184 = vld [vmem:[#allocation3 + $0x4c0] sm:$0xff]
    %v3185 = vld [vmem:[#allocation3 + $0x4c8] sm:$0xff]
    %v3186 = vld [vmem:[#allocation3 + $0x4d0] sm:$0xff]
    %v3187 = vld [vmem:[#allocation3 + $0x4d8] sm:$0xff]
    %v3188 = vld [vmem:[#allocation3 + $0x4e0] sm:$0xff]
    %v3189 = vld [vmem:[#allocation3 + $0x4e8] sm:$0xff]
    %v3190 = vld [vmem:[#allocation3 + $0x4f0] sm:$0xff]
    %v3191 = vld [vmem:[#allocation3 + $0x4f8] sm:$0xff]
    %v3192 = vld [vmem:[#allocation3 + $0x500] sm:$0xff]
    %v3193 = vld [vmem:[#allocation3 + $0x508] sm:$0xff]
    %v3194 = vld [vmem:[#allocation3 + $0x510] sm:$0xff]
    %v3195 = vld [vmem:[#allocation3 + $0x518] sm:$0xff]
    %v3196 = vld [vmem:[#allocation3 + $0x520] sm:$0xff]
    %v3197 = vld [vmem:[#allocation3 + $0x528] sm:$0xff]
    %v3198 = vld [vmem:[#allocation3 + $0x530] sm:$0xff]
    %v3199 = vld [vmem:[#allocation3 + $0x538] sm:$0xff]
    %v3200 = vld [vmem:[#allocation3 + $0x540] sm:$0xff]
    %v3201 = vld [vmem:[#allocation3 + $0x548] sm:$0xff]
    %v3202 = vld [vmem:[#allocation3 + $0x550] sm:$0xff]
    %v3203 = vld [vmem:[#allocation3 + $0x558] sm:$0xff]
    %v3204 = vld [vmem:[#allocation3 + $0x560] sm:$0xff]
    %v3205 = vld [vmem:[#allocation3 + $0x568] sm:$0xff]
    %v3206 = vld [vmem:[#allocation3 + $0x570] sm:$0xff]
    %v3207 = vld [vmem:[#allocation3 + $0x578] sm:$0xff]
    %v3208 = vld [vmem:[#allocation3 + $0x580] sm:$0xff]
    %v3209 = vld [vmem:[#allocation3 + $0x588] sm:$0xff]
    %v3210 = vld [vmem:[#allocation3 + $0x590] sm:$0xff]
    %v3211 = vld [vmem:[#allocation3 + $0x598] sm:$0xff]
    %v3212 = vld [vmem:[#allocation3 + $0x5a0] sm:$0xff]
    %v3213 = vld [vmem:[#allocation3 + $0x5a8] sm:$0xff]
    %v3214 = vld [vmem:[#allocation3 + $0x5b0] sm:$0xff]
    %v3215 = vld [vmem:[#allocation3 + $0x5b8] sm:$0xff]
    %v3216 = vld [vmem:[#allocation3 + $0x5c0] sm:$0xff]
    %v3217 = vld [vmem:[#allocation3 + $0x5c8] sm:$0xff]
    %v3218 = vld [vmem:[#allocation3 + $0x5d0] sm:$0xff]
    %v3219 = vld [vmem:[#allocation3 + $0x5d8] sm:$0xff]
    %v3220 = vld [vmem:[#allocation3 + $0x5e0] sm:$0xff]
    %v3221 = vld [vmem:[#allocation3 + $0x5e8] sm:$0xff]
    %v3222 = vld [vmem:[#allocation3 + $0x5f0] sm:$0xff]
    %v3223 = vld [vmem:[#allocation3 + $0x5f8] sm:$0xff]
    %v3224 = vld [vmem:[#allocation3 + $0x600] sm:$0xff]
    %v3225 = vld [vmem:[#allocation3 + $0x608] sm:$0xff]
    %v3226 = vld [vmem:[#allocation3 + $0x610] sm:$0xff]
    %v3227 = vld [vmem:[#allocation3 + $0x618] sm:$0xff]
    %v3228 = vld [vmem:[#allocation3 + $0x620] sm:$0xff]
    %v3229 = vld [vmem:[#allocation3 + $0x628] sm:$0xff]
    %v3230 = vld [vmem:[#allocation3 + $0x630] sm:$0xff]
    %v3231 = vld [vmem:[#allocation3 + $0x638] sm:$0xff]
    %v3232 = vld [vmem:[#allocation3 + $0x640] sm:$0xff]
    %v3233 = vld [vmem:[#allocation3 + $0x648] sm:$0xff]
    %v3234 = vld [vmem:[#allocation3 + $0x650] sm:$0xff]
    %v3235 = vld [vmem:[#allocation3 + $0x658] sm:$0xff]
    %v3236 = vld [vmem:[#allocation3 + $0x660] sm:$0xff]
    %v3237 = vld [vmem:[#allocation3 + $0x668] sm:$0xff]
    %v3238 = vld [vmem:[#allocation3 + $0x670] sm:$0xff]
    %v3239 = vld [vmem:[#allocation3 + $0x678] sm:$0xff]
    %v3240 = vld [vmem:[#allocation3 + $0x680] sm:$0xff]
    %v3241 = vld [vmem:[#allocation3 + $0x688] sm:$0xff]
    %v3242 = vld [vmem:[#allocation3 + $0x690] sm:$0xff]
    %v3243 = vld [vmem:[#allocation3 + $0x698] sm:$0xff]
    %v3244 = vld [vmem:[#allocation3 + $0x6a0] sm:$0xff]
    %v3245 = vld [vmem:[#allocation3 + $0x6a8] sm:$0xff]
    %v3246 = vld [vmem:[#allocation3 + $0x6b0] sm:$0xff]
    %v3247 = vld [vmem:[#allocation3 + $0x6b8] sm:$0xff]
    %v3248 = vld [vmem:[#allocation3 + $0x6c0] sm:$0xff]
    %v3249 = vld [vmem:[#allocation3 + $0x6c8] sm:$0xff]
    %v3250 = vld [vmem:[#allocation3 + $0x6d0] sm:$0xff]
    %v3251 = vld [vmem:[#allocation3 + $0x6d8] sm:$0xff]
    %v3252 = vld [vmem:[#allocation3 + $0x6e0] sm:$0xff]
    %v3253 = vld [vmem:[#allocation3 + $0x6e8] sm:$0xff]
    %v3254 = vld [vmem:[#allocation3 + $0x6f0] sm:$0xff]
    %v3255 = vld [vmem:[#allocation3 + $0x6f8] sm:$0xff]
    %v3256 = vld [vmem:[#allocation3 + $0x700] sm:$0xff]
    %v3257 = vld [vmem:[#allocation3 + $0x708] sm:$0xff]
    %v3258 = vld [vmem:[#allocation3 + $0x710] sm:$0xff]
    %v3259 = vld [vmem:[#allocation3 + $0x718] sm:$0xff]
    %v3260 = vld [vmem:[#allocation3 + $0x720] sm:$0xff]
    %v3261 = vld [vmem:[#allocation3 + $0x728] sm:$0xff]
    %v3262 = vld [vmem:[#allocation3 + $0x730] sm:$0xff]
    %v3263 = vld [vmem:[#allocation3 + $0x738] sm:$0xff]
    %v3264 = vld [vmem:[#allocation3 + $0x740] sm:$0xff]
    %v3265 = vld [vmem:[#allocation3 + $0x748] sm:$0xff]
    %v3266 = vld [vmem:[#allocation3 + $0x750] sm:$0xff]
    %v3267 = vld [vmem:[#allocation3 + $0x758] sm:$0xff]
    %v3268 = vld [vmem:[#allocation3 + $0x760] sm:$0xff]
    %v3269 = vld [vmem:[#allocation3 + $0x768] sm:$0xff]
    %v3270 = vld [vmem:[#allocation3 + $0x770] sm:$0xff]
    %v3271 = vld [vmem:[#allocation3 + $0x778] sm:$0xff]
    %v3272 = vld [vmem:[#allocation3 + $0x780] sm:$0xff]
    %v3273 = vld [vmem:[#allocation3 + $0x788] sm:$0xff]
    %v3274 = vld [vmem:[#allocation3 + $0x790] sm:$0xff]
    %v3275 = vld [vmem:[#allocation3 + $0x798] sm:$0xff]
    %v3276 = vld [vmem:[#allocation3 + $0x7a0] sm:$0xff]
    %v3277 = vld [vmem:[#allocation3 + $0x7a8] sm:$0xff]
    %v3278 = vld [vmem:[#allocation3 + $0x7b0] sm:$0xff]
    %v3279 = vld [vmem:[#allocation3 + $0x7b8] sm:$0xff]
    %v3280 = vld [vmem:[#allocation3 + $0x7c0] sm:$0xff]
    %v3281 = vld [vmem:[#allocation3 + $0x7c8] sm:$0xff]
    %v3282 = vld [vmem:[#allocation3 + $0x7d0] sm:$0xff]
    %v3283 = vld [vmem:[#allocation3 + $0x7d8] sm:$0xff]
    %v3284 = vld [vmem:[#allocation3 + $0x7e0] sm:$0xff]
    %v3285 = vld [vmem:[#allocation3 + $0x7e8] sm:$0xff]
    %v3286 = vld [vmem:[#allocation3 + $0x7f0] sm:$0xff]
    %v3287 = vld [vmem:[#allocation3 + $0x7f8] sm:$0xff]
    %v3288 = vld [vmem:[#allocation3 + $0x800] sm:$0xff]
    %v3289 = vld [vmem:[#allocation3 + $0x808] sm:$0xff]
    %v3290 = vld [vmem:[#allocation3 + $0x810] sm:$0xff]
    %v3291 = vld [vmem:[#allocation3 + $0x818] sm:$0xff]
    %v3292 = vld [vmem:[#allocation3 + $0x820] sm:$0xff]
    %v3293 = vld [vmem:[#allocation3 + $0x828] sm:$0xff]
    %v3294 = vld [vmem:[#allocation3 + $0x830] sm:$0xff]
    %v3295 = vld [vmem:[#allocation3 + $0x838] sm:$0xff]
    %v3296 = vld [vmem:[#allocation3 + $0x840] sm:$0xff]
    %v3297 = vld [vmem:[#allocation3 + $0x848] sm:$0xff]
    %v3298 = vld [vmem:[#allocation3 + $0x850] sm:$0xff]
    %v3299 = vld [vmem:[#allocation3 + $0x858] sm:$0xff]
    %v3300 = vld [vmem:[#allocation3 + $0x860] sm:$0xff]
    %v3301 = vld [vmem:[#allocation3 + $0x868] sm:$0xff]
    %v3302 = vld [vmem:[#allocation3 + $0x870] sm:$0xff]
    %v3303 = vld [vmem:[#allocation3 + $0x878] sm:$0xff]
    %v3304 = vld [vmem:[#allocation3 + $0x880] sm:$0xff]
    %v3305 = vld [vmem:[#allocation3 + $0x888] sm:$0xff]
    %v3306 = vld [vmem:[#allocation3 + $0x890] sm:$0xff]
    %v3307 = vld [vmem:[#allocation3 + $0x898] sm:$0xff]
    %v3308 = vld [vmem:[#allocation3 + $0x8a0] sm:$0xff]
    %v3309 = vld [vmem:[#allocation3 + $0x8a8] sm:$0xff]
    %v3310 = vld [vmem:[#allocation3 + $0x8b0] sm:$0xff]
    %v3311 = vld [vmem:[#allocation3 + $0x8b8] sm:$0xff]
    %v3312 = vld [vmem:[#allocation3 + $0x8c0] sm:$0xff]
    %v3313 = vld [vmem:[#allocation3 + $0x8c8] sm:$0xff]
    %v3314 = vld [vmem:[#allocation3 + $0x8d0] sm:$0xff]
    %v3315 = vld [vmem:[#allocation3 + $0x8d8] sm:$0xff]
    %v3316 = vld [vmem:[#allocation3 + $0x8e0] sm:$0xff]
    %v3317 = vld [vmem:[#allocation3 + $0x8e8] sm:$0xff]
    %v3318 = vld [vmem:[#allocation3 + $0x8f0] sm:$0xff]
    %v3319 = vld [vmem:[#allocation3 + $0x8f8] sm:$0xff]
    %v3320 = vld [vmem:[#allocation3 + $0x900] sm:$0xff]
    %v3321 = vld [vmem:[#allocation3 + $0x908] sm:$0xff]
    %v3322 = vld [vmem:[#allocation3 + $0x910] sm:$0xff]
    %v3323 = vld [vmem:[#allocation3 + $0x918] sm:$0xff]
    %v3324 = vld [vmem:[#allocation3 + $0x920] sm:$0xff]
    %v3325 = vld [vmem:[#allocation3 + $0x928] sm:$0xff]
    %v3326 = vld [vmem:[#allocation3 + $0x930] sm:$0xff]
    %v3327 = vld [vmem:[#allocation3 + $0x938] sm:$0xff]
    %v3328 = vld [vmem:[#allocation3 + $0x940] sm:$0xff]
    %v3329 = vld [vmem:[#allocation3 + $0x948] sm:$0xff]
    %v3330 = vld [vmem:[#allocation3 + $0x950] sm:$0xff]
    %v3331 = vld [vmem:[#allocation3 + $0x958] sm:$0xff]
    %v3332 = vld [vmem:[#allocation3 + $0x960] sm:$0xff]
    %v3333 = vld [vmem:[#allocation3 + $0x968] sm:$0xff]
    %v3334 = vld [vmem:[#allocation3 + $0x970] sm:$0xff]
    %v3335 = vld [vmem:[#allocation3 + $0x978] sm:$0xff]
    %v3336 = vld [vmem:[#allocation3 + $0x980] sm:$0xff]
    %v3337 = vld [vmem:[#allocation3 + $0x988] sm:$0xff]
    %v3338 = vld [vmem:[#allocation3 + $0x990] sm:$0xff]
    %v3339 = vld [vmem:[#allocation3 + $0x998] sm:$0xff]
    %v3340 = vld [vmem:[#allocation3 + $0x9a0] sm:$0xff]
    %v3341 = vld [vmem:[#allocation3 + $0x9a8] sm:$0xff]
    %v3342 = vld [vmem:[#allocation3 + $0x9b0] sm:$0xff]
    %v3343 = vld [vmem:[#allocation3 + $0x9b8] sm:$0xff]
    %v3344 = vld [vmem:[#allocation3 + $0x9c0] sm:$0xff]
    %v3345 = vld [vmem:[#allocation3 + $0x9c8] sm:$0xff]
    %v3346 = vld [vmem:[#allocation3 + $0x9d0] sm:$0xff]
    %v3347 = vld [vmem:[#allocation3 + $0x9d8] sm:$0xff]
    %v3348 = vld [vmem:[#allocation3 + $0x9e0] sm:$0xff]
    %v3349 = vld [vmem:[#allocation3 + $0x9e8] sm:$0xff]
    %v3350 = vld [vmem:[#allocation3 + $0x9f0] sm:$0xff]
    %v3351 = vld [vmem:[#allocation3 + $0x9f8] sm:$0xff]
    %v3352 = vld [vmem:[#allocation3 + $0xa00] sm:$0xff]
    %v3353 = vld [vmem:[#allocation3 + $0xa08] sm:$0xff]
    %v3354 = vld [vmem:[#allocation3 + $0xa10] sm:$0xff]
    %v3355 = vld [vmem:[#allocation3 + $0xa18] sm:$0xff]
    %v3356 = vld [vmem:[#allocation3 + $0xa20] sm:$0xff]
    %v3357 = vld [vmem:[#allocation3 + $0xa28] sm:$0xff]
    %v3358 = vld [vmem:[#allocation3 + $0xa30] sm:$0xff]
    %v3359 = vld [vmem:[#allocation3 + $0xa38] sm:$0xff]
    %v3360 = vld [vmem:[#allocation3 + $0xa40] sm:$0xff]
    %v3361 = vld [vmem:[#allocation3 + $0xa48] sm:$0xff]
    %v3362 = vld [vmem:[#allocation3 + $0xa50] sm:$0xff]
    %v3363 = vld [vmem:[#allocation3 + $0xa58] sm:$0xff]
    %v3364 = vld [vmem:[#allocation3 + $0xa60] sm:$0xff]
    %v3365 = vld [vmem:[#allocation3 + $0xa68] sm:$0xff]
    %v3366 = vld [vmem:[#allocation3 + $0xa70] sm:$0xff]
    %v3367 = vld [vmem:[#allocation3 + $0xa78] sm:$0xff]
    %v3368 = vld [vmem:[#allocation3 + $0xa80] sm:$0xff]
    %v3369 = vld [vmem:[#allocation3 + $0xa88] sm:$0xff]
    %v3370 = vld [vmem:[#allocation3 + $0xa90] sm:$0xff]
    %v3371 = vld [vmem:[#allocation3 + $0xa98] sm:$0xff]
    %v3372 = vld [vmem:[#allocation3 + $0xaa0] sm:$0xff]
    %v3373 = vld [vmem:[#allocation3 + $0xaa8] sm:$0xff]
    %v3374 = vld [vmem:[#allocation3 + $0xab0] sm:$0xff]
    %v3375 = vld [vmem:[#allocation3 + $0xab8] sm:$0xff]
    %v3376 = vld [vmem:[#allocation3 + $0xac0] sm:$0xff]
    %v3377 = vld [vmem:[#allocation3 + $0xac8] sm:$0xff]
    %v3378 = vld [vmem:[#allocation3 + $0xad0] sm:$0xff]
    %v3379 = vld [vmem:[#allocation3 + $0xad8] sm:$0xff]
    %v3380 = vld [vmem:[#allocation3 + $0xae0] sm:$0xff]
    %v3381 = vld [vmem:[#allocation3 + $0xae8] sm:$0xff]
    %v3382 = vld [vmem:[#allocation3 + $0xaf0] sm:$0xff]
    %v3383 = vld [vmem:[#allocation3 + $0xaf8] sm:$0xff]
    %v3384 = vld [vmem:[#allocation3 + $0xb00] sm:$0xff]
    %v3385 = vld [vmem:[#allocation3 + $0xb08] sm:$0xff]
    %v3386 = vld [vmem:[#allocation3 + $0xb10] sm:$0xff]
    %v3387 = vld [vmem:[#allocation3 + $0xb18] sm:$0xff]
    %v3388 = vld [vmem:[#allocation3 + $0xb20] sm:$0xff]
    %v3389 = vld [vmem:[#allocation3 + $0xb28] sm:$0xff]
    %v3390 = vld [vmem:[#allocation3 + $0xb30] sm:$0xff]
    %v3391 = vld [vmem:[#allocation3 + $0xb38] sm:$0xff]
    %v3392 = vld [vmem:[#allocation3 + $0xb40] sm:$0xff]
    %v3393 = vld [vmem:[#allocation3 + $0xb48] sm:$0xff]
    %v3394 = vld [vmem:[#allocation3 + $0xb50] sm:$0xff]
    %v3395 = vld [vmem:[#allocation3 + $0xb58] sm:$0xff]
    %v3396 = vld [vmem:[#allocation3 + $0xb60] sm:$0xff]
    %v3397 = vld [vmem:[#allocation3 + $0xb68] sm:$0xff]
    %v3398 = vld [vmem:[#allocation3 + $0xb70] sm:$0xff]
    %v3399 = vld [vmem:[#allocation3 + $0xb78] sm:$0xff]
    %v3400 = vld [vmem:[#allocation3 + $0xb80] sm:$0xff]
    %v3401 = vld [vmem:[#allocation3 + $0xb88] sm:$0xff]
    %v3402 = vld [vmem:[#allocation3 + $0xb90] sm:$0xff]
    %v3403 = vld [vmem:[#allocation3 + $0xb98] sm:$0xff]
    %v3404 = vld [vmem:[#allocation3 + $0xba0] sm:$0xff]
    %v3405 = vld [vmem:[#allocation3 + $0xba8] sm:$0xff]
    %v3406 = vld [vmem:[#allocation3 + $0xbb0] sm:$0xff]
    %v3407 = vld [vmem:[#allocation3 + $0xbb8] sm:$0xff]
    %v3408 = vld [vmem:[#allocation3 + $0xbc0] sm:$0xff]
    %v3409 = vld [vmem:[#allocation3 + $0xbc8] sm:$0xff]
    %v3410 = vld [vmem:[#allocation3 + $0xbd0] sm:$0xff]
    %v3411 = vld [vmem:[#allocation3 + $0xbd8] sm:$0xff]
    %v3412 = vld [vmem:[#allocation3 + $0xbe0] sm:$0xff]
    %v3413 = vld [vmem:[#allocation3 + $0xbe8] sm:$0xff]
    %v3414 = vld [vmem:[#allocation3 + $0xbf0] sm:$0xff]
    %v3415 = vld [vmem:[#allocation3 + $0xbf8] sm:$0xff]
    %v3416 = vld [vmem:[#allocation3 + $0xc00] sm:$0xff]
    %v3417 = vld [vmem:[#allocation3 + $0xc08] sm:$0xff]
    %v3418 = vld [vmem:[#allocation3 + $0xc10] sm:$0xff]
    %v3419 = vld [vmem:[#allocation3 + $0xc18] sm:$0xff]
    %v3420 = vld [vmem:[#allocation3 + $0xc20] sm:$0xff]
    %v3421 = vld [vmem:[#allocation3 + $0xc28] sm:$0xff]
    %v3422 = vld [vmem:[#allocation3 + $0xc30] sm:$0xff]
    %v3423 = vld [vmem:[#allocation3 + $0xc38] sm:$0xff]
    %v3424 = vld [vmem:[#allocation3 + $0xc40] sm:$0xff]
    %v3425 = vld [vmem:[#allocation3 + $0xc48] sm:$0xff]
    %v3426 = vld [vmem:[#allocation3 + $0xc50] sm:$0xff]
    %v3427 = vld [vmem:[#allocation3 + $0xc58] sm:$0xff]
    %v3428 = vld [vmem:[#allocation3 + $0xc60] sm:$0xff]
    %v3429 = vld [vmem:[#allocation3 + $0xc68] sm:$0xff]
    %v3430 = vld [vmem:[#allocation3 + $0xc70] sm:$0xff]
    %v3431 = vld [vmem:[#allocation3 + $0xc78] sm:$0xff]
    %v3432 = vld [vmem:[#allocation3 + $0xc80] sm:$0xff]
    %v3433 = vld [vmem:[#allocation3 + $0xc88] sm:$0xff]
    %v3434 = vld [vmem:[#allocation3 + $0xc90] sm:$0xff]
    %v3435 = vld [vmem:[#allocation3 + $0xc98] sm:$0xff]
    %v3436 = vld [vmem:[#allocation3 + $0xca0] sm:$0xff]
    %v3437 = vld [vmem:[#allocation3 + $0xca8] sm:$0xff]
    %v3438 = vld [vmem:[#allocation3 + $0xcb0] sm:$0xff]
    %v3439 = vld [vmem:[#allocation3 + $0xcb8] sm:$0xff]
    %v3440 = vld [vmem:[#allocation3 + $0xcc0] sm:$0xff]
    %v3441 = vld [vmem:[#allocation3 + $0xcc8] sm:$0xff]
    %v3442 = vld [vmem:[#allocation3 + $0xcd0] sm:$0xff]
    %v3443 = vld [vmem:[#allocation3 + $0xcd8] sm:$0xff]
    %v3444 = vld [vmem:[#allocation3 + $0xce0] sm:$0xff]
    %v3445 = vld [vmem:[#allocation3 + $0xce8] sm:$0xff]
    %v3446 = vld [vmem:[#allocation3 + $0xcf0] sm:$0xff]
    %v3447 = vld [vmem:[#allocation3 + $0xcf8] sm:$0xff]
    %v3448 = vld [vmem:[#allocation3 + $0xd00] sm:$0xff]
    %v3449 = vld [vmem:[#allocation3 + $0xd08] sm:$0xff]
    %v3450 = vld [vmem:[#allocation3 + $0xd10] sm:$0xff]
    %v3451 = vld [vmem:[#allocation3 + $0xd18] sm:$0xff]
    %v3452 = vld [vmem:[#allocation3 + $0xd20] sm:$0xff]
    %v3453 = vld [vmem:[#allocation3 + $0xd28] sm:$0xff]
    %v3454 = vld [vmem:[#allocation3 + $0xd30] sm:$0xff]
    %v3455 = vld [vmem:[#allocation3 + $0xd38] sm:$0xff]
    %v3456 = vld [vmem:[#allocation3 + $0xd40] sm:$0xff]
    %v3457 = vld [vmem:[#allocation3 + $0xd48] sm:$0xff]
    %v3458 = vld [vmem:[#allocation3 + $0xd50] sm:$0xff]
    %v3459 = vld [vmem:[#allocation3 + $0xd58] sm:$0xff]
    %v3460 = vld [vmem:[#allocation3 + $0xd60] sm:$0xff]
    %v3461 = vld [vmem:[#allocation3 + $0xd68] sm:$0xff]
    %v3462 = vld [vmem:[#allocation3 + $0xd70] sm:$0xff]
    %v3463 = vld [vmem:[#allocation3 + $0xd78] sm:$0xff]
    %v3464 = vld [vmem:[#allocation3 + $0xd80] sm:$0xff]
    %v3465 = vld [vmem:[#allocation3 + $0xd88] sm:$0xff]
    %v3466 = vld [vmem:[#allocation3 + $0xd90] sm:$0xff]
    %v3467 = vld [vmem:[#allocation3 + $0xd98] sm:$0xff]
    %v3468 = vld [vmem:[#allocation3 + $0xda0] sm:$0xff]
    %v3469 = vld [vmem:[#allocation3 + $0xda8] sm:$0xff]
    %v3470 = vld [vmem:[#allocation3 + $0xdb0] sm:$0xff]
    %v3471 = vld [vmem:[#allocation3 + $0xdb8] sm:$0xff]
    %v3472 = vld [vmem:[#allocation3 + $0xdc0] sm:$0xff]
    %v3473 = vld [vmem:[#allocation3 + $0xdc8] sm:$0xff]
    %v3474 = vld [vmem:[#allocation3 + $0xdd0] sm:$0xff]
    %v3475 = vld [vmem:[#allocation3 + $0xdd8] sm:$0xff]
    %v3476 = vld [vmem:[#allocation3 + $0xde0] sm:$0xff]
    %v3477 = vld [vmem:[#allocation3 + $0xde8] sm:$0xff]
    %v3478 = vld [vmem:[#allocation3 + $0xdf0] sm:$0xff]
    %v3479 = vld [vmem:[#allocation3 + $0xdf8] sm:$0xff]
    %v3480 = vld [vmem:[#allocation3 + $0xe00] sm:$0xff]
    %v3481 = vld [vmem:[#allocation3 + $0xe08] sm:$0xff]
    %v3482 = vld [vmem:[#allocation3 + $0xe10] sm:$0xff]
    %v3483 = vld [vmem:[#allocation3 + $0xe18] sm:$0xff]
    %v3484 = vld [vmem:[#allocation3 + $0xe20] sm:$0xff]
    %v3485 = vld [vmem:[#allocation3 + $0xe28] sm:$0xff]
    %v3486 = vld [vmem:[#allocation3 + $0xe30] sm:$0xff]
    %v3487 = vld [vmem:[#allocation3 + $0xe38] sm:$0xff]
    %v3488 = vld [vmem:[#allocation3 + $0xe40] sm:$0xff]
    %v3489 = vld [vmem:[#allocation3 + $0xe48] sm:$0xff]
    %v3490 = vld [vmem:[#allocation3 + $0xe50] sm:$0xff]
    %v3491 = vld [vmem:[#allocation3 + $0xe58] sm:$0xff]
    %v3492 = vld [vmem:[#allocation3 + $0xe60] sm:$0xff]
    %v3493 = vld [vmem:[#allocation3 + $0xe68] sm:$0xff]
    %v3494 = vld [vmem:[#allocation3 + $0xe70] sm:$0xff]
    %v3495 = vld [vmem:[#allocation3 + $0xe78] sm:$0xff]
    %v3496 = vld [vmem:[#allocation3 + $0xe80] sm:$0xff]
    %v3497 = vld [vmem:[#allocation3 + $0xe88] sm:$0xff]
    %v3498 = vld [vmem:[#allocation3 + $0xe90] sm:$0xff]
    %v3499 = vld [vmem:[#allocation3 + $0xe98] sm:$0xff]
    %v3500 = vld [vmem:[#allocation3 + $0xea0] sm:$0xff]
    %v3501 = vld [vmem:[#allocation3 + $0xea8] sm:$0xff]
    %v3502 = vld [vmem:[#allocation3 + $0xeb0] sm:$0xff]
    %v3503 = vld [vmem:[#allocation3 + $0xeb8] sm:$0xff]
    %v3504 = vld [vmem:[#allocation3 + $0xec0] sm:$0xff]
    %v3505 = vld [vmem:[#allocation3 + $0xec8] sm:$0xff]
    %v3506 = vld [vmem:[#allocation3 + $0xed0] sm:$0xff]
    %v3507 = vld [vmem:[#allocation3 + $0xed8] sm:$0xff]
    %v3508 = vld [vmem:[#allocation3 + $0xee0] sm:$0xff]
    %v3509 = vld [vmem:[#allocation3 + $0xee8] sm:$0xff]
    %v3510 = vld [vmem:[#allocation3 + $0xef0] sm:$0xff]
    %v3511 = vld [vmem:[#allocation3 + $0xef8] sm:$0xff]
    %v3512 = vld [vmem:[#allocation3 + $0xf00] sm:$0xff]
    %v3513 = vld [vmem:[#allocation3 + $0xf08] sm:$0xff]
    %v3514 = vld [vmem:[#allocation3 + $0xf10] sm:$0xff]
    %v3515 = vld [vmem:[#allocation3 + $0xf18] sm:$0xff]
    %v3516 = vld [vmem:[#allocation3 + $0xf20] sm:$0xff]
    %v3517 = vld [vmem:[#allocation3 + $0xf28] sm:$0xff]
    %v3518 = vld [vmem:[#allocation3 + $0xf30] sm:$0xff]
    %v3519 = vld [vmem:[#allocation3 + $0xf38] sm:$0xff]
    %v3520 = vld [vmem:[#allocation3 + $0xf40] sm:$0xff]
    %v3521 = vld [vmem:[#allocation3 + $0xf48] sm:$0xff]
    %v3522 = vld [vmem:[#allocation3 + $0xf50] sm:$0xff]
    %v3523 = vld [vmem:[#allocation3 + $0xf58] sm:$0xff]
    %v3524 = vld [vmem:[#allocation3 + $0xf60] sm:$0xff]
    %v3525 = vld [vmem:[#allocation3 + $0xf68] sm:$0xff]
    %v3526 = vld [vmem:[#allocation3 + $0xf70] sm:$0xff]
    %v3527 = vld [vmem:[#allocation3 + $0xf78] sm:$0xff]
    %v3528 = vld [vmem:[#allocation3 + $0xf80] sm:$0xff]
    %v3529 = vld [vmem:[#allocation3 + $0xf88] sm:$0xff]
    %v3530 = vld [vmem:[#allocation3 + $0xf90] sm:$0xff]
    %v3531 = vld [vmem:[#allocation3 + $0xf98] sm:$0xff]
    %v3532 = vld [vmem:[#allocation3 + $0xfa0] sm:$0xff]
    %v3533 = vld [vmem:[#allocation3 + $0xfa8] sm:$0xff]
    %v3534 = vld [vmem:[#allocation3 + $0xfb0] sm:$0xff]
    %v3535 = vld [vmem:[#allocation3 + $0xfb8] sm:$0xff]
    %v3536 = vld [vmem:[#allocation3 + $0xfc0] sm:$0xff]
    %v3537 = vld [vmem:[#allocation3 + $0xfc8] sm:$0xff]
    %v3538 = vld [vmem:[#allocation3 + $0xfd0] sm:$0xff]
    %v3539 = vld [vmem:[#allocation3 + $0xfd8] sm:$0xff]
    %v3540 = vld [vmem:[#allocation3 + $0xfe0] sm:$0xff]
    %v3541 = vld [vmem:[#allocation3 + $0xfe8] sm:$0xff]
    %v3542 = vld [vmem:[#allocation3 + $0xff0] sm:$0xff]
    %v3543 = vld [vmem:[#allocation3 + $0xff8] sm:$0xff]
    %3544 = vmatprep.subr.bf16.mxu0 %v3033
    %3545 = vmatpush1.bf16.msra.mxu0 %v3032
    %3546 = vmatprep.subr.bf16.mxu0 %v3041
    %3547 = vmatpush1.bf16.msra.mxu0 %v3040
    %3548 = vmatprep.subr.bf16.mxu0 %v3049
    %3549 = vmatpush1.bf16.msra.mxu0 %v3048
    %3550 = vmatprep.subr.bf16.mxu0 %v3057
    %3551 = vmatpush1.bf16.msra.mxu0 %v3056
    %3552 = vmatprep.subr.bf16.mxu0 %v3065
    %3553 = vmatpush1.bf16.msra.mxu0 %v3064
    %3554 = vmatprep.subr.bf16.mxu0 %v3073
    %3555 = vmatpush1.bf16.msra.mxu0 %v3072
    %3556 = vmatprep.subr.bf16.mxu0 %v3081
    %3557 = vmatpush1.bf16.msra.mxu0 %v3080
    %3558 = vmatprep.subr.bf16.mxu0 %v3089
    %3559 = vmatpush1.bf16.msra.mxu0 %v3088
    %3560 = vmatprep.subr.bf16.mxu0 %v3097
    %3561 = vmatpush1.bf16.msra.mxu0 %v3096
    %3562 = vmatprep.subr.bf16.mxu0 %v3105
    %3563 = vmatpush1.bf16.msra.mxu0 %v3104
    %3564 = vmatprep.subr.bf16.mxu0 %v3113
    %3565 = vmatpush1.bf16.msra.mxu0 %v3112
    %3566 = vmatprep.subr.bf16.mxu0 %v3121
    %3567 = vmatpush1.bf16.msra.mxu0 %v3120
    %3568 = vmatprep.subr.bf16.mxu0 %v3129
    %3569 = vmatpush1.bf16.msra.mxu0 %v3128
    %3570 = vmatprep.subr.bf16.mxu0 %v3137
    %3571 = vmatpush1.bf16.msra.mxu0 %v3136
    %3572 = vmatprep.subr.bf16.mxu0 %v3145
    %3573 = vmatpush1.bf16.msra.mxu0 %v3144
    %3574 = vmatprep.subr.bf16.mxu0 %v3153
    %3575 = vmatpush1.bf16.msra.mxu0 %v3152
    %3576 = vmatprep.mubr.bf16.mxu0 %v3025
    %3577 = vmatmul.mubr.bf16.gmra.mrb[0].mxu0 %v3024
    %v3578 = vpop.f32.mrb[0].mxu0
    %v3579 = vadd.f32 0.0, %v3578
    %v3580 = vpop.f32.mrb[0].mxu0
    %v3581 = vadd.f32 0.0, %v3580
    %v3582 = vpop.f32.mrb[0].mxu0
    %v3583 = vpop.f32.mrb[0].mxu0
    %3584 = vdwg.mxu0
    %3585 = vmatprep.subr.bf16.mxu0 %v3161
    %3586 = vmatpush1.bf16.msra.mxu0 %v3160
    %3587 = vmatprep.subr.bf16.mxu0 %v3169
    %3588 = vmatpush1.bf16.msra.mxu0 %v3168
    %3589 = vmatprep.subr.bf16.mxu0 %v3177
    %3590 = vmatpush1.bf16.msra.mxu0 %v3176
    %3591 = vmatprep.subr.bf16.mxu0 %v3185
    %3592 = vmatpush1.bf16.msra.mxu0 %v3184
    %3593 = vmatprep.subr.bf16.mxu0 %v3193
    %3594 = vmatpush1.bf16.msra.mxu0 %v3192
    %3595 = vmatprep.subr.bf16.mxu0 %v3201
    %3596 = vmatpush1.bf16.msra.mxu0 %v3200
    %3597 = vmatprep.subr.bf16.mxu0 %v3209
    %3598 = vmatpush1.bf16.msra.mxu0 %v3208
    %3599 = vmatprep.subr.bf16.mxu0 %v3217
    %3600 = vmatpush1.bf16.msra.mxu0 %v3216
    %3601 = vmatprep.subr.bf16.mxu0 %v3225
    %3602 = vmatpush1.bf16.msra.mxu0 %v3224
    %3603 = vmatprep.subr.bf16.mxu0 %v3233
    %3604 = vmatpush1.bf16.msra.mxu0 %v3232
    %3605 = vmatprep.subr.bf16.mxu0 %v3241
    %3606 = vmatpush1.bf16.msra.mxu0 %v3240
    %3607 = vmatprep.subr.bf16.mxu0 %v3249
    %3608 = vmatpush1.bf16.msra.mxu0 %v3248
    %3609 = vmatprep.subr.bf16.mxu0 %v3257
    %3610 = vmatpush1.bf16.msra.mxu0 %v3256
    %3611 = vmatprep.subr.bf16.mxu0 %v3265
    %3612 = vmatpush1.bf16.msra.mxu0 %v3264
    %3613 = vmatprep.subr.bf16.mxu0 %v3273
    %3614 = vmatpush1.bf16.msra.mxu0 %v3272
    %3615 = vmatprep.subr.bf16.mxu0 %v3281
    %3616 = vmatpush1.bf16.msra.mxu0 %v3280
    %3617 = vmatprep.mubr.bf16.mxu0 %v3027
    %3618 = vmatmul.mubr.bf16.gmra.mrb[0].mxu0 %v3026
    %v3619 = vpop.f32.mrb[0].mxu0
    %v3620 = vadd.f32 %v3579, %v3619
    %v3621 = vpop.f32.mrb[0].mxu0
    %v3622 = vadd.f32 %v3581, %v3621
    %v3623 = vpop.f32.mrb[0].mxu0
    %v3624 = vpop.f32.mrb[0].mxu0
    %3625 = vdwg.mxu0
    %3626 = vmatprep.subr.bf16.mxu0 %v3289
    %3627 = vmatpush1.bf16.msra.mxu0 %v3288
    %3628 = vmatprep.subr.bf16.mxu0 %v3297
    %3629 = vmatpush1.bf16.msra.mxu0 %v3296
    %3630 = vmatprep.subr.bf16.mxu0 %v3305
    %3631 = vmatpush1.bf16.msra.mxu0 %v3304
    %3632 = vmatprep.subr.bf16.mxu0 %v3313
    %3633 = vmatpush1.bf16.msra.mxu0 %v3312
    %3634 = vmatprep.subr.bf16.mxu0 %v3321
    %3635 = vmatpush1.bf16.msra.mxu0 %v3320
    %3636 = vmatprep.subr.bf16.mxu0 %v3329
    %3637 = vmatpush1.bf16.msra.mxu0 %v3328
    %3638 = vmatprep.subr.bf16.mxu0 %v3337
    %3639 = vmatpush1.bf16.msra.mxu0 %v3336
    %3640 = vmatprep.subr.bf16.mxu0 %v3345
    %3641 = vmatpush1.bf16.msra.mxu0 %v3344
    %3642 = vmatprep.subr.bf16.mxu0 %v3353
    %3643 = vmatpush1.bf16.msra.mxu0 %v3352
    %3644 = vmatprep.subr.bf16.mxu0 %v3361
    %3645 = vmatpush1.bf16.msra.mxu0 %v3360
    %3646 = vmatprep.subr.bf16.mxu0 %v3369
    %3647 = vmatpush1.bf16.msra.mxu0 %v3368
    %3648 = vmatprep.subr.bf16.mxu0 %v3377
    %3649 = vmatpush1.bf16.msra.mxu0 %v3376
    %3650 = vmatprep.subr.bf16.mxu0 %v3385
    %3651 = vmatpush1.bf16.msra.mxu0 %v3384
    %3652 = vmatprep.subr.bf16.mxu0 %v3393
    %3653 = vmatpush1.bf16.msra.mxu0 %v3392
    %3654 = vmatprep.subr.bf16.mxu0 %v3401
    %3655 = vmatpush1.bf16.msra.mxu0 %v3400
    %3656 = vmatprep.subr.bf16.mxu0 %v3409
    %3657 = vmatpush1.bf16.msra.mxu0 %v3408
    %3658 = vmatprep.mubr.bf16.mxu0 %v3029
    %3659 = vmatmul.mubr.bf16.gmra.mrb[0].mxu0 %v3028
    %v3660 = vpop.f32.mrb[0].mxu0
    %v3661 = vadd.f32 %v3620, %v3660
    %v3662 = vpop.f32.mrb[0].mxu0
    %v3663 = vadd.f32 %v3622, %v3662
    %v3664 = vpop.f32.mrb[0].mxu0
    %v3665 = vpop.f32.mrb[0].mxu0
    %3666 = vdwg.mxu0
    %3667 = vmatprep.subr.bf16.mxu0 %v3417
    %3668 = vmatpush1.bf16.msra.mxu0 %v3416
    %3669 = vmatprep.subr.bf16.mxu0 %v3425
    %3670 = vmatpush1.bf16.msra.mxu0 %v3424
    %3671 = vmatprep.subr.bf16.mxu0 %v3433
    %3672 = vmatpush1.bf16.msra.mxu0 %v3432
    %3673 = vmatprep.subr.bf16.mxu0 %v3441
    %3674 = vmatpush1.bf16.msra.mxu0 %v3440
    %3675 = vmatprep.subr.bf16.mxu0 %v3449
    %3676 = vmatpush1.bf16.msra.mxu0 %v3448
    %3677 = vmatprep.subr.bf16.mxu0 %v3457
    %3678 = vmatpush1.bf16.msra.mxu0 %v3456
    %3679 = vmatprep.subr.bf16.mxu0 %v3465
    %3680 = vmatpush1.bf16.msra.mxu0 %v3464
    %3681 = vmatprep.subr.bf16.mxu0 %v3473
    %3682 = vmatpush1.bf16.msra.mxu0 %v3472
    %3683 = vmatprep.subr.bf16.mxu0 %v3481
    %3684 = vmatpush1.bf16.msra.mxu0 %v3480
    %3685 = vmatprep.subr.bf16.mxu0 %v3489
    %3686 = vmatpush1.bf16.msra.mxu0 %v3488
    %3687 = vmatprep.subr.bf16.mxu0 %v3497
    %3688 = vmatpush1.bf16.msra.mxu0 %v3496
    %3689 = vmatprep.subr.bf16.mxu0 %v3505
    %3690 = vmatpush1.bf16.msra.mxu0 %v3504
    %3691 = vmatprep.subr.bf16.mxu0 %v3513
    %3692 = vmatpush1.bf16.msra.mxu0 %v3512
    %3693 = vmatprep.subr.bf16.mxu0 %v3521
    %3694 = vmatpush1.bf16.msra.mxu0 %v3520
    %3695 = vmatprep.subr.bf16.mxu0 %v3529
    %3696 = vmatpush1.bf16.msra.mxu0 %v3528
    %3697 = vmatprep.subr.bf16.mxu0 %v3537
    %3698 = vmatpush1.bf16.msra.mxu0 %v3536
    %3699 = vmatprep.mubr.bf16.mxu0 %v3031
    %3700 = vmatmul.mubr.bf16.gmra.mrb[0].mxu0 %v3030
    %v3701 = vpop.f32.mrb[0].mxu0
    %v3702 = vadd.f32 %v3661, %v3701
    %v3703 = vpop.f32.mrb[0].mxu0
    %v3704 = vadd.f32 %v3663, %v3703
    %v3705 = vpop.f32.mrb[0].mxu0
    %v3706 = vpop.f32.mrb[0].mxu0
    %3707 = vdwg.mxu0
    %3708 = vmatprep.subr.bf16.mxu0 %v3035
    %3709 = vmatpush1.bf16.msra.mxu0 %v3034
    %3710 = vmatprep.subr.bf16.mxu0 %v3043
    %3711 = vmatpush1.bf16.msra.mxu0 %v3042
    %3712 = vmatprep.subr.bf16.mxu0 %v3051
    %3713 = vmatpush1.bf16.msra.mxu0 %v3050
    %3714 = vmatprep.subr.bf16.mxu0 %v3059
    %3715 = vmatpush1.bf16.msra.mxu0 %v3058
    %3716 = vmatprep.subr.bf16.mxu0 %v3067
    %3717 = vmatpush1.bf16.msra.mxu0 %v3066
    %3718 = vmatprep.subr.bf16.mxu0 %v3075
    %3719 = vmatpush1.bf16.msra.mxu0 %v3074
    %3720 = vmatprep.subr.bf16.mxu0 %v3083
    %3721 = vmatpush1.bf16.msra.mxu0 %v3082
    %3722 = vmatprep.subr.bf16.mxu0 %v3091
    %3723 = vmatpush1.bf16.msra.mxu0 %v3090
    %3724 = vmatprep.subr.bf16.mxu0 %v3099
    %3725 = vmatpush1.bf16.msra.mxu0 %v3098
    %3726 = vmatprep.subr.bf16.mxu0 %v3107
    %3727 = vmatpush1.bf16.msra.mxu0 %v3106
    %3728 = vmatprep.subr.bf16.mxu0 %v3115
    %3729 = vmatpush1.bf16.msra.mxu0 %v3114
    %3730 = vmatprep.subr.bf16.mxu0 %v3123
    %3731 = vmatpush1.bf16.msra.mxu0 %v3122
    %3732 = vmatprep.subr.bf16.mxu0 %v3131
    %3733 = vmatpush1.bf16.msra.mxu0 %v3130
    %3734 = vmatprep.subr.bf16.mxu0 %v3139
    %3735 = vmatpush1.bf16.msra.mxu0 %v3138
    %3736 = vmatprep.subr.bf16.mxu0 %v3147
    %3737 = vmatpush1.bf16.msra.mxu0 %v3146
    %3738 = vmatprep.subr.bf16.mxu0 %v3155
    %3739 = vmatpush1.bf16.msra.mxu0 %v3154
    %3740 = vmatprep.mubr.bf16.mxu0 %v3025
    %3741 = vmatmul.mubr.bf16.gmra.mrb[0].mxu0 %v3024
    %v3742 = vpop.f32.mrb[0].mxu0
    %v3743 = vadd.f32 0.0, %v3742
    %v3744 = vpop.f32.mrb[0].mxu0
    %v3745 = vadd.f32 0.0, %v3744
    %v3746 = vpop.f32.mrb[0].mxu0
    %v3747 = vpop.f32.mrb[0].mxu0
    %3748 = vdwg.mxu0
    %3749 = vmatprep.subr.bf16.mxu0 %v3163
    %3750 = vmatpush1.bf16.msra.mxu0 %v3162
    %3751 = vmatprep.subr.bf16.mxu0 %v3171
    %3752 = vmatpush1.bf16.msra.mxu0 %v3170
    %3753 = vmatprep.subr.bf16.mxu0 %v3179
    %3754 = vmatpush1.bf16.msra.mxu0 %v3178
    %3755 = vmatprep.subr.bf16.mxu0 %v3187
    %3756 = vmatpush1.bf16.msra.mxu0 %v3186
    %3757 = vmatprep.subr.bf16.mxu0 %v3195
    %3758 = vmatpush1.bf16.msra.mxu0 %v3194
    %3759 = vmatprep.subr.bf16.mxu0 %v3203
    %3760 = vmatpush1.bf16.msra.mxu0 %v3202
    %3761 = vmatprep.subr.bf16.mxu0 %v3211
    %3762 = vmatpush1.bf16.msra.mxu0 %v3210
    %3763 = vmatprep.subr.bf16.mxu0 %v3219
    %3764 = vmatpush1.bf16.msra.mxu0 %v3218
    %3765 = vmatprep.subr.bf16.mxu0 %v3227
    %3766 = vmatpush1.bf16.msra.mxu0 %v3226
    %3767 = vmatprep.subr.bf16.mxu0 %v3235
    %3768 = vmatpush1.bf16.msra.mxu0 %v3234
    %3769 = vmatprep.subr.bf16.mxu0 %v3243
    %3770 = vmatpush1.bf16.msra.mxu0 %v3242
    %3771 = vmatprep.subr.bf16.mxu0 %v3251
    %3772 = vmatpush1.bf16.msra.mxu0 %v3250
    %3773 = vmatprep.subr.bf16.mxu0 %v3259
    %3774 = vmatpush1.bf16.msra.mxu0 %v3258
    %3775 = vmatprep.subr.bf16.mxu0 %v3267
    %3776 = vmatpush1.bf16.msra.mxu0 %v3266
    %3777 = vmatprep.subr.bf16.mxu0 %v3275
    %3778 = vmatpush1.bf16.msra.mxu0 %v3274
    %3779 = vmatprep.subr.bf16.mxu0 %v3283
    %3780 = vmatpush1.bf16.msra.mxu0 %v3282
    %3781 = vmatprep.mubr.bf16.mxu0 %v3027
    %3782 = vmatmul.mubr.bf16.gmra.mrb[0].mxu0 %v3026
    %v3783 = vpop.f32.mrb[0].mxu0
    %v3784 = vadd.f32 %v3743, %v3783
    %v3785 = vpop.f32.mrb[0].mxu0
    %v3786 = vadd.f32 %v3745, %v3785
    %v3787 = vpop.f32.mrb[0].mxu0
    %v3788 = vpop.f32.mrb[0].mxu0
    %3789 = vdwg.mxu0
    %3790 = vmatprep.subr.bf16.mxu0 %v3291
    %3791 = vmatpush1.bf16.msra.mxu0 %v3290
    %3792 = vmatprep.subr.bf16.mxu0 %v3299
    %3793 = vmatpush1.bf16.msra.mxu0 %v3298
    %3794 = vmatprep.subr.bf16.mxu0 %v3307
    %3795 = vmatpush1.bf16.msra.mxu0 %v3306
    %3796 = vmatprep.subr.bf16.mxu0 %v3315
    %3797 = vmatpush1.bf16.msra.mxu0 %v3314
    %3798 = vmatprep.subr.bf16.mxu0 %v3323
    %3799 = vmatpush1.bf16.msra.mxu0 %v3322
    %3800 = vmatprep.subr.bf16.mxu0 %v3331
    %3801 = vmatpush1.bf16.msra.mxu0 %v3330
    %3802 = vmatprep.subr.bf16.mxu0 %v3339
    %3803 = vmatpush1.bf16.msra.mxu0 %v3338
    %3804 = vmatprep.subr.bf16.mxu0 %v3347
    %3805 = vmatpush1.bf16.msra.mxu0 %v3346
    %3806 = vmatprep.subr.bf16.mxu0 %v3355
    %3807 = vmatpush1.bf16.msra.mxu0 %v3354
    %3808 = vmatprep.subr.bf16.mxu0 %v3363
    %3809 = vmatpush1.bf16.msra.mxu0 %v3362
    %3810 = vmatprep.subr.bf16.mxu0 %v3371
    %3811 = vmatpush1.bf16.msra.mxu0 %v3370
    %3812 = vmatprep.subr.bf16.mxu0 %v3379
    %3813 = vmatpush1.bf16.msra.mxu0 %v3378
    %3814 = vmatprep.subr.bf16.mxu0 %v3387
    %3815 = vmatpush1.bf16.msra.mxu0 %v3386
    %3816 = vmatprep.subr.bf16.mxu0 %v3395
    %3817 = vmatpush1.bf16.msra.mxu0 %v3394
    %3818 = vmatprep.subr.bf16.mxu0 %v3403
    %3819 = vmatpush1.bf16.msra.mxu0 %v3402
    %3820 = vmatprep.subr.bf16.mxu0 %v3411
    %3821 = vmatpush1.bf16.msra.mxu0 %v3410
    %3822 = vmatprep.mubr.bf16.mxu0 %v3029
    %3823 = vmatmul.mubr.bf16.gmra.mrb[0].mxu0 %v3028
    %v3824 = vpop.f32.mrb[0].mxu0
    %v3825 = vadd.f32 %v3784, %v3824
    %v3826 = vpop.f32.mrb[0].mxu0
    %v3827 = vadd.f32 %v3786, %v3826
    %v3828 = vpop.f32.mrb[0].mxu0
    %v3829 = vpop.f32.mrb[0].mxu0
    %3830 = vdwg.mxu0
    %3831 = vmatprep.subr.bf16.mxu0 %v3419
    %3832 = vmatpush1.bf16.msra.mxu0 %v3418
    %3833 = vmatprep.subr.bf16.mxu0 %v3427
    %3834 = vmatpush1.bf16.msra.mxu0 %v3426
    %3835 = vmatprep.subr.bf16.mxu0 %v3435
    %3836 = vmatpush1.bf16.msra.mxu0 %v3434
    %3837 = vmatprep.subr.bf16.mxu0 %v3443
    %3838 = vmatpush1.bf16.msra.mxu0 %v3442
    %3839 = vmatprep.subr.bf16.mxu0 %v3451
    %3840 = vmatpush1.bf16.msra.mxu0 %v3450
    %3841 = vmatprep.subr.bf16.mxu0 %v3459
    %3842 = vmatpush1.bf16.msra.mxu0 %v3458
    %3843 = vmatprep.subr.bf16.mxu0 %v3467
    %3844 = vmatpush1.bf16.msra.mxu0 %v3466
    %3845 = vmatprep.subr.bf16.mxu0 %v3475
    %3846 = vmatpush1.bf16.msra.mxu0 %v3474
    %3847 = vmatprep.subr.bf16.mxu0 %v3483
    %3848 = vmatpush1.bf16.msra.mxu0 %v3482
    %3849 = vmatprep.subr.bf16.mxu0 %v3491
    %3850 = vmatpush1.bf16.msra.mxu0 %v3490
    %3851 = vmatprep.subr.bf16.mxu0 %v3499
    %3852 = vmatpush1.bf16.msra.mxu0 %v3498
    %3853 = vmatprep.subr.bf16.mxu0 %v3507
    %3854 = vmatpush1.bf16.msra.mxu0 %v3506
    %3855 = vmatprep.subr.bf16.mxu0 %v3515
    %3856 = vmatpush1.bf16.msra.mxu0 %v3514
    %3857 = vmatprep.subr.bf16.mxu0 %v3523
    %3858 = vmatpush1.bf16.msra.mxu0 %v3522
    %3859 = vmatprep.subr.bf16.mxu0 %v3531
    %3860 = vmatpush1.bf16.msra.mxu0 %v3530
    %3861 = vmatprep.subr.bf16.mxu0 %v3539
    %3862 = vmatpush1.bf16.msra.mxu0 %v3538
    %3863 = vmatprep.mubr.bf16.mxu0 %v3031
    %3864 = vmatmul.mubr.bf16.gmra.mrb[0].mxu0 %v3030
    %v3865 = vpop.f32.mrb[0].mxu0
    %v3866 = vadd.f32 %v3825, %v3865
    %v3867 = vpop.f32.mrb[0].mxu0
    %v3868 = vadd.f32 %v3827, %v3867
    %v3869 = vpop.f32.mrb[0].mxu0
    %v3870 = vpop.f32.mrb[0].mxu0
    %3871 = vdwg.mxu0
    %3872 = vmatprep.subr.bf16.mxu0 %v3037
    %3873 = vmatpush1.bf16.msra.mxu0 %v3036
    %3874 = vmatprep.subr.bf16.mxu0 %v3045
    %3875 = vmatpush1.bf16.msra.mxu0 %v3044
    %3876 = vmatprep.subr.bf16.mxu0 %v3053
    %3877 = vmatpush1.bf16.msra.mxu0 %v3052
    %3878 = vmatprep.subr.bf16.mxu0 %v3061
    %3879 = vmatpush1.bf16.msra.mxu0 %v3060
    %3880 = vmatprep.subr.bf16.mxu0 %v3069
    %3881 = vmatpush1.bf16.msra.mxu0 %v3068
    %3882 = vmatprep.subr.bf16.mxu0 %v3077
    %3883 = vmatpush1.bf16.msra.mxu0 %v3076
    %3884 = vmatprep.subr.bf16.mxu0 %v3085
    %3885 = vmatpush1.bf16.msra.mxu0 %v3084
    %3886 = vmatprep.subr.bf16.mxu0 %v3093
    %3887 = vmatpush1.bf16.msra.mxu0 %v3092
    %3888 = vmatprep.subr.bf16.mxu0 %v3101
    %3889 = vmatpush1.bf16.msra.mxu0 %v3100
    %3890 = vmatprep.subr.bf16.mxu0 %v3109
    %3891 = vmatpush1.bf16.msra.mxu0 %v3108
    %3892 = vmatprep.subr.bf16.mxu0 %v3117
    %3893 = vmatpush1.bf16.msra.mxu0 %v3116
    %3894 = vmatprep.subr.bf16.mxu0 %v3125
    %3895 = vmatpush1.bf16.msra.mxu0 %v3124
    %3896 = vmatprep.subr.bf16.mxu0 %v3133
    %3897 = vmatpush1.bf16.msra.mxu0 %v3132
    %3898 = vmatprep.subr.bf16.mxu0 %v3141
    %3899 = vmatpush1.bf16.msra.mxu0 %v3140
    %3900 = vmatprep.subr.bf16.mxu0 %v3149
    %3901 = vmatpush1.bf16.msra.mxu0 %v3148
    %3902 = vmatprep.subr.bf16.mxu0 %v3157
    %3903 = vmatpush1.bf16.msra.mxu0 %v3156
    %3904 = vmatprep.mubr.bf16.mxu0 %v3025
    %3905 = vmatmul.mubr.bf16.gmra.mrb[0].mxu0 %v3024
    %v3906 = vpop.f32.mrb[0].mxu0
    %v3907 = vadd.f32 0.0, %v3906
    %v3908 = vpop.f32.mrb[0].mxu0
    %v3909 = vadd.f32 0.0, %v3908
    %v3910 = vpop.f32.mrb[0].mxu0
    %v3911 = vpop.f32.mrb[0].mxu0
    %3912 = vdwg.mxu0
    %3913 = vmatprep.subr.bf16.mxu0 %v3165
    %3914 = vmatpush1.bf16.msra.mxu0 %v3164
    %3915 = vmatprep.subr.bf16.mxu0 %v3173
    %3916 = vmatpush1.bf16.msra.mxu0 %v3172
    %3917 = vmatprep.subr.bf16.mxu0 %v3181
    %3918 = vmatpush1.bf16.msra.mxu0 %v3180
    %3919 = vmatprep.subr.bf16.mxu0 %v3189
    %3920 = vmatpush1.bf16.msra.mxu0 %v3188
    %3921 = vmatprep.subr.bf16.mxu0 %v3197
    %3922 = vmatpush1.bf16.msra.mxu0 %v3196
    %3923 = vmatprep.subr.bf16.mxu0 %v3205
    %3924 = vmatpush1.bf16.msra.mxu0 %v3204
    %3925 = vmatprep.subr.bf16.mxu0 %v3213
    %3926 = vmatpush1.bf16.msra.mxu0 %v3212
    %3927 = vmatprep.subr.bf16.mxu0 %v3221
    %3928 = vmatpush1.bf16.msra.mxu0 %v3220
    %3929 = vmatprep.subr.bf16.mxu0 %v3229
    %3930 = vmatpush1.bf16.msra.mxu0 %v3228
    %3931 = vmatprep.subr.bf16.mxu0 %v3237
    %3932 = vmatpush1.bf16.msra.mxu0 %v3236
    %3933 = vmatprep.subr.bf16.mxu0 %v3245
    %3934 = vmatpush1.bf16.msra.mxu0 %v3244
    %3935 = vmatprep.subr.bf16.mxu0 %v3253
    %3936 = vmatpush1.bf16.msra.mxu0 %v3252
    %3937 = vmatprep.subr.bf16.mxu0 %v3261
    %3938 = vmatpush1.bf16.msra.mxu0 %v3260
    %3939 = vmatprep.subr.bf16.mxu0 %v3269
    %3940 = vmatpush1.bf16.msra.mxu0 %v3268
    %3941 = vmatprep.subr.bf16.mxu0 %v3277
    %3942 = vmatpush1.bf16.msra.mxu0 %v3276
    %3943 = vmatprep.subr.bf16.mxu0 %v3285
    %3944 = vmatpush1.bf16.msra.mxu0 %v3284
    %3945 = vmatprep.mubr.bf16.mxu0 %v3027
    %3946 = vmatmul.mubr.bf16.gmra.mrb[0].mxu0 %v3026
    %v3947 = vpop.f32.mrb[0].mxu0
    %v3948 = vadd.f32 %v3907, %v3947
    %v3949 = vpop.f32.mrb[0].mxu0
    %v3950 = vadd.f32 %v3909, %v3949
    %v3951 = vpop.f32.mrb[0].mxu0
    %v3952 = vpop.f32.mrb[0].mxu0
    %3953 = vdwg.mxu0
    %3954 = vmatprep.subr.bf16.mxu0 %v3293
    %3955 = vmatpush1.bf16.msra.mxu0 %v3292
    %3956 = vmatprep.subr.bf16.mxu0 %v3301
    %3957 = vmatpush1.bf16.msra.mxu0 %v3300
    %3958 = vmatprep.subr.bf16.mxu0 %v3309
    %3959 = vmatpush1.bf16.msra.mxu0 %v3308
    %3960 = vmatprep.subr.bf16.mxu0 %v3317
    %3961 = vmatpush1.bf16.msra.mxu0 %v3316
    %3962 = vmatprep.subr.bf16.mxu0 %v3325
    %3963 = vmatpush1.bf16.msra.mxu0 %v3324
    %3964 = vmatprep.subr.bf16.mxu0 %v3333
    %3965 = vmatpush1.bf16.msra.mxu0 %v3332
    %3966 = vmatprep.subr.bf16.mxu0 %v3341
    %3967 = vmatpush1.bf16.msra.mxu0 %v3340
    %3968 = vmatprep.subr.bf16.mxu0 %v3349
    %3969 = vmatpush1.bf16.msra.mxu0 %v3348
    %3970 = vmatprep.subr.bf16.mxu0 %v3357
    %3971 = vmatpush1.bf16.msra.mxu0 %v3356
    %3972 = vmatprep.subr.bf16.mxu0 %v3365
    %3973 = vmatpush1.bf16.msra.mxu0 %v3364
    %3974 = vmatprep.subr.bf16.mxu0 %v3373
    %3975 = vmatpush1.bf16.msra.mxu0 %v3372
    %3976 = vmatprep.subr.bf16.mxu0 %v3381
    %3977 = vmatpush1.bf16.msra.mxu0 %v3380
    %3978 = vmatprep.subr.bf16.mxu0 %v3389
    %3979 = vmatpush1.bf16.msra.mxu0 %v3388
    %3980 = vmatprep.subr.bf16.mxu0 %v3397
    %3981 = vmatpush1.bf16.msra.mxu0 %v3396
    %3982 = vmatprep.subr.bf16.mxu0 %v3405
    %3983 = vmatpush1.bf16.msra.mxu0 %v3404
    %3984 = vmatprep.subr.bf16.mxu0 %v3413
    %3985 = vmatpush1.bf16.msra.mxu0 %v3412
    %3986 = vmatprep.mubr.bf16.mxu0 %v3029
    %3987 = vmatmul.mubr.bf16.gmra.mrb[0].mxu0 %v3028
    %v3988 = vpop.f32.mrb[0].mxu0
    %v3989 = vadd.f32 %v3948, %v3988
    %v3990 = vpop.f32.mrb[0].mxu0
    %v3991 = vadd.f32 %v3950, %v3990
    %v3992 = vpop.f32.mrb[0].mxu0
    %v3993 = vpop.f32.mrb[0].mxu0
    %3994 = vdwg.mxu0
    %3995 = vmatprep.subr.bf16.mxu0 %v3421
    %3996 = vmatpush1.bf16.msra.mxu0 %v3420
    %3997 = vmatprep.subr.bf16.mxu0 %v3429
    %3998 = vmatpush1.bf16.msra.mxu0 %v3428
    %3999 = vmatprep.subr.bf16.mxu0 %v3437
    %4000 = vmatpush1.bf16.msra.mxu0 %v3436
    %4001 = vmatprep.subr.bf16.mxu0 %v3445
    %4002 = vmatpush1.bf16.msra.mxu0 %v3444
    %4003 = vmatprep.subr.bf16.mxu0 %v3453
    %4004 = vmatpush1.bf16.msra.mxu0 %v3452
    %4005 = vmatprep.subr.bf16.mxu0 %v3461
    %4006 = vmatpush1.bf16.msra.mxu0 %v3460
    %4007 = vmatprep.subr.bf16.mxu0 %v3469
    %4008 = vmatpush1.bf16.msra.mxu0 %v3468
    %4009 = vmatprep.subr.bf16.mxu0 %v3477
    %4010 = vmatpush1.bf16.msra.mxu0 %v3476
    %4011 = vmatprep.subr.bf16.mxu0 %v3485
    %4012 = vmatpush1.bf16.msra.mxu0 %v3484
    %4013 = vmatprep.subr.bf16.mxu0 %v3493
    %4014 = vmatpush1.bf16.msra.mxu0 %v3492
    %4015 = vmatprep.subr.bf16.mxu0 %v3501
    %4016 = vmatpush1.bf16.msra.mxu0 %v3500
    %4017 = vmatprep.subr.bf16.mxu0 %v3509
    %4018 = vmatpush1.bf16.msra.mxu0 %v3508
    %4019 = vmatprep.subr.bf16.mxu0 %v3517
    %4020 = vmatpush1.bf16.msra.mxu0 %v3516
    %4021 = vmatprep.subr.bf16.mxu0 %v3525
    %4022 = vmatpush1.bf16.msra.mxu0 %v3524
    %4023 = vmatprep.subr.bf16.mxu0 %v3533
    %4024 = vmatpush1.bf16.msra.mxu0 %v3532
    %4025 = vmatprep.subr.bf16.mxu0 %v3541
    %4026 = vmatpush1.bf16.msra.mxu0 %v3540
    %4027 = vmatprep.mubr.bf16.mxu0 %v3031
    %4028 = vmatmul.mubr.bf16.gmra.mrb[0].mxu0 %v3030
    %v4029 = vpop.f32.mrb[0].mxu0
    %v4030 = vadd.f32 %v3989, %v4029
    %v4031 = vpop.f32.mrb[0].mxu0
    %v4032 = vadd.f32 %v3991, %v4031
    %v4033 = vpop.f32.mrb[0].mxu0
    %v4034 = vpop.f32.mrb[0].mxu0
    %4035 = vdwg.mxu0
    %4036 = vmatprep.subr.bf16.mxu0 %v3039
    %4037 = vmatpush1.bf16.msra.mxu0 %v3038
    %4038 = vmatprep.subr.bf16.mxu0 %v3047
    %4039 = vmatpush1.bf16.msra.mxu0 %v3046
    %4040 = vmatprep.subr.bf16.mxu0 %v3055
    %4041 = vmatpush1.bf16.msra.mxu0 %v3054
    %4042 = vmatprep.subr.bf16.mxu0 %v3063
    %4043 = vmatpush1.bf16.msra.mxu0 %v3062
    %4044 = vmatprep.subr.bf16.mxu0 %v3071
    %4045 = vmatpush1.bf16.msra.mxu0 %v3070
    %4046 = vmatprep.subr.bf16.mxu0 %v3079
    %4047 = vmatpush1.bf16.msra.mxu0 %v3078
    %4048 = vmatprep.subr.bf16.mxu0 %v3087
    %4049 = vmatpush1.bf16.msra.mxu0 %v3086
    %4050 = vmatprep.subr.bf16.mxu0 %v3095
    %4051 = vmatpush1.bf16.msra.mxu0 %v3094
    %4052 = vmatprep.subr.bf16.mxu0 %v3103
    %4053 = vmatpush1.bf16.msra.mxu0 %v3102
    %4054 = vmatprep.subr.bf16.mxu0 %v3111
    %4055 = vmatpush1.bf16.msra.mxu0 %v3110
    %4056 = vmatprep.subr.bf16.mxu0 %v3119
    %4057 = vmatpush1.bf16.msra.mxu0 %v3118
    %4058 = vmatprep.subr.bf16.mxu0 %v3127
    %4059 = vmatpush1.bf16.msra.mxu0 %v3126
    %4060 = vmatprep.subr.bf16.mxu0 %v3135
    %4061 = vmatpush1.bf16.msra.mxu0 %v3134
    %4062 = vmatprep.subr.bf16.mxu0 %v3143
    %4063 = vmatpush1.bf16.msra.mxu0 %v3142
    %4064 = vmatprep.subr.bf16.mxu0 %v3151
    %4065 = vmatpush1.bf16.msra.mxu0 %v3150
    %4066 = vmatprep.subr.bf16.mxu0 %v3159
    %4067 = vmatpush1.bf16.msra.mxu0 %v3158
    %4068 = vmatprep.mubr.bf16.mxu0 %v3025
    %4069 = vmatmul.mubr.bf16.gmra.mrb[0].mxu0 %v3024
    %v4070 = vpop.f32.mrb[0].mxu0
    %v4071 = vadd.f32 0.0, %v4070
    %v4072 = vpop.f32.mrb[0].mxu0
    %v4073 = vadd.f32 0.0, %v4072
    %v4074 = vpop.f32.mrb[0].mxu0
    %v4075 = vpop.f32.mrb[0].mxu0
    %4076 = vdwg.mxu0
    %4077 = vmatprep.subr.bf16.mxu0 %v3167
    %4078 = vmatpush1.bf16.msra.mxu0 %v3166
    %4079 = vmatprep.subr.bf16.mxu0 %v3175
    %4080 = vmatpush1.bf16.msra.mxu0 %v3174
    %4081 = vmatprep.subr.bf16.mxu0 %v3183
    %4082 = vmatpush1.bf16.msra.mxu0 %v3182
    %4083 = vmatprep.subr.bf16.mxu0 %v3191
    %4084 = vmatpush1.bf16.msra.mxu0 %v3190
    %4085 = vmatprep.subr.bf16.mxu0 %v3199
    %4086 = vmatpush1.bf16.msra.mxu0 %v3198
    %4087 = vmatprep.subr.bf16.mxu0 %v3207
    %4088 = vmatpush1.bf16.msra.mxu0 %v3206
    %4089 = vmatprep.subr.bf16.mxu0 %v3215
    %4090 = vmatpush1.bf16.msra.mxu0 %v3214
    %4091 = vmatprep.subr.bf16.mxu0 %v3223
    %4092 = vmatpush1.bf16.msra.mxu0 %v3222
    %4093 = vmatprep.subr.bf16.mxu0 %v3231
    %4094 = vmatpush1.bf16.msra.mxu0 %v3230
    %4095 = vmatprep.subr.bf16.mxu0 %v3239
    %4096 = vmatpush1.bf16.msra.mxu0 %v3238
    %4097 = vmatprep.subr.bf16.mxu0 %v3247
    %4098 = vmatpush1.bf16.msra.mxu0 %v3246
    %4099 = vmatprep.subr.bf16.mxu0 %v3255
    %4100 = vmatpush1.bf16.msra.mxu0 %v3254
    %4101 = vmatprep.subr.bf16.mxu0 %v3263
    %4102 = vmatpush1.bf16.msra.mxu0 %v3262
    %4103 = vmatprep.subr.bf16.mxu0 %v3271
    %4104 = vmatpush1.bf16.msra.mxu0 %v3270
    %4105 = vmatprep.subr.bf16.mxu0 %v3279
    %4106 = vmatpush1.bf16.msra.mxu0 %v3278
    %4107 = vmatprep.subr.bf16.mxu0 %v3287
    %4108 = vmatpush1.bf16.msra.mxu0 %v3286
    %4109 = vmatprep.mubr.bf16.mxu0 %v3027
    %4110 = vmatmul.mubr.bf16.gmra.mrb[0].mxu0 %v3026
    %v4111 = vpop.f32.mrb[0].mxu0
    %v4112 = vadd.f32 %v4071, %v4111
    %v4113 = vpop.f32.mrb[0].mxu0
    %v4114 = vadd.f32 %v4073, %v4113
    %v4115 = vpop.f32.mrb[0].mxu0
    %v4116 = vpop.f32.mrb[0].mxu0
    %4117 = vdwg.mxu0
    %4118 = vmatprep.subr.bf16.mxu0 %v3295
    %4119 = vmatpush1.bf16.msra.mxu0 %v3294
    %4120 = vmatprep.subr.bf16.mxu0 %v3303
    %4121 = vmatpush1.bf16.msra.mxu0 %v3302
    %4122 = vmatprep.subr.bf16.mxu0 %v3311
    %4123 = vmatpush1.bf16.msra.mxu0 %v3310
    %4124 = vmatprep.subr.bf16.mxu0 %v3319
    %4125 = vmatpush1.bf16.msra.mxu0 %v3318
    %4126 = vmatprep.subr.bf16.mxu0 %v3327
    %4127 = vmatpush1.bf16.msra.mxu0 %v3326
    %4128 = vmatprep.subr.bf16.mxu0 %v3335
    %4129 = vmatpush1.bf16.msra.mxu0 %v3334
    %4130 = vmatprep.subr.bf16.mxu0 %v3343
    %4131 = vmatpush1.bf16.msra.mxu0 %v3342
    %4132 = vmatprep.subr.bf16.mxu0 %v3351
    %4133 = vmatpush1.bf16.msra.mxu0 %v3350
    %4134 = vmatprep.subr.bf16.mxu0 %v3359
    %4135 = vmatpush1.bf16.msra.mxu0 %v3358
    %4136 = vmatprep.subr.bf16.mxu0 %v3367
    %4137 = vmatpush1.bf16.msra.mxu0 %v3366
    %4138 = vmatprep.subr.bf16.mxu0 %v3375
    %4139 = vmatpush1.bf16.msra.mxu0 %v3374
    %4140 = vmatprep.subr.bf16.mxu0 %v3383
    %4141 = vmatpush1.bf16.msra.mxu0 %v3382
    %4142 = vmatprep.subr.bf16.mxu0 %v3391
    %4143 = vmatpush1.bf16.msra.mxu0 %v3390
    %4144 = vmatprep.subr.bf16.mxu0 %v3399
    %4145 = vmatpush1.bf16.msra.mxu0 %v3398
    %4146 = vmatprep.subr.bf16.mxu0 %v3407
    %4147 = vmatpush1.bf16.msra.mxu0 %v3406
    %4148 = vmatprep.subr.bf16.mxu0 %v3415
    %4149 = vmatpush1.bf16.msra.mxu0 %v3414
    %4150 = vmatprep.mubr.bf16.mxu0 %v3029
    %4151 = vmatmul.mubr.bf16.gmra.mrb[0].mxu0 %v3028
    %v4152 = vpop.f32.mrb[0].mxu0
    %v4153 = vadd.f32 %v4112, %v4152
    %v4154 = vpop.f32.mrb[0].mxu0
    %v4155 = vadd.f32 %v4114, %v4154
    %v4156 = vpop.f32.mrb[0].mxu0
    %v4157 = vpop.f32.mrb[0].mxu0
    %4158 = vdwg.mxu0
    %4159 = vmatprep.subr.bf16.mxu0 %v3423
    %4160 = vmatpush1.bf16.msra.mxu0 %v3422
    %4161 = vmatprep.subr.bf16.mxu0 %v3431
    %4162 = vmatpush1.bf16.msra.mxu0 %v3430
    %4163 = vmatprep.subr.bf16.mxu0 %v3439
    %4164 = vmatpush1.bf16.msra.mxu0 %v3438
    %4165 = vmatprep.subr.bf16.mxu0 %v3447
    %4166 = vmatpush1.bf16.msra.mxu0 %v3446
    %4167 = vmatprep.subr.bf16.mxu0 %v3455
    %4168 = vmatpush1.bf16.msra.mxu0 %v3454
    %4169 = vmatprep.subr.bf16.mxu0 %v3463
    %4170 = vmatpush1.bf16.msra.mxu0 %v3462
    %4171 = vmatprep.subr.bf16.mxu0 %v3471
    %4172 = vmatpush1.bf16.msra.mxu0 %v3470
    %4173 = vmatprep.subr.bf16.mxu0 %v3479
    %4174 = vmatpush1.bf16.msra.mxu0 %v3478
    %4175 = vmatprep.subr.bf16.mxu0 %v3487
    %4176 = vmatpush1.bf16.msra.mxu0 %v3486
    %4177 = vmatprep.subr.bf16.mxu0 %v3495
    %4178 = vmatpush1.bf16.msra.mxu0 %v3494
    %4179 = vmatprep.subr.bf16.mxu0 %v3503
    %4180 = vmatpush1.bf16.msra.mxu0 %v3502
    %4181 = vmatprep.subr.bf16.mxu0 %v3511
    %4182 = vmatpush1.bf16.msra.mxu0 %v3510
    %4183 = vmatprep.subr.bf16.mxu0 %v3519
    %4184 = vmatpush1.bf16.msra.mxu0 %v3518
    %4185 = vmatprep.subr.bf16.mxu0 %v3527
    %4186 = vmatpush1.bf16.msra.mxu0 %v3526
    %4187 = vmatprep.subr.bf16.mxu0 %v3535
    %4188 = vmatpush1.bf16.msra.mxu0 %v3534
    %4189 = vmatprep.subr.bf16.mxu0 %v3543
    %4190 = vmatpush1.bf16.msra.mxu0 %v3542
    %4191 = vmatprep.mubr.bf16.mxu0 %v3031
    %4192 = vmatmul.mubr.bf16.gmra.mrb[0].mxu0 %v3030
    %v4193 = vpop.f32.mrb[0].mxu0
    %v4194 = vadd.f32 %v4153, %v4193
    %v4195 = vpop.f32.mrb[0].mxu0
    %v4196 = vadd.f32 %v4155, %v4195
    %v4197 = vpop.f32.mrb[0].mxu0
    %v4198 = vpop.f32.mrb[0].mxu0
    %4199 = vdwg.mxu0
    %v4200 = vrot.slane %v3702, 4
    %v4201 = vadd.f32 %v3702, %v4200
    %v4202 = vrot.slane %v4201, 2
    %v4203 = vadd.f32 %v4201, %v4202
    %v4204 = vrot.slane %v4203, 1
    %v4205 = vadd.f32 %v4203, %v4204
    %v4206 = vrot.slane %v3704, 4
    %v4207 = vadd.f32 %v3704, %v4206
    %v4208 = vrot.slane %v4207, 2
    %v4209 = vadd.f32 %v4207, %v4208
    %v4210 = vrot.slane %v4209, 1
    %v4211 = vadd.f32 %v4209, %v4210
    %v4212 = vrot.slane %v3866, 4
    %v4213 = vadd.f32 %v3866, %v4212
    %v4214 = vrot.slane %v4213, 2
    %v4215 = vadd.f32 %v4213, %v4214
    %v4216 = vrot.slane %v4215, 1
    %v4217 = vadd.f32 %v4215, %v4216
    %v4218 = vrot.slane %v3868, 4
    %v4219 = vadd.f32 %v3868, %v4218
    %v4220 = vrot.slane %v4219, 2
    %v4221 = vadd.f32 %v4219, %v4220
    %v4222 = vrot.slane %v4221, 1
    %v4223 = vadd.f32 %v4221, %v4222
    %v4224 = vrot.slane %v4030, 4
    %v4225 = vadd.f32 %v4030, %v4224
    %v4226 = vrot.slane %v4225, 2
    %v4227 = vadd.f32 %v4225, %v4226
    %v4228 = vrot.slane %v4227, 1
    %v4229 = vadd.f32 %v4227, %v4228
    %v4230 = vrot.slane %v4032, 4
    %v4231 = vadd.f32 %v4032, %v4230
    %v4232 = vrot.slane %v4231, 2
    %v4233 = vadd.f32 %v4231, %v4232
    %v4234 = vrot.slane %v4233, 1
    %v4235 = vadd.f32 %v4233, %v4234
    %v4236 = vrot.slane %v4194, 4
    %v4237 = vadd.f32 %v4194, %v4236
    %v4238 = vrot.slane %v4237, 2
    %v4239 = vadd.f32 %v4237, %v4238
    %v4240 = vrot.slane %v4239, 1
    %v4241 = vadd.f32 %v4239, %v4240
    %v4242 = vrot.slane %v4196, 4
    %v4243 = vadd.f32 %v4196, %v4242
    %v4244 = vrot.slane %v4243, 2
    %v4245 = vadd.f32 %v4243, %v4244
    %v4246 = vrot.slane %v4245, 1
    %v4247 = vadd.f32 %v4245, %v4246
    %v4248 = vmul.f32 %v4205, %v2691
    %v4249 = vmul.f32 %v4211, %v2691
    %v4250 = vmul.f32 %v4217, %v2691
    %v4251 = vmul.f32 %v4223, %v2691
    %v4252 = vmul.f32 %v4229, %v2691
    %v4253 = vmul.f32 %v4235, %v2691
    %v4254 = vmul.f32 %v4241, %v2691
    %v4255 = vmul.f32 %v4247, %v2691
    %v4256 = vsub.f32 %v3702, %v4248
    %v4257 = vsub.f32 %v3704, %v4249
    %v4258 = vsub.f32 %v3866, %v4250
    %v4259 = vsub.f32 %v3868, %v4251
    %v4260 = vsub.f32 %v4030, %v4252
    %v4261 = vsub.f32 %v4032, %v4253
    %v4262 = vsub.f32 %v4194, %v4254
    %v4263 = vsub.f32 %v4196, %v4255
    %v4264 = vmul.f32 %v4256, %v4256
    %v4265 = vmul.f32 %v4257, %v4257
    %v4266 = vmul.f32 %v4258, %v4258
    %v4267 = vmul.f32 %v4259, %v4259
    %v4268 = vmul.f32 %v4260, %v4260
    %v4269 = vmul.f32 %v4261, %v4261
    %v4270 = vmul.f32 %v4262, %v4262
    %v4271 = vmul.f32 %v4263, %v4263
    %v4272 = vrot.slane %v4264, 4
    %v4273 = vadd.f32 %v4264, %v4272
    %v4274 = vrot.slane %v4273, 2
    %v4275 = vadd.f32 %v4273, %v4274
    %v4276 = vrot.slane %v4275, 1
    %v4277 = vadd.f32 %v4275, %v4276
    %v4278 = vrot.slane %v4265, 4
    %v4279 = vadd.f32 %v4265, %v4278
    %v4280 = vrot.slane %v4279, 2
    %v4281 = vadd.f32 %v4279, %v4280
    %v4282 = vrot.slane %v4281, 1
    %v4283 = vadd.f32 %v4281, %v4282
    %v4284 = vrot.slane %v4266, 4
    %v4285 = vadd.f32 %v4266, %v4284
    %v4286 = vrot.slane %v4285, 2
    %v4287 = vadd.f32 %v4285, %v4286
    %v4288 = vrot.slane %v4287, 1
    %v4289 = vadd.f32 %v4287, %v4288
    %v4290 = vrot.slane %v4267, 4
    %v4291 = vadd.f32 %v4267, %v4290
    %v4292 = vrot.slane %v4291, 2
    %v4293 = vadd.f32 %v4291, %v4292
    %v4294 = vrot.slane %v4293, 1
    %v4295 = vadd.f32 %v4293, %v4294
    %v4296 = vrot.slane %v4268, 4
    %v4297 = vadd.f32 %v4268, %v4296
    %v4298 = vrot.slane %v4297, 2
    %v4299 = vadd.f32 %v4297, %v4298
    %v4300 = vrot.slane %v4299, 1
    %v4301 = vadd.f32 %v4299, %v4300
    %v4302 = vrot.slane %v4269, 4
    %v4303 = vadd.f32 %v4269, %v4302
    %v4304 = vrot.slane %v4303, 2
    %v4305 = vadd.f32 %v4303, %v4304
    %v4306 = vrot.slane %v4305, 1
    %v4307 = vadd.f32 %v4305, %v4306
    %v4308 = vrot.slane %v4270, 4
    %v4309 = vadd.f32 %v4270, %v4308
    %v4310 = vrot.slane %v4309, 2
    %v4311 = vadd.f32 %v4309, %v4310
    %v4312 = vrot.slane %v4311, 1
    %v4313 = vadd.f32 %v4311, %v4312
    %v4314 = vrot.slane %v4271, 4
    %v4315 = vadd.f32 %v4271, %v4314
    %v4316 = vrot.slane %v4315, 2
    %v4317 = vadd.f32 %v4315, %v4316
    %v4318 = vrot.slane %v4317, 1
    %v4319 = vadd.f32 %v4317, %v4318
    %v4320 = vmul.f32 %v4277, %v2691
    %v4321 = vmul.f32 %v4283, %v2691
    %v4322 = vmul.f32 %v4289, %v2691
    %v4323 = vmul.f32 %v4295, %v2691
    %v4324 = vmul.f32 %v4301, %v2691
    %v4325 = vmul.f32 %v4307, %v2691
    %v4326 = vmul.f32 %v4313, %v2691
    %v4327 = vmul.f32 %v4319, %v2691
    %v4328 = vadd.f32 %v4320, 1e-05
    %v4329 = vadd.f32 %v4321, 1e-05
    %v4330 = vadd.f32 %v4322, 1e-05
    %v4331 = vadd.f32 %v4323, 1e-05
    %v4332 = vadd.f32 %v4324, 1e-05
    %v4333 = vadd.f32 %v4325, 1e-05
    %v4334 = vadd.f32 %v4326, 1e-05
    %v4335 = vadd.f32 %v4327, 1e-05
    %v4336 = vrsqrt.pop %v4328
    %v4337 = vrsqrt.pop %v4329
    %v4338 = vrsqrt.pop %v4330
    %v4339 = vrsqrt.pop %v4331
    %v4340 = vrsqrt.pop %v4332
    %v4341 = vrsqrt.pop %v4333
    %v4342 = vrsqrt.pop %v4334
    %v4343 = vrsqrt.pop %v4335
    %v4352 = vcombine.low %v4336, %v4337
    %v4353 = vcombine.low %v4338, %v4339
    %v4354 = vcombine.low %v4340, %v4341
    %v4355 = vcombine.low %v4342, %v4343
    %v4357 = vunpack.c.l.s4 1966171168
    %v4358 = vunpack.c.0.s8 %v4357
    %v4359 = vlaneseq
    %v4360 = vshrl.u32 %v4359, 7
    %v4361 = vsub.s32 %v4358, %v4360
    %v4362 = vrot.slane %v4352, %v4361
    %v4364 = vunpack.c.l.s4 1966171168
    %v4365 = vunpack.c.0.s8 %v4364
    %v4366 = vlaneseq
    %v4367 = vshrl.u32 %v4366, 7
    %v4368 = vsub.s32 %v4365, %v4367
    %v4369 = vrot.slane %v4353, %v4368
    %v4371 = vunpack.c.l.s4 1966171168
    %v4372 = vunpack.c.0.s8 %v4371
    %v4373 = vlaneseq
    %v4374 = vshrl.u32 %v4373, 7
    %v4375 = vsub.s32 %v4372, %v4374
    %v4376 = vrot.slane %v4354, %v4375
    %v4378 = vunpack.c.l.s4 1966171168
    %v4379 = vunpack.c.0.s8 %v4378
    %v4380 = vlaneseq
    %v4381 = vshrl.u32 %v4380, 7
    %v4382 = vsub.s32 %v4379, %v4381
    %v4383 = vrot.slane %v4355, %v4382
    %v4384 = vcombine.low %v4362, %v4369
    %v4385 = vcombine.low %v4376, %v4383
    %v4387 = vunpack.c.l.s4 1966171168
    %v4388 = vunpack.c.0.s8 %v4387
    %v4389 = vlaneseq
    %v4390 = vshrl.u32 %v4389, 7
    %v4391 = vsub.s32 %v4388, %v4390
    %v4392 = vrot.slane %v4384, %v4391
    %v4394 = vunpack.c.l.s4 1966171168
    %v4395 = vunpack.c.0.s8 %v4394
    %v4396 = vlaneseq
    %v4397 = vshrl.u32 %v4396, 7
    %v4398 = vsub.s32 %v4395, %v4397
    %v4399 = vrot.slane %v4385, %v4398
    %v4400 = vcombine.low %v4392, %v4399
    %v4402 = vmul.f32 %v243, %v4400
    %v4404 = vlaneseq
    %v4405 = vshrl.u32 %v4404, 7
    %v4406 = vsub.s32 0, %v4405
    %v4407 = vrot.slane %v4402, %v4406
    %v4408 = vlaneseq
    %v4409 = vshrl.u32 %v4408, 7
    %v4410 = vsub.s32 1, %v4409
    %v4411 = vrot.slane %v4402, %v4410
    %v4412 = vlaneseq
    %v4413 = vshrl.u32 %v4412, 7
    %v4414 = vsub.s32 2, %v4413
    %v4415 = vrot.slane %v4402, %v4414
    %v4416 = vlaneseq
    %v4417 = vshrl.u32 %v4416, 7
    %v4418 = vsub.s32 3, %v4417
    %v4419 = vrot.slane %v4402, %v4418
    %v4420 = vlaneseq
    %v4421 = vshrl.u32 %v4420, 7
    %v4422 = vsub.s32 4, %v4421
    %v4423 = vrot.slane %v4402, %v4422
    %v4424 = vlaneseq
    %v4425 = vshrl.u32 %v4424, 7
    %v4426 = vsub.s32 5, %v4425
    %v4427 = vrot.slane %v4402, %v4426
    %v4428 = vlaneseq
    %v4429 = vshrl.u32 %v4428, 7
    %v4430 = vsub.s32 6, %v4429
    %v4431 = vrot.slane %v4402, %v4430
    %v4432 = vlaneseq
    %v4433 = vshrl.u32 %v4432, 7
    %v4434 = vsub.s32 7, %v4433
    %v4435 = vrot.slane %v4402, %v4434
    %v4444 = vmul.f32 %v4248, %v4407
    %v4445 = vmul.f32 %v4249, %v4411
    %v4446 = vmul.f32 %v4250, %v4415
    %v4447 = vmul.f32 %v4251, %v4419
    %v4448 = vmul.f32 %v4252, %v4423
    %v4449 = vmul.f32 %v4253, %v4427
    %v4450 = vmul.f32 %v4254, %v4431
    %v4451 = vmul.f32 %v4255, %v4435
    %v4460 = vcombine.low %v4444, %v4445
    %v4461 = vcombine.low %v4446, %v4447
    %v4462 = vcombine.low %v4448, %v4449
    %v4463 = vcombine.low %v4450, %v4451
    %v4465 = vunpack.c.l.s4 1966171168
    %v4466 = vunpack.c.0.s8 %v4465
    %v4467 = vlaneseq
    %v4468 = vshrl.u32 %v4467, 7
    %v4469 = vsub.s32 %v4466, %v4468
    %v4470 = vrot.slane %v4460, %v4469
    %v4472 = vunpack.c.l.s4 1966171168
    %v4473 = vunpack.c.0.s8 %v4472
    %v4474 = vlaneseq
    %v4475 = vshrl.u32 %v4474, 7
    %v4476 = vsub.s32 %v4473, %v4475
    %v4477 = vrot.slane %v4461, %v4476
    %v4479 = vunpack.c.l.s4 1966171168
    %v4480 = vunpack.c.0.s8 %v4479
    %v4481 = vlaneseq
    %v4482 = vshrl.u32 %v4481, 7
    %v4483 = vsub.s32 %v4480, %v4482
    %v4484 = vrot.slane %v4462, %v4483
    %v4486 = vunpack.c.l.s4 1966171168
    %v4487 = vunpack.c.0.s8 %v4486
    %v4488 = vlaneseq
    %v4489 = vshrl.u32 %v4488, 7
    %v4490 = vsub.s32 %v4487, %v4489
    %v4491 = vrot.slane %v4463, %v4490
    %v4492 = vcombine.low %v4470, %v4477
    %v4493 = vcombine.low %v4484, %v4491
    %v4495 = vunpack.c.l.s4 1966171168
    %v4496 = vunpack.c.0.s8 %v4495
    %v4497 = vlaneseq
    %v4498 = vshrl.u32 %v4497, 7
    %v4499 = vsub.s32 %v4496, %v4498
    %v4500 = vrot.slane %v4492, %v4499
    %v4502 = vunpack.c.l.s4 1966171168
    %v4503 = vunpack.c.0.s8 %v4502
    %v4504 = vlaneseq
    %v4505 = vshrl.u32 %v4504, 7
    %v4506 = vsub.s32 %v4503, %v4505
    %v4507 = vrot.slane %v4493, %v4506
    %v4508 = vcombine.low %v4500, %v4507
    %v4510 = vsub.f32 %v247, %v4508
    %v4511 = vmul.f32 %v3702, %v4407
    %v4512 = vmul.f32 %v3704, %v4411
    %v4513 = vmul.f32 %v3866, %v4415
    %v4514 = vmul.f32 %v3868, %v4419
    %v4515 = vmul.f32 %v4030, %v4423
    %v4516 = vmul.f32 %v4032, %v4427
    %v4517 = vmul.f32 %v4194, %v4431
    %v4518 = vmul.f32 %v4196, %v4435
    %v4520 = vlaneseq
    %v4521 = vshrl.u32 %v4520, 7
    %v4522 = vsub.s32 0, %v4521
    %v4523 = vrot.slane %v4510, %v4522
    %v4524 = vlaneseq
    %v4525 = vshrl.u32 %v4524, 7
    %v4526 = vsub.s32 1, %v4525
    %v4527 = vrot.slane %v4510, %v4526
    %v4528 = vlaneseq
    %v4529 = vshrl.u32 %v4528, 7
    %v4530 = vsub.s32 2, %v4529
    %v4531 = vrot.slane %v4510, %v4530
    %v4532 = vlaneseq
    %v4533 = vshrl.u32 %v4532, 7
    %v4534 = vsub.s32 3, %v4533
    %v4535 = vrot.slane %v4510, %v4534
    %v4536 = vlaneseq
    %v4537 = vshrl.u32 %v4536, 7
    %v4538 = vsub.s32 4, %v4537
    %v4539 = vrot.slane %v4510, %v4538
    %v4540 = vlaneseq
    %v4541 = vshrl.u32 %v4540, 7
    %v4542 = vsub.s32 5, %v4541
    %v4543 = vrot.slane %v4510, %v4542
    %v4544 = vlaneseq
    %v4545 = vshrl.u32 %v4544, 7
    %v4546 = vsub.s32 6, %v4545
    %v4547 = vrot.slane %v4510, %v4546
    %v4548 = vlaneseq
    %v4549 = vshrl.u32 %v4548, 7
    %v4550 = vsub.s32 7, %v4549
    %v4551 = vrot.slane %v4510, %v4550
    %v4560 = vadd.f32 %v4511, %v4523
    %v4561 = vadd.f32 %v4512, %v4527
    %v4562 = vadd.f32 %v4513, %v4531
    %v4563 = vadd.f32 %v4514, %v4535
    %v4564 = vadd.f32 %v4515, %v4539
    %v4565 = vadd.f32 %v4516, %v4543
    %v4566 = vadd.f32 %v4517, %v4547
    %v4567 = vadd.f32 %v4518, %v4551
    %v4568 = vmax.f32 %v4560, 0.0
    %v4569 = vmax.f32 %v4561, 0.0
    %v4570 = vmax.f32 %v4562, 0.0
    %v4571 = vmax.f32 %v4563, 0.0
    %v4572 = vmax.f32 %v4564, 0.0
    %v4573 = vmax.f32 %v4565, 0.0
    %v4574 = vmax.f32 %v4566, 0.0
    %v4575 = vmax.f32 %v4567, 0.0
    %s4576 = smul.u32 %s3020, 1
    %s4577 = sshll.u32 %s4576, 4
    %4578 = dma.done %s221, %s4577
    %v4579 = vpack.c.bf16 %v4568, %v4568
    %v4580 = vpack.c.bf16 %v4569, %v4569
    %v4581 = vpack.c.bf16 %v4570, %v4570
    %v4582 = vpack.c.bf16 %v4571, %v4571
    %v4583 = vpack.c.bf16 %v4572, %v4572
    %v4584 = vpack.c.bf16 %v4573, %v4573
    %v4585 = vpack.c.bf16 %v4574, %v4574
    %v4586 = vpack.c.bf16 %v4575, %v4575
    %v4587 = vld [vmem:[#allocation4] sm:$0xff]
    %v4588 = vld [vmem:[#allocation4 + $0x8] sm:$0xff]
    %v4589 = vld [vmem:[#allocation4 + $0x10] sm:$0xff]
    %v4590 = vld [vmem:[#allocation4 + $0x18] sm:$0xff]
    %v4591 = vld [vmem:[#allocation4 + $0x20] sm:$0xff]
    %v4592 = vld [vmem:[#allocation4 + $0x28] sm:$0xff]
    %v4593 = vld [vmem:[#allocation4 + $0x30] sm:$0xff]
    %v4594 = vld [vmem:[#allocation4 + $0x38] sm:$0xff]
    %v4595 = vld [vmem:[#allocation4 + $0x40] sm:$0xff]
    %v4596 = vld [vmem:[#allocation4 + $0x48] sm:$0xff]
    %v4597 = vld [vmem:[#allocation4 + $0x50] sm:$0xff]
    %v4598 = vld [vmem:[#allocation4 + $0x58] sm:$0xff]
    %v4599 = vld [vmem:[#allocation4 + $0x60] sm:$0xff]
    %v4600 = vld [vmem:[#allocation4 + $0x68] sm:$0xff]
    %v4601 = vld [vmem:[#allocation4 + $0x70] sm:$0xff]
    %v4602 = vld [vmem:[#allocation4 + $0x78] sm:$0xff]
    %v4603 = vld [vmem:[#allocation4 + $0x80] sm:$0xff]
    %v4604 = vld [vmem:[#allocation4 + $0x88] sm:$0xff]
    %v4605 = vld [vmem:[#allocation4 + $0x90] sm:$0xff]
    %v4606 = vld [vmem:[#allocation4 + $0x98] sm:$0xff]
    %v4607 = vld [vmem:[#allocation4 + $0xa0] sm:$0xff]
    %v4608 = vld [vmem:[#allocation4 + $0xa8] sm:$0xff]
    %v4609 = vld [vmem:[#allocation4 + $0xb0] sm:$0xff]
    %v4610 = vld [vmem:[#allocation4 + $0xb8] sm:$0xff]
    %v4611 = vld [vmem:[#allocation4 + $0xc0] sm:$0xff]
    %v4612 = vld [vmem:[#allocation4 + $0xc8] sm:$0xff]
    %v4613 = vld [vmem:[#allocation4 + $0xd0] sm:$0xff]
    %v4614 = vld [vmem:[#allocation4 + $0xd8] sm:$0xff]
    %v4615 = vld [vmem:[#allocation4 + $0xe0] sm:$0xff]
    %v4616 = vld [vmem:[#allocation4 + $0xe8] sm:$0xff]
    %v4617 = vld [vmem:[#allocation4 + $0xf0] sm:$0xff]
    %v4618 = vld [vmem:[#allocation4 + $0xf8] sm:$0xff]
    %v4619 = vld [vmem:[#allocation4 + $0x100] sm:$0xff]
    %v4620 = vld [vmem:[#allocation4 + $0x108] sm:$0xff]
    %v4621 = vld [vmem:[#allocation4 + $0x110] sm:$0xff]
    %v4622 = vld [vmem:[#allocation4 + $0x118] sm:$0xff]
    %v4623 = vld [vmem:[#allocation4 + $0x120] sm:$0xff]
    %v4624 = vld [vmem:[#allocation4 + $0x128] sm:$0xff]
    %v4625 = vld [vmem:[#allocation4 + $0x130] sm:$0xff]
    %v4626 = vld [vmem:[#allocation4 + $0x138] sm:$0xff]
    %v4627 = vld [vmem:[#allocation4 + $0x140] sm:$0xff]
    %v4628 = vld [vmem:[#allocation4 + $0x148] sm:$0xff]
    %v4629 = vld [vmem:[#allocation4 + $0x150] sm:$0xff]
    %v4630 = vld [vmem:[#allocation4 + $0x158] sm:$0xff]
    %v4631 = vld [vmem:[#allocation4 + $0x160] sm:$0xff]
    %v4632 = vld [vmem:[#allocation4 + $0x168] sm:$0xff]
    %v4633 = vld [vmem:[#allocation4 + $0x170] sm:$0xff]
    %v4634 = vld [vmem:[#allocation4 + $0x178] sm:$0xff]
    %v4635 = vld [vmem:[#allocation4 + $0x180] sm:$0xff]
    %v4636 = vld [vmem:[#allocation4 + $0x188] sm:$0xff]
    %v4637 = vld [vmem:[#allocation4 + $0x190] sm:$0xff]
    %v4638 = vld [vmem:[#allocation4 + $0x198] sm:$0xff]
    %v4639 = vld [vmem:[#allocation4 + $0x1a0] sm:$0xff]
    %v4640 = vld [vmem:[#allocation4 + $0x1a8] sm:$0xff]
    %v4641 = vld [vmem:[#allocation4 + $0x1b0] sm:$0xff]
    %v4642 = vld [vmem:[#allocation4 + $0x1b8] sm:$0xff]
    %v4643 = vld [vmem:[#allocation4 + $0x1c0] sm:$0xff]
    %v4644 = vld [vmem:[#allocation4 + $0x1c8] sm:$0xff]
    %v4645 = vld [vmem:[#allocation4 + $0x1d0] sm:$0xff]
    %v4646 = vld [vmem:[#allocation4 + $0x1d8] sm:$0xff]
    %v4647 = vld [vmem:[#allocation4 + $0x1e0] sm:$0xff]
    %v4648 = vld [vmem:[#allocation4 + $0x1e8] sm:$0xff]
    %v4649 = vld [vmem:[#allocation4 + $0x1f0] sm:$0xff]
    %v4650 = vld [vmem:[#allocation4 + $0x1f8] sm:$0xff]
    %4651 = vmatprep.subr.bf16.mxu0 0
    %4652 = vmatpush1.bf16.msra.mxu0 %v4587
    %4653 = vmatprep.subr.bf16.mxu0 0
    %4654 = vmatpush1.bf16.msra.mxu0 %v4588
    %4655 = vmatprep.subr.bf16.mxu0 0
    %4656 = vmatpush1.bf16.msra.mxu0 %v4589
    %4657 = vmatprep.subr.bf16.mxu0 0
    %4658 = vmatpush1.bf16.msra.mxu0 %v4590
    %4659 = vmatprep.subr.bf16.mxu0 0
    %4660 = vmatpush1.bf16.msra.mxu0 %v4591
    %4661 = vmatprep.subr.bf16.mxu0 0
    %4662 = vmatpush1.bf16.msra.mxu0 %v4592
    %4663 = vmatprep.subr.bf16.mxu0 0
    %4664 = vmatpush1.bf16.msra.mxu0 %v4593
    %4665 = vmatprep.subr.bf16.mxu0 0
    %4666 = vmatpush1.bf16.msra.mxu0 %v4594
    %4667 = vmatprep.subr.bf16.mxu0 0
    %4668 = vmatpush1.bf16.msra.mxu0 %v4595
    %4669 = vmatprep.subr.bf16.mxu0 0
    %4670 = vmatpush1.bf16.msra.mxu0 %v4596
    %4671 = vmatprep.subr.bf16.mxu0 0
    %4672 = vmatpush1.bf16.msra.mxu0 %v4597
    %4673 = vmatprep.subr.bf16.mxu0 0
    %4674 = vmatpush1.bf16.msra.mxu0 %v4598
    %4675 = vmatprep.subr.bf16.mxu0 0
    %4676 = vmatpush1.bf16.msra.mxu0 %v4599
    %4677 = vmatprep.subr.bf16.mxu0 0
    %4678 = vmatpush1.bf16.msra.mxu0 %v4600
    %4679 = vmatprep.subr.bf16.mxu0 0
    %4680 = vmatpush1.bf16.msra.mxu0 %v4601
    %4681 = vmatprep.subr.bf16.mxu0 0
    %4682 = vmatpush1.bf16.msra.mxu0 %v4602
    %4683 = vmatprep.mubr.bf16.mxu0 %v4580
    %4684 = vmatmul.mubr.bf16.gmra.mrb[0].mxu0 %v4579
    %v4685 = vpop.f32.mrb[0].mxu0
    %v4686 = vadd.f32 %v248, %v4685
    %v4687 = vpop.f32.mrb[0].mxu0
    %v4688 = vpop.f32.mrb[0].mxu0
    %v4689 = vpop.f32.mrb[0].mxu0
    %4690 = vdwg.mxu0
    %4691 = vmatprep.subr.bf16.mxu0 0
    %4692 = vmatpush1.bf16.msra.mxu0 %v4603
    %4693 = vmatprep.subr.bf16.mxu0 0
    %4694 = vmatpush1.bf16.msra.mxu0 %v4604
    %4695 = vmatprep.subr.bf16.mxu0 0
    %4696 = vmatpush1.bf16.msra.mxu0 %v4605
    %4697 = vmatprep.subr.bf16.mxu0 0
    %4698 = vmatpush1.bf16.msra.mxu0 %v4606
    %4699 = vmatprep.subr.bf16.mxu0 0
    %4700 = vmatpush1.bf16.msra.mxu0 %v4607
    %4701 = vmatprep.subr.bf16.mxu0 0
    %4702 = vmatpush1.bf16.msra.mxu0 %v4608
    %4703 = vmatprep.subr.bf16.mxu0 0
    %4704 = vmatpush1.bf16.msra.mxu0 %v4609
    %4705 = vmatprep.subr.bf16.mxu0 0
    %4706 = vmatpush1.bf16.msra.mxu0 %v4610
    %4707 = vmatprep.subr.bf16.mxu0 0
    %4708 = vmatpush1.bf16.msra.mxu0 %v4611
    %4709 = vmatprep.subr.bf16.mxu0 0
    %4710 = vmatpush1.bf16.msra.mxu0 %v4612
    %4711 = vmatprep.subr.bf16.mxu0 0
    %4712 = vmatpush1.bf16.msra.mxu0 %v4613
    %4713 = vmatprep.subr.bf16.mxu0 0
    %4714 = vmatpush1.bf16.msra.mxu0 %v4614
    %4715 = vmatprep.subr.bf16.mxu0 0
    %4716 = vmatpush1.bf16.msra.mxu0 %v4615
    %4717 = vmatprep.subr.bf16.mxu0 0
    %4718 = vmatpush1.bf16.msra.mxu0 %v4616
    %4719 = vmatprep.subr.bf16.mxu0 0
    %4720 = vmatpush1.bf16.msra.mxu0 %v4617
    %4721 = vmatprep.subr.bf16.mxu0 0
    %4722 = vmatpush1.bf16.msra.mxu0 %v4618
    %4723 = vmatprep.mubr.bf16.mxu0 %v4582
    %4724 = vmatmul.mubr.bf16.gmra.mrb[0].mxu0 %v4581
    %v4725 = vpop.f32.mrb[0].mxu0
    %v4726 = vadd.f32 %v4686, %v4725
    %v4727 = vpop.f32.mrb[0].mxu0
    %v4728 = vpop.f32.mrb[0].mxu0
    %v4729 = vpop.f32.mrb[0].mxu0
    %4730 = vdwg.mxu0
    %4731 = vmatprep.subr.bf16.mxu0 0
    %4732 = vmatpush1.bf16.msra.mxu0 %v4619
    %4733 = vmatprep.subr.bf16.mxu0 0
    %4734 = vmatpush1.bf16.msra.mxu0 %v4620
    %4735 = vmatprep.subr.bf16.mxu0 0
    %4736 = vmatpush1.bf16.msra.mxu0 %v4621
    %4737 = vmatprep.subr.bf16.mxu0 0
    %4738 = vmatpush1.bf16.msra.mxu0 %v4622
    %4739 = vmatprep.subr.bf16.mxu0 0
    %4740 = vmatpush1.bf16.msra.mxu0 %v4623
    %4741 = vmatprep.subr.bf16.mxu0 0
    %4742 = vmatpush1.bf16.msra.mxu0 %v4624
    %4743 = vmatprep.subr.bf16.mxu0 0
    %4744 = vmatpush1.bf16.msra.mxu0 %v4625
    %4745 = vmatprep.subr.bf16.mxu0 0
    %4746 = vmatpush1.bf16.msra.mxu0 %v4626
    %4747 = vmatprep.subr.bf16.mxu0 0
    %4748 = vmatpush1.bf16.msra.mxu0 %v4627
    %4749 = vmatprep.subr.bf16.mxu0 0
    %4750 = vmatpush1.bf16.msra.mxu0 %v4628
    %4751 = vmatprep.subr.bf16.mxu0 0
    %4752 = vmatpush1.bf16.msra.mxu0 %v4629
    %4753 = vmatprep.subr.bf16.mxu0 0
    %4754 = vmatpush1.bf16.msra.mxu0 %v4630
    %4755 = vmatprep.subr.bf16.mxu0 0
    %4756 = vmatpush1.bf16.msra.mxu0 %v4631
    %4757 = vmatprep.subr.bf16.mxu0 0
    %4758 = vmatpush1.bf16.msra.mxu0 %v4632
    %4759 = vmatprep.subr.bf16.mxu0 0
    %4760 = vmatpush1.bf16.msra.mxu0 %v4633
    %4761 = vmatprep.subr.bf16.mxu0 0
    %4762 = vmatpush1.bf16.msra.mxu0 %v4634
    %4763 = vmatprep.mubr.bf16.mxu0 %v4584
    %4764 = vmatmul.mubr.bf16.gmra.mrb[0].mxu0 %v4583
    %v4765 = vpop.f32.mrb[0].mxu0
    %v4766 = vadd.f32 %v4726, %v4765
    %v4767 = vpop.f32.mrb[0].mxu0
    %v4768 = vpop.f32.mrb[0].mxu0
    %v4769 = vpop.f32.mrb[0].mxu0
    %4770 = vdwg.mxu0
    %4771 = vmatprep.subr.bf16.mxu0 0
    %4772 = vmatpush1.bf16.msra.mxu0 %v4635
    %4773 = vmatprep.subr.bf16.mxu0 0
    %4774 = vmatpush1.bf16.msra.mxu0 %v4636
    %4775 = vmatprep.subr.bf16.mxu0 0
    %4776 = vmatpush1.bf16.msra.mxu0 %v4637
    %4777 = vmatprep.subr.bf16.mxu0 0
    %4778 = vmatpush1.bf16.msra.mxu0 %v4638
    %4779 = vmatprep.subr.bf16.mxu0 0
    %4780 = vmatpush1.bf16.msra.mxu0 %v4639
    %4781 = vmatprep.subr.bf16.mxu0 0
    %4782 = vmatpush1.bf16.msra.mxu0 %v4640
    %4783 = vmatprep.subr.bf16.mxu0 0
    %4784 = vmatpush1.bf16.msra.mxu0 %v4641
    %4785 = vmatprep.subr.bf16.mxu0 0
    %4786 = vmatpush1.bf16.msra.mxu0 %v4642
    %4787 = vmatprep.subr.bf16.mxu0 0
    %4788 = vmatpush1.bf16.msra.mxu0 %v4643
    %4789 = vmatprep.subr.bf16.mxu0 0
    %4790 = vmatpush1.bf16.msra.mxu0 %v4644
    %4791 = vmatprep.subr.bf16.mxu0 0
    %4792 = vmatpush1.bf16.msra.mxu0 %v4645
    %4793 = vmatprep.subr.bf16.mxu0 0
    %4794 = vmatpush1.bf16.msra.mxu0 %v4646
    %4795 = vmatprep.subr.bf16.mxu0 0
    %4796 = vmatpush1.bf16.msra.mxu0 %v4647
    %4797 = vmatprep.subr.bf16.mxu0 0
    %4798 = vmatpush1.bf16.msra.mxu0 %v4648
    %4799 = vmatprep.subr.bf16.mxu0 0
    %4800 = vmatpush1.bf16.msra.mxu0 %v4649
    %4801 = vmatprep.subr.bf16.mxu0 0
    %4802 = vmatpush1.bf16.msra.mxu0 %v4650
    %4803 = vmatprep.mubr.bf16.mxu0 %v4586
    %4804 = vmatmul.mubr.bf16.gmra.mrb[0].mxu0 %v4585
    %v4805 = vpop.f32.mrb[0].mxu0
    %v4806 = vadd.f32 %v4766, %v4805
    %v4807 = vpop.f32.mrb[0].mxu0
    %v4808 = vpop.f32.mrb[0].mxu0
    %v4809 = vpop.f32.mrb[0].mxu0
    %4810 = vdwg.mxu0
    %4811 = vst [vmem:[#allocation11] sm:$0xff] %v4806
    // Predicated region
    $region22: #{r101h_forward.1} parent=1 // pred_check
      _
    $region23: #{r101h_forward.1} parent=1 // pred_check_branch
      %4813 = sbr.rel (0) target = $region25
    $region24: #{r101h_forward.1} parent=1 // pred_region
      %s4815 = ssub.s32 128, 128
      %4816 = vsyncadd [#allocation8], %s4815
      %s4818 = sshll.u32 [#allocation11], 4
      %s4819 = int_to_ptr.vmem [resolvable:$true] %s4818
      %4821 = dma.vmem_to_hbm [thread:$0]  %s4819, 128, %s5, [#allocation8]
    $region25: #{r101h_forward.1} parent=1 // pred_fallthru
      _
    // Predicated region
    $region26: #{r101h_forward.1} parent=1 // pred_check
      _
    $region27: #{r101h_forward.1} parent=1 // pred_check_branch
      %4823 = sbr.rel (0) target = $region29
    $region28: #{r101h_forward.1} parent=1 // pred_region
      %4824 = dma.done [#allocation8], 128
    $region29: #{r101h_forward.1} parent=1 // pred_fallthru
      _
    %4825 = vsyncpa [#allocation7], 1
    %4826 = vsyncpa [#allocation10], 1
    %4827 = vsyncpa [#allocation8], 1
  %4828 = vsyncmov [#allocation5]
  %s4829 = vpop.sfrf %4828
  %p4830 = scmp.eq.s32.totalorder %s4829, 0
  %p4831 = pneg %p4830
  %4833 = shalt.err (%p4831)
  %s4834 = scalar_lea.sflag [#allocation5], 1
  %4835 = vsyncmov %s4834
  %s4836 = vpop.sfrf %4835
  %p4837 = scmp.eq.s32.totalorder %s4836, 0
  %p4838 = pneg %p4837
  %4840 = shalt.err (%p4838)
  %s4841 = scalar_lea.sflag [#allocation5], 2
  %4842 = vsyncmov %s4841
  %s4843 = vpop.sfrf %4842
  %p4844 = scmp.eq.s32.totalorder %s4843, 0
  %p4845 = pneg %p4844
  %4847 = shalt.err (%p4845)
  %s4848 = scalar_lea.sflag [#allocation5], 3
  %4849 = vsyncmov %s4848
  %s4850 = vpop.sfrf %4849
  %p4851 = scmp.eq.s32.totalorder %s4850, 0
  %p4852 = pneg %p4851
  %4854 = shalt.err (%p4852)
  %s4855 = scalar_lea.sflag [#allocation5], 4
  %4856 = vsyncmov %s4855
  %s4857 = vpop.sfrf %4856
  %p4858 = scmp.eq.s32.totalorder %s4857, 0
  %p4859 = pneg %p4858
  %4861 = shalt.err (%p4859)
  %s4862 = scalar_lea.sflag [#allocation5], 5
  %4863 = vsyncmov %s4862
  %s4864 = vpop.sfrf %4863
  %p4865 = scmp.eq.s32.totalorder %s4864, 0
  %p4866 = pneg %p4865
  %4868 = shalt.err (%p4866)

</llo_original>
